<compile_context>
chip_gen: v6e
topology: v6e:2x2x1
jax: 0.10.0
libtpu: 0.0.40
codegen_flags: <defaults>
</compile_context>

<pallas_src>
import functools

import jax
import jax.numpy as jnp
from jax.experimental import pallas as pl
from jax.experimental.pallas import tpu as pltpu


@functools.lru_cache(maxsize=None)
def _use_bf16_tanh():
    # bf16 VPU/EUP exists on v6e/v7x; on v5e (and unknown chips) bf16 tanh
    # would only add converts, so whitelist-gate on the device kind.
    try:
        kind = jax.devices()[0].device_kind.lower()
    except Exception:  # pragma: no cover - device query failure -> safe path
        return False
    return ("v6" in kind) or ("v7" in kind)


# ----------------------------------------------------------------------------
# Pallas kernels
# ----------------------------------------------------------------------------
def _cmul_kernel(ar_ref, ai_ref, wr_ref, wi_ref, or_ref, oi_ref):
    # Complex per-mode channel mixing for BOTH weight blocks of one
    # SpectralConv2d in a single shot, with the mode axis on lanes:
    #   out[b, o, m] = sum_i a[b, i, m] * w[i, o, m]      (complex)
    # Cin is small and static, so the contraction is unrolled into lane-dense
    # VPU FMAs (no MXU involvement at all).
    ar = ar_ref[...]            # (B, Cin, 2M)
    ai = ai_ref[...]
    wr = wr_ref[...]            # (Cin, Cout, 2M)
    wi = wi_ref[...]
    cin = wr.shape[0]
    outr = jnp.zeros(or_ref.shape, jnp.float32)
    outi = jnp.zeros(oi_ref.shape, jnp.float32)
    for i in range(cin):        # static unroll over the Cin contraction
        a_r = ar[:, i:i + 1, :]         # (B, 1, 2M)
        a_i = ai[:, i:i + 1, :]
        w_r = wr[i:i + 1]               # (1, Cout, 2M)
        w_i = wi[i:i + 1]
        # plain 4-multiply complex product (no Karatsuba at these sizes)
        outr = outr + a_r * w_r - a_i * w_i
        outi = outi + a_r * w_i + a_i * w_r
    or_ref[...] = outr
    oi_ref[...] = outi


def compl_mul_pallas(ar, ai, wr, wi):
    # ar/ai: (B, Cin, 2M) f32 ; wr/wi: (Cin, Cout, 2M) f32 -> (B, Cout, 2M) x2
    B = ar.shape[0]
    Cout = wr.shape[1]
    M2 = wr.shape[2]
    # Single invocation, everything resident in VMEM (data is a few KB).
    return pl.pallas_call(
        _cmul_kernel,
        out_shape=(jax.ShapeDtypeStruct((B, Cout, M2), jnp.float32),
                   jax.ShapeDtypeStruct((B, Cout, M2), jnp.float32)),
    )(ar, ai, wr, wi)


def _block0_kernel(x1_ref, x_ref, w_ref, b_ref, o_ref):
    # o = tanh(x1 + W @ x + b)   (spectral branch + 1x1-conv branch, fused)
    y = (x1_ref[...]
         + jnp.dot(w_ref[...], x_ref[...], preferred_element_type=jnp.float32)
         + b_ref[...])
    o_ref[...] = jnp.tanh(y)


def block0_pallas(x1, x, w, b):
    # x1, x: (B*C, HW) channels-first, spatial on lanes; w: (C, C); b: (C, 1)
    BC, HW = x.shape
    C = w.shape[0]
    B = BC // C
    return pl.pallas_call(
        _block0_kernel,
        out_shape=jax.ShapeDtypeStruct((BC, HW), jnp.float32),
        grid=(B,),
        in_specs=[
            pl.BlockSpec((C, HW), lambda i: (i, 0)),
            pl.BlockSpec((C, HW), lambda i: (i, 0)),
            pl.BlockSpec((C, C), lambda i: (0, 0)),
            pl.BlockSpec((C, 1), lambda i: (0, 0)),
        ],
        out_specs=pl.BlockSpec((C, HW), lambda i: (i, 0)),
        compiler_params=pltpu.CompilerParams(dimension_semantics=("parallel",)),
    )(x1, x, w, b)


def _block1_kernel(x1_ref, x_ref, w_ref, b_ref, o_ref, sum_ref, sq_ref):
    # o = x1 + W @ x + b, with per-batch-element BatchNorm partial statistics
    # emitted as (1, C, 1) outputs.  No resident accumulator -> the batch grid
    # axis stays 'parallel' and both TensorCores can run on v7x.
    y = (x1_ref[...]
         + jnp.dot(w_ref[...], x_ref[...], preferred_element_type=jnp.float32)
         + b_ref[...])
    o_ref[...] = y
    sum_ref[...] = jnp.sum(y, axis=1, keepdims=True).reshape(sum_ref.shape)
    sq_ref[...] = jnp.sum(y * y, axis=1, keepdims=True).reshape(sq_ref.shape)


def block1_pallas(x1, x, w, b):
    BC, HW = x.shape
    C = w.shape[0]
    B = BC // C
    return pl.pallas_call(
        _block1_kernel,
        out_shape=(jax.ShapeDtypeStruct((BC, HW), jnp.float32),
                   jax.ShapeDtypeStruct((B, C, 1), jnp.float32),
                   jax.ShapeDtypeStruct((B, C, 1), jnp.float32)),
        grid=(B,),
        in_specs=[
            pl.BlockSpec((C, HW), lambda i: (i, 0)),
            pl.BlockSpec((C, HW), lambda i: (i, 0)),
            pl.BlockSpec((C, C), lambda i: (0, 0)),
            pl.BlockSpec((C, 1), lambda i: (0, 0)),
        ],
        out_specs=(pl.BlockSpec((C, HW), lambda i: (i, 0)),
                   pl.BlockSpec((1, C, 1), lambda i: (i, 0, 0)),
                   pl.BlockSpec((1, C, 1), lambda i: (i, 0, 0))),
        compiler_params=pltpu.CompilerParams(dimension_semantics=("parallel",)),
    )(x1, x, w, b)


def _head_kernel(y_ref, scale_ref, shift_ref, w1_ref, b1_ref, w2_ref, b2_ref,
                 o_ref, *, use_bf16):
    # BN affine -> tanh -> fc1 -> tanh -> fc2 -> activation_alpha, fully fused.
    z = jnp.tanh(y_ref[...] * scale_ref[...] + shift_ref[...])        # (C, HW)
    h = (jnp.dot(w1_ref[...], z, preferred_element_type=jnp.float32)
         + b1_ref[...])                                               # (hid, HW)
    if use_bf16:
        # dominant transcendental block -> bf16 EUP on v6e/v7x (~2x throughput)
        h = jnp.tanh(h.astype(jnp.bfloat16)).astype(jnp.float32)
    else:
        h = jnp.tanh(h)
    logits = (jnp.dot(w2_ref[...], h, preferred_element_type=jnp.float32)
              + b2_ref[...])                                          # (1, HW)
    o_ref[...] = (0.05 + 0.95 * jax.nn.sigmoid(logits))[None]


def head_pallas(y, scale, shift, w1, b1, w2, b2):
    # y: (B*C, HW) cropped region; scale/shift: (C,1); w1: (hid,C); w2: (1,hid)
    BC, HW = y.shape
    C = scale.shape[0]
    B = BC // C
    hid = w1.shape[0]
    kernel = functools.partial(_head_kernel, use_bf16=_use_bf16_tanh())
    return pl.pallas_call(
        kernel,
        out_shape=jax.ShapeDtypeStruct((B, 1, HW), jnp.float32),
        grid=(B,),
        in_specs=[
            pl.BlockSpec((C, HW), lambda i: (i, 0)),
            pl.BlockSpec((C, 1), lambda i: (0, 0)),
            pl.BlockSpec((C, 1), lambda i: (0, 0)),
            pl.BlockSpec((hid, C), lambda i: (0, 0)),
            pl.BlockSpec((hid, 1), lambda i: (0, 0)),
            pl.BlockSpec((1, hid), lambda i: (0, 0)),
            pl.BlockSpec((1, 1), lambda i: (0, 0)),
        ],
        out_specs=pl.BlockSpec((1, 1, HW), lambda i: (i, 0, 0)),
        compiler_params=pltpu.CompilerParams(dimension_semantics=("parallel",)),
    )(y, scale, shift, w1, b1, w2, b2)


# ----------------------------------------------------------------------------
# model glue (plain JAX)
# ----------------------------------------------------------------------------
def incremental_x(x):
    size_t = x.shape[2]
    half = x[:, :, : (size_t // 2 + size_t % 2), :]
    grid = jnp.zeros_like(x)
    grid = grid.at[:, :, 0::2, :].set(half)
    grid = grid.at[:, :, 1:-1:2, :].set(0.5 * (half[:, :, :-1, :] + half[:, :, 1:, :]))
    return grid


def prep_spectral_weights(w1, w2):
    # (Cin, Cout, m1, m2) complex pair -> (Cin, Cout, 2*m1*m2) re/im f32 with
    # the MODE axis last (lanes).  Done once at parameter-preparation time.
    def t(w):
        cin, cout, m1, m2 = w.shape
        return w.reshape(cin, cout, m1 * m2)
    ws = jnp.concatenate([t(w1), t(w2)], axis=2)
    return jnp.real(ws).astype(jnp.float32), jnp.imag(ws).astype(jnp.float32)


def spectral_conv2d(x_nchw, wr, wi, modes1, modes2):
    # TODO(synk): FFT has no Pallas primitive; rfftn/irfftn stay in plain JAX.
    B, C, H, W = x_nchw.shape
    Cout = wr.shape[1]
    Wf = W // 2 + 1
    x_ft = jnp.fft.rfftn(x_nchw, axes=(2, 3))
    # Low (top) and high (bottom) frequency blocks, kept in (B, Cin, modes)
    # layout end-to-end: no transposes, modes land on lanes.
    a = jnp.concatenate([x_ft[:, :, :modes1, :modes2],
                         x_ft[:, :, H - modes1:, :modes2]], axis=2)
    a = a.reshape(B, C, 2 * modes1 * modes2)
    or_, oi_ = compl_mul_pallas(jnp.real(a), jnp.imag(a), wr, wi)
    o = jax.lax.complex(or_, oi_).reshape(B, Cout, 2 * modes1, modes2)
    # Rebuild out_ft with pad + concatenate (no zeros().at[].set scatter).
    low = jnp.pad(o[:, :, :modes1],
                  ((0, 0), (0, 0), (0, H - 2 * modes1), (0, Wf - modes2)))
    high = jnp.pad(o[:, :, modes1:],
                   ((0, 0), (0, 0), (0, 0), (0, Wf - modes2)))
    out_ft = jnp.concatenate([low, high], axis=2)            # (B, Cout, H, Wf)
    return jnp.fft.irfftn(out_ft, s=(H, W), axes=(2, 3)).astype(jnp.float32)


def alpha_fno2d_forward(x, params, modes1, modes2, width, padding=9):
    B, S1, S2, _ = x.shape
    C = width
    x_ini = incremental_x(x)                               # (B, S1, S2, 1)

    # fc0: Linear(1, width) is a per-channel scalar broadcast; plain JAX so
    # XLA fuses it with the transpose/pad (a Pallas call here is pure overhead).
    h = (x_ini[..., 0][:, None, :, :] * params["fc0_w"].reshape(1, C, 1, 1)
         + params["fc0_b"].reshape(1, C, 1, 1))            # (B, C, S1, S2)

    # zero pad bottom/right (matches F.pad(x, [0, p, 0, p]))
    h = jnp.pad(h, ((0, 0), (0, 0), (0, padding), (0, padding)))
    Hp, Wp = S1 + padding, S2 + padding
    HW = Hp * Wp
    N = B * HW

    def to_cf(t):      # NCHW -> channels-first rows (B*C, HW); pure reshape
        return t.reshape(B * C, HW)

    def to_nchw(r):    # (B*C, HW) -> NCHW; pure reshape
        return r.reshape(B, C, Hp, Wp)

    # block 0: spectral conv + 1x1 conv + tanh (fused)
    x1 = spectral_conv2d(h, params["conv0_wr"], params["conv0_wi"], modes1, modes2)
    z = block0_pallas(to_cf(x1), to_cf(h), params["w0_w"], params["w0_b"])

    # block 1: spectral conv + 1x1 conv, emitting per-batch BN partial stats
    x1 = spectral_conv2d(to_nchw(z), params["conv1_wr"], params["conv1_wi"],
                         modes1, modes2)
    y, ps, psq = block1_pallas(to_cf(x1), z, params["w1_w"], params["w1_b"])

    # BatchNorm2d (training-mode batch statistics, biased variance); the tiny
    # (B, C) partial-sum reduction happens in plain JAX.
    s = jnp.sum(ps, axis=0)[:, 0]                          # (C,)
    sq = jnp.sum(psq, axis=0)[:, 0]
    mean = s / N
    var = sq / N - mean * mean
    eps = 1e-5
    scale = params["bn_gamma"] / jnp.sqrt(var + eps)
    shift = params["bn_beta"] - mean * scale

    # crop the padding (BN affine + tanh are pointwise, so they commute with
    # the crop), then fused BN-apply -> tanh -> fc1 -> tanh -> fc2 -> alpha
    y_crop = to_nchw(y)[:, :, :S1, :S2].reshape(B * C, S1 * S2)
    out = head_pallas(y_crop, scale.reshape(C, 1), shift.reshape(C, 1),
                      params["fc1_w"], params["fc1_b"],
                      params["fc2_w"], params["fc2_b"])    # (B, 1, S1*S2)
    return out.reshape(B, S1, S2, 1)


# ----------------------------------------------------------------------------
# plain-JAX reference (mirror of the PyTorch forward) for correctness checking
# ----------------------------------------------------------------------------
def alpha_fno2d_reference(x, params, modes1, modes2, width, padding=9):
    B, S1, S2, _ = x.shape
    C = width
    x_ini = incremental_x(x)
    h = (x_ini[..., 0][:, None, :, :] * params["fc0_w"].reshape(1, C, 1, 1)
         + params["fc0_b"].reshape(1, C, 1, 1))
    h = jnp.pad(h, ((0, 0), (0, 0), (0, padding), (0, padding)))
    Hp, Wp = S1 + padding, S2 + padding

    def spec(xin, wr, wi):
        w = (wr + 1j * wi).astype(jnp.complex64)           # (Cin, Cout, 2*m1*m2)
        w = w.reshape(C, C, 2, modes1, modes2)
        w1 = w[:, :, 0]                                     # (Cin, Cout, m1, m2)
        w2 = w[:, :, 1]
        x_ft = jnp.fft.rfftn(xin, axes=(2, 3))
        out_ft = jnp.zeros((B, C, Hp, Wp // 2 + 1), jnp.complex64)
        out_ft = out_ft.at[:, :, :modes1, :modes2].set(
            jnp.einsum('bixy,ioxy->boxy', x_ft[:, :, :modes1, :modes2], w1))
        out_ft = out_ft.at[:, :, Hp - modes1:, :modes2].set(
            jnp.einsum('bixy,ioxy->boxy', x_ft[:, :, Hp - modes1:, :modes2], w2))
        return jnp.fft.irfftn(out_ft, s=(Hp, Wp), axes=(2, 3)).astype(jnp.float32)

    def conv1x1(t, w, b):
        return jnp.einsum('oi,bihw->bohw', w, t) + b.reshape(1, C, 1, 1)

    z = jnp.tanh(spec(h, params["conv0_wr"], params["conv0_wi"])
                 + conv1x1(h, params["w0_w"], params["w0_b"]))
    y = (spec(z, params["conv1_wr"], params["conv1_wi"])
         + conv1x1(z, params["w1_w"], params["w1_b"]))
    mean = jnp.mean(y, axis=(0, 2, 3))
    var = jnp.mean(y * y, axis=(0, 2, 3)) - mean * mean
    yb = (y - mean.reshape(1, C, 1, 1)) / jnp.sqrt(var.reshape(1, C, 1, 1) + 1e-5)
    yb = (yb * params["bn_gamma"].reshape(1, C, 1, 1)
          + params["bn_beta"].reshape(1, C, 1, 1))
    zt = jnp.tanh(yb)[:, :, :S1, :S2]
    zt = jnp.transpose(zt, (0, 2, 3, 1))                   # (B, S1, S2, C)
    hfc = jnp.tanh(zt @ params["fc1_w"].T + params["fc1_b"].ravel())
    logit = hfc @ params["fc2_w"].T + params["fc2_b"].ravel()
    return 0.05 + 0.95 * jax.nn.sigmoid(logit)


# ----------------------------------------------------------------------------
# deterministic parameter init (shapes as in the PyTorch __init__, stored in
# the kernel-friendly layouts)
# ----------------------------------------------------------------------------
def init_params(key, modes1, modes2, width):
    keys = jax.random.split(key, 14)
    cscale = 1.0 / (width * width)

    def cplx(k, shape):
        kr, ki = jax.random.split(k)
        return (cscale * jax.random.uniform(kr, shape)
                + 1j * cscale * jax.random.uniform(ki, shape)).astype(jnp.complex64)

    def unif(k, shape, bound):
        return jax.random.uniform(k, shape, minval=-bound, maxval=bound,
                                  dtype=jnp.float32)

    w_shape = (width, width, modes1, modes2)
    conv0_w1, conv0_w2 = cplx(keys[2], w_shape), cplx(keys[3], w_shape)
    conv1_w1, conv1_w2 = cplx(keys[4], w_shape), cplx(keys[5], w_shape)

    p = {}
    p["fc0_w"] = unif(keys[0], (width,), 1.0)
    p["fc0_b"] = unif(keys[1], (width,), 1.0)
    # spectral weights pre-stored as (Cin, Cout, 2*m1*m2) real/imag planes
    # (mode axis last, hoisted out of the forward pass)
    p["conv0_wr"], p["conv0_wi"] = prep_spectral_weights(conv0_w1, conv0_w2)
    p["conv1_wr"], p["conv1_wi"] = prep_spectral_weights(conv1_w1, conv1_w2)
    b = 1.0 / (width ** 0.5)
    p["w0_w"] = unif(keys[6], (width, width), b)        # (Cout, Cin)
    p["w0_b"] = unif(keys[7], (width, 1), b)
    p["w1_w"] = unif(keys[8], (width, width), b)
    p["w1_b"] = unif(keys[9], (width, 1), b)
    p["bn_gamma"] = jnp.ones((width,), jnp.float32)
    p["bn_beta"] = jnp.zeros((width,), jnp.float32)
    p["fc1_w"] = unif(keys[10], (128, width), b)        # (out, in)
    p["fc1_b"] = unif(keys[11], (128, 1), b)
    p["fc2_w"] = unif(keys[12], (1, 128), 1.0 / (128 ** 0.5))
    p["fc2_b"] = unif(keys[13], (1, 1), 1.0 / (128 ** 0.5))
    return p


if __name__ == "__main__":
    key = jax.random.PRNGKey(0)
    modes1, modes2, width = 6, 6, 8
    B, S1, S2 = 2, 16, 16

    kx, kp = jax.random.split(key)
    x = jax.random.normal(kx, (B, S1, S2, 1), dtype=jnp.float32)
    params = init_params(kp, modes1, modes2, width)

    fwd = jax.jit(functools.partial(alpha_fno2d_forward, modes1=modes1,
                                    modes2=modes2, width=width))
    out = jax.block_until_ready(fwd(x, params))

    assert out.shape == (B, S1, S2, 1)
    assert bool(jnp.all(jnp.isfinite(out)))
    assert bool(jnp.all(out >= 0.05)) and bool(jnp.all(out <= 1.0))

    # correctness check against a plain-JAX mirror of the PyTorch forward
    with jax.default_matmul_precision("float32"):
        ref = jax.block_until_ready(
            alpha_fno2d_reference(x, params, modes1, modes2, width))
    max_err = float(jnp.max(jnp.abs(out - ref)))
    tol = 1e-2 if _use_bf16_tanh() else 2e-3   # bf16 tanh in the head on v6e/v7x
    assert max_err < tol, f"mismatch vs reference: {max_err}"

    print("KERNEL_OK")
</pallas_src>

<mosaic_0001>
module attributes {stable_mosaic.version = 11 : i64} {
  func.func @_cmul_kernel(%arg0: memref<2x8x72xf32, #tpu.memory_space<vmem>>, %arg1: memref<2x8x72xf32, #tpu.memory_space<vmem>>, %arg2: memref<8x8x72xf32, #tpu.memory_space<vmem>>, %arg3: memref<8x8x72xf32, #tpu.memory_space<vmem>>, %arg4: memref<2x8x72xf32, #tpu.memory_space<vmem>>, %arg5: memref<2x8x72xf32, #tpu.memory_space<vmem>>) attributes {dimension_semantics = [], scalar_prefetch = 0 : i64, scratch_operands = 0 : i64, tpu.core_type = #tpu.core_type<tc>} {
    %c0 = arith.constant 0 : index
    %c0_0 = arith.constant 0 : index
    %c0_1 = arith.constant 0 : index
    %0 = vector.load %arg0[%c0, %c0_0, %c0_1] : memref<2x8x72xf32, #tpu.memory_space<vmem>>, vector<2x8x72xf32>
    %c0_2 = arith.constant 0 : index
    %c0_3 = arith.constant 0 : index
    %c0_4 = arith.constant 0 : index
    %1 = vector.load %arg1[%c0_2, %c0_3, %c0_4] : memref<2x8x72xf32, #tpu.memory_space<vmem>>, vector<2x8x72xf32>
    %c0_5 = arith.constant 0 : index
    %c0_6 = arith.constant 0 : index
    %c0_7 = arith.constant 0 : index
    %2 = vector.load %arg2[%c0_5, %c0_6, %c0_7] : memref<8x8x72xf32, #tpu.memory_space<vmem>>, vector<8x8x72xf32>
    %c0_8 = arith.constant 0 : index
    %c0_9 = arith.constant 0 : index
    %c0_10 = arith.constant 0 : index
    %3 = vector.load %arg3[%c0_8, %c0_9, %c0_10] : memref<8x8x72xf32, #tpu.memory_space<vmem>>, vector<8x8x72xf32>
    %cst = arith.constant 0.000000e+00 : f32
    %4 = vector.broadcast %cst : f32 to vector<2x8x72xf32>
    %cst_11 = arith.constant 0.000000e+00 : f32
    %5 = vector.broadcast %cst_11 : f32 to vector<2x8x72xf32>
    %6 = vector.extract_strided_slice %0 {offsets = [0, 0, 0], sizes = [2, 1, 72], strides = [1, 1, 1]} : vector<2x8x72xf32> to vector<2x1x72xf32>
    %7 = vector.extract_strided_slice %1 {offsets = [0, 0, 0], sizes = [2, 1, 72], strides = [1, 1, 1]} : vector<2x8x72xf32> to vector<2x1x72xf32>
    %8 = vector.extract_strided_slice %2 {offsets = [0, 0, 0], sizes = [1, 8, 72], strides = [1, 1, 1]} : vector<8x8x72xf32> to vector<1x8x72xf32>
    %9 = vector.extract_strided_slice %3 {offsets = [0, 0, 0], sizes = [1, 8, 72], strides = [1, 1, 1]} : vector<8x8x72xf32> to vector<1x8x72xf32>
    %10 = vector.broadcast %6 : vector<2x1x72xf32> to vector<2x8x72xf32>
    %11 = vector.broadcast %8 : vector<1x8x72xf32> to vector<2x8x72xf32>
    %12 = arith.mulf %10, %11 : vector<2x8x72xf32>
    %13 = arith.addf %4, %12 : vector<2x8x72xf32>
    %14 = vector.broadcast %7 : vector<2x1x72xf32> to vector<2x8x72xf32>
    %15 = vector.broadcast %9 : vector<1x8x72xf32> to vector<2x8x72xf32>
    %16 = arith.mulf %14, %15 : vector<2x8x72xf32>
    %17 = arith.subf %13, %16 : vector<2x8x72xf32>
    %18 = vector.broadcast %6 : vector<2x1x72xf32> to vector<2x8x72xf32>
    %19 = vector.broadcast %9 : vector<1x8x72xf32> to vector<2x8x72xf32>
    %20 = arith.mulf %18, %19 : vector<2x8x72xf32>
    %21 = arith.addf %5, %20 : vector<2x8x72xf32>
    %22 = vector.broadcast %7 : vector<2x1x72xf32> to vector<2x8x72xf32>
    %23 = vector.broadcast %8 : vector<1x8x72xf32> to vector<2x8x72xf32>
    %24 = arith.mulf %22, %23 : vector<2x8x72xf32>
    %25 = arith.addf %21, %24 : vector<2x8x72xf32>
    %26 = vector.extract_strided_slice %0 {offsets = [0, 1, 0], sizes = [2, 1, 72], strides = [1, 1, 1]} : vector<2x8x72xf32> to vector<2x1x72xf32>
    %27 = vector.extract_strided_slice %1 {offsets = [0, 1, 0], sizes = [2, 1, 72], strides = [1, 1, 1]} : vector<2x8x72xf32> to vector<2x1x72xf32>
    %28 = vector.extract_strided_slice %2 {offsets = [1, 0, 0], sizes = [1, 8, 72], strides = [1, 1, 1]} : vector<8x8x72xf32> to vector<1x8x72xf32>
    %29 = vector.extract_strided_slice %3 {offsets = [1, 0, 0], sizes = [1, 8, 72], strides = [1, 1, 1]} : vector<8x8x72xf32> to vector<1x8x72xf32>
    %30 = vector.broadcast %26 : vector<2x1x72xf32> to vector<2x8x72xf32>
    %31 = vector.broadcast %28 : vector<1x8x72xf32> to vector<2x8x72xf32>
    %32 = arith.mulf %30, %31 : vector<2x8x72xf32>
    %33 = arith.addf %17, %32 : vector<2x8x72xf32>
    %34 = vector.broadcast %27 : vector<2x1x72xf32> to vector<2x8x72xf32>
    %35 = vector.broadcast %29 : vector<1x8x72xf32> to vector<2x8x72xf32>
    %36 = arith.mulf %34, %35 : vector<2x8x72xf32>
    %37 = arith.subf %33, %36 : vector<2x8x72xf32>
    %38 = vector.broadcast %26 : vector<2x1x72xf32> to vector<2x8x72xf32>
    %39 = vector.broadcast %29 : vector<1x8x72xf32> to vector<2x8x72xf32>
    %40 = arith.mulf %38, %39 : vector<2x8x72xf32>
    %41 = arith.addf %25, %40 : vector<2x8x72xf32>
    %42 = vector.broadcast %27 : vector<2x1x72xf32> to vector<2x8x72xf32>
    %43 = vector.broadcast %28 : vector<1x8x72xf32> to vector<2x8x72xf32>
    %44 = arith.mulf %42, %43 : vector<2x8x72xf32>
    %45 = arith.addf %41, %44 : vector<2x8x72xf32>
    %46 = vector.extract_strided_slice %0 {offsets = [0, 2, 0], sizes = [2, 1, 72], strides = [1, 1, 1]} : vector<2x8x72xf32> to vector<2x1x72xf32>
    %47 = vector.extract_strided_slice %1 {offsets = [0, 2, 0], sizes = [2, 1, 72], strides = [1, 1, 1]} : vector<2x8x72xf32> to vector<2x1x72xf32>
    %48 = vector.extract_strided_slice %2 {offsets = [2, 0, 0], sizes = [1, 8, 72], strides = [1, 1, 1]} : vector<8x8x72xf32> to vector<1x8x72xf32>
    %49 = vector.extract_strided_slice %3 {offsets = [2, 0, 0], sizes = [1, 8, 72], strides = [1, 1, 1]} : vector<8x8x72xf32> to vector<1x8x72xf32>
    %50 = vector.broadcast %46 : vector<2x1x72xf32> to vector<2x8x72xf32>
    %51 = vector.broadcast %48 : vector<1x8x72xf32> to vector<2x8x72xf32>
    %52 = arith.mulf %50, %51 : vector<2x8x72xf32>
    %53 = arith.addf %37, %52 : vector<2x8x72xf32>
    %54 = vector.broadcast %47 : vector<2x1x72xf32> to vector<2x8x72xf32>
    %55 = vector.broadcast %49 : vector<1x8x72xf32> to vector<2x8x72xf32>
    %56 = arith.mulf %54, %55 : vector<2x8x72xf32>
    %57 = arith.subf %53, %56 : vector<2x8x72xf32>
    %58 = vector.broadcast %46 : vector<2x1x72xf32> to vector<2x8x72xf32>
    %59 = vector.broadcast %49 : vector<1x8x72xf32> to vector<2x8x72xf32>
    %60 = arith.mulf %58, %59 : vector<2x8x72xf32>
    %61 = arith.addf %45, %60 : vector<2x8x72xf32>
    %62 = vector.broadcast %47 : vector<2x1x72xf32> to vector<2x8x72xf32>
    %63 = vector.broadcast %48 : vector<1x8x72xf32> to vector<2x8x72xf32>
    %64 = arith.mulf %62, %63 : vector<2x8x72xf32>
    %65 = arith.addf %61, %64 : vector<2x8x72xf32>
    %66 = vector.extract_strided_slice %0 {offsets = [0, 3, 0], sizes = [2, 1, 72], strides = [1, 1, 1]} : vector<2x8x72xf32> to vector<2x1x72xf32>
    %67 = vector.extract_strided_slice %1 {offsets = [0, 3, 0], sizes = [2, 1, 72], strides = [1, 1, 1]} : vector<2x8x72xf32> to vector<2x1x72xf32>
    %68 = vector.extract_strided_slice %2 {offsets = [3, 0, 0], sizes = [1, 8, 72], strides = [1, 1, 1]} : vector<8x8x72xf32> to vector<1x8x72xf32>
    %69 = vector.extract_strided_slice %3 {offsets = [3, 0, 0], sizes = [1, 8, 72], strides = [1, 1, 1]} : vector<8x8x72xf32> to vector<1x8x72xf32>
    %70 = vector.broadcast %66 : vector<2x1x72xf32> to vector<2x8x72xf32>
    %71 = vector.broadcast %68 : vector<1x8x72xf32> to vector<2x8x72xf32>
    %72 = arith.mulf %70, %71 : vector<2x8x72xf32>
    %73 = arith.addf %57, %72 : vector<2x8x72xf32>
    %74 = vector.broadcast %67 : vector<2x1x72xf32> to vector<2x8x72xf32>
    %75 = vector.broadcast %69 : vector<1x8x72xf32> to vector<2x8x72xf32>
    %76 = arith.mulf %74, %75 : vector<2x8x72xf32>
    %77 = arith.subf %73, %76 : vector<2x8x72xf32>
    %78 = vector.broadcast %66 : vector<2x1x72xf32> to vector<2x8x72xf32>
    %79 = vector.broadcast %69 : vector<1x8x72xf32> to vector<2x8x72xf32>
    %80 = arith.mulf %78, %79 : vector<2x8x72xf32>
    %81 = arith.addf %65, %80 : vector<2x8x72xf32>
    %82 = vector.broadcast %67 : vector<2x1x72xf32> to vector<2x8x72xf32>
    %83 = vector.broadcast %68 : vector<1x8x72xf32> to vector<2x8x72xf32>
    %84 = arith.mulf %82, %83 : vector<2x8x72xf32>
    %85 = arith.addf %81, %84 : vector<2x8x72xf32>
    %86 = vector.extract_strided_slice %0 {offsets = [0, 4, 0], sizes = [2, 1, 72], strides = [1, 1, 1]} : vector<2x8x72xf32> to vector<2x1x72xf32>
    %87 = vector.extract_strided_slice %1 {offsets = [0, 4, 0], sizes = [2, 1, 72], strides = [1, 1, 1]} : vector<2x8x72xf32> to vector<2x1x72xf32>
    %88 = vector.extract_strided_slice %2 {offsets = [4, 0, 0], sizes = [1, 8, 72], strides = [1, 1, 1]} : vector<8x8x72xf32> to vector<1x8x72xf32>
    %89 = vector.extract_strided_slice %3 {offsets = [4, 0, 0], sizes = [1, 8, 72], strides = [1, 1, 1]} : vector<8x8x72xf32> to vector<1x8x72xf32>
    %90 = vector.broadcast %86 : vector<2x1x72xf32> to vector<2x8x72xf32>
    %91 = vector.broadcast %88 : vector<1x8x72xf32> to vector<2x8x72xf32>
    %92 = arith.mulf %90, %91 : vector<2x8x72xf32>
    %93 = arith.addf %77, %92 : vector<2x8x72xf32>
    %94 = vector.broadcast %87 : vector<2x1x72xf32> to vector<2x8x72xf32>
    %95 = vector.broadcast %89 : vector<1x8x72xf32> to vector<2x8x72xf32>
    %96 = arith.mulf %94, %95 : vector<2x8x72xf32>
    %97 = arith.subf %93, %96 : vector<2x8x72xf32>
    %98 = vector.broadcast %86 : vector<2x1x72xf32> to vector<2x8x72xf32>
    %99 = vector.broadcast %89 : vector<1x8x72xf32> to vector<2x8x72xf32>
    %100 = arith.mulf %98, %99 : vector<2x8x72xf32>
    %101 = arith.addf %85, %100 : vector<2x8x72xf32>
    %102 = vector.broadcast %87 : vector<2x1x72xf32> to vector<2x8x72xf32>
    %103 = vector.broadcast %88 : vector<1x8x72xf32> to vector<2x8x72xf32>
    %104 = arith.mulf %102, %103 : vector<2x8x72xf32>
    %105 = arith.addf %101, %104 : vector<2x8x72xf32>
    %106 = vector.extract_strided_slice %0 {offsets = [0, 5, 0], sizes = [2, 1, 72], strides = [1, 1, 1]} : vector<2x8x72xf32> to vector<2x1x72xf32>
    %107 = vector.extract_strided_slice %1 {offsets = [0, 5, 0], sizes = [2, 1, 72], strides = [1, 1, 1]} : vector<2x8x72xf32> to vector<2x1x72xf32>
    %108 = vector.extract_strided_slice %2 {offsets = [5, 0, 0], sizes = [1, 8, 72], strides = [1, 1, 1]} : vector<8x8x72xf32> to vector<1x8x72xf32>
    %109 = vector.extract_strided_slice %3 {offsets = [5, 0, 0], sizes = [1, 8, 72], strides = [1, 1, 1]} : vector<8x8x72xf32> to vector<1x8x72xf32>
    %110 = vector.broadcast %106 : vector<2x1x72xf32> to vector<2x8x72xf32>
    %111 = vector.broadcast %108 : vector<1x8x72xf32> to vector<2x8x72xf32>
    %112 = arith.mulf %110, %111 : vector<2x8x72xf32>
    %113 = arith.addf %97, %112 : vector<2x8x72xf32>
    %114 = vector.broadcast %107 : vector<2x1x72xf32> to vector<2x8x72xf32>
    %115 = vector.broadcast %109 : vector<1x8x72xf32> to vector<2x8x72xf32>
    %116 = arith.mulf %114, %115 : vector<2x8x72xf32>
    %117 = arith.subf %113, %116 : vector<2x8x72xf32>
    %118 = vector.broadcast %106 : vector<2x1x72xf32> to vector<2x8x72xf32>
    %119 = vector.broadcast %109 : vector<1x8x72xf32> to vector<2x8x72xf32>
    %120 = arith.mulf %118, %119 : vector<2x8x72xf32>
    %121 = arith.addf %105, %120 : vector<2x8x72xf32>
    %122 = vector.broadcast %107 : vector<2x1x72xf32> to vector<2x8x72xf32>
    %123 = vector.broadcast %108 : vector<1x8x72xf32> to vector<2x8x72xf32>
    %124 = arith.mulf %122, %123 : vector<2x8x72xf32>
    %125 = arith.addf %121, %124 : vector<2x8x72xf32>
    %126 = vector.extract_strided_slice %0 {offsets = [0, 6, 0], sizes = [2, 1, 72], strides = [1, 1, 1]} : vector<2x8x72xf32> to vector<2x1x72xf32>
    %127 = vector.extract_strided_slice %1 {offsets = [0, 6, 0], sizes = [2, 1, 72], strides = [1, 1, 1]} : vector<2x8x72xf32> to vector<2x1x72xf32>
    %128 = vector.extract_strided_slice %2 {offsets = [6, 0, 0], sizes = [1, 8, 72], strides = [1, 1, 1]} : vector<8x8x72xf32> to vector<1x8x72xf32>
    %129 = vector.extract_strided_slice %3 {offsets = [6, 0, 0], sizes = [1, 8, 72], strides = [1, 1, 1]} : vector<8x8x72xf32> to vector<1x8x72xf32>
    %130 = vector.broadcast %126 : vector<2x1x72xf32> to vector<2x8x72xf32>
    %131 = vector.broadcast %128 : vector<1x8x72xf32> to vector<2x8x72xf32>
    %132 = arith.mulf %130, %131 : vector<2x8x72xf32>
    %133 = arith.addf %117, %132 : vector<2x8x72xf32>
    %134 = vector.broadcast %127 : vector<2x1x72xf32> to vector<2x8x72xf32>
    %135 = vector.broadcast %129 : vector<1x8x72xf32> to vector<2x8x72xf32>
    %136 = arith.mulf %134, %135 : vector<2x8x72xf32>
    %137 = arith.subf %133, %136 : vector<2x8x72xf32>
    %138 = vector.broadcast %126 : vector<2x1x72xf32> to vector<2x8x72xf32>
    %139 = vector.broadcast %129 : vector<1x8x72xf32> to vector<2x8x72xf32>
    %140 = arith.mulf %138, %139 : vector<2x8x72xf32>
    %141 = arith.addf %125, %140 : vector<2x8x72xf32>
    %142 = vector.broadcast %127 : vector<2x1x72xf32> to vector<2x8x72xf32>
    %143 = vector.broadcast %128 : vector<1x8x72xf32> to vector<2x8x72xf32>
    %144 = arith.mulf %142, %143 : vector<2x8x72xf32>
    %145 = arith.addf %141, %144 : vector<2x8x72xf32>
    %146 = vector.extract_strided_slice %0 {offsets = [0, 7, 0], sizes = [2, 1, 72], strides = [1, 1, 1]} : vector<2x8x72xf32> to vector<2x1x72xf32>
    %147 = vector.extract_strided_slice %1 {offsets = [0, 7, 0], sizes = [2, 1, 72], strides = [1, 1, 1]} : vector<2x8x72xf32> to vector<2x1x72xf32>
    %148 = vector.extract_strided_slice %2 {offsets = [7, 0, 0], sizes = [1, 8, 72], strides = [1, 1, 1]} : vector<8x8x72xf32> to vector<1x8x72xf32>
    %149 = vector.extract_strided_slice %3 {offsets = [7, 0, 0], sizes = [1, 8, 72], strides = [1, 1, 1]} : vector<8x8x72xf32> to vector<1x8x72xf32>
    %150 = vector.broadcast %146 : vector<2x1x72xf32> to vector<2x8x72xf32>
    %151 = vector.broadcast %148 : vector<1x8x72xf32> to vector<2x8x72xf32>
    %152 = arith.mulf %150, %151 : vector<2x8x72xf32>
    %153 = arith.addf %137, %152 : vector<2x8x72xf32>
    %154 = vector.broadcast %147 : vector<2x1x72xf32> to vector<2x8x72xf32>
    %155 = vector.broadcast %149 : vector<1x8x72xf32> to vector<2x8x72xf32>
    %156 = arith.mulf %154, %155 : vector<2x8x72xf32>
    %157 = arith.subf %153, %156 : vector<2x8x72xf32>
    %158 = vector.broadcast %146 : vector<2x1x72xf32> to vector<2x8x72xf32>
    %159 = vector.broadcast %149 : vector<1x8x72xf32> to vector<2x8x72xf32>
    %160 = arith.mulf %158, %159 : vector<2x8x72xf32>
    %161 = arith.addf %145, %160 : vector<2x8x72xf32>
    %162 = vector.broadcast %147 : vector<2x1x72xf32> to vector<2x8x72xf32>
    %163 = vector.broadcast %148 : vector<1x8x72xf32> to vector<2x8x72xf32>
    %164 = arith.mulf %162, %163 : vector<2x8x72xf32>
    %165 = arith.addf %161, %164 : vector<2x8x72xf32>
    %c0_12 = arith.constant 0 : index
    %c0_13 = arith.constant 0 : index
    %c0_14 = arith.constant 0 : index
    %166 = vector.load %arg4[%c0_12, %c0_13, %c0_14] : memref<2x8x72xf32, #tpu.memory_space<vmem>>, vector<2x8x72xf32>
    tpu.vector_store %arg4[%c0_12, %c0_13, %c0_14], %157 {strides = array<i32>} : memref<2x8x72xf32, #tpu.memory_space<vmem>>, vector<2x8x72xf32>,
    %c0_15 = arith.constant 0 : index
    %c0_16 = arith.constant 0 : index
    %c0_17 = arith.constant 0 : index
    %167 = vector.load %arg5[%c0_15, %c0_16, %c0_17] : memref<2x8x72xf32, #tpu.memory_space<vmem>>, vector<2x8x72xf32>
    tpu.vector_store %arg5[%c0_15, %c0_16, %c0_17], %165 {strides = array<i32>} : memref<2x8x72xf32, #tpu.memory_space<vmem>>, vector<2x8x72xf32>,
    return
  }
}

module attributes {stable_mosaic.version = 11 : i64} {
  func.func @_block0_kernel(%arg0: i32, %arg1: memref<8x625xf32, #tpu.memory_space<vmem>>, %arg2: memref<8x625xf32, #tpu.memory_space<vmem>>, %arg3: memref<8x8xf32, #tpu.memory_space<vmem>>, %arg4: memref<8x1xf32, #tpu.memory_space<vmem>>, %arg5: memref<8x625xf32, #tpu.memory_space<vmem>>) attributes {dimension_semantics = [#tpu.dimension_semantics<parallel>], iteration_bounds = array<i64: 2>, scalar_prefetch = 0 : i64, scratch_operands = 0 : i64, tpu.core_type = #tpu.core_type<tc>, window_params = [{transform_indices = @transform_0, window_bounds = array<i64: 8, 625>}, {transform_indices = @transform_1, window_bounds = array<i64: 8, 625>}, {pipeline_mode = #tpu.pipeline_mode<synchronous>, transform_indices = @transform_2, window_bounds = array<i64: 8, 8>}, {pipeline_mode = #tpu.pipeline_mode<synchronous>, transform_indices = @transform_3, window_bounds = array<i64: 8, 1>}, {transform_indices = @transform_4, window_bounds = array<i64: 8, 625>}]} {
    %c0 = arith.constant 0 : index
    %c0_0 = arith.constant 0 : index
    %0 = vector.load %arg1[%c0, %c0_0] : memref<8x625xf32, #tpu.memory_space<vmem>>, vector<8x625xf32>
    %c0_1 = arith.constant 0 : index
    %c0_2 = arith.constant 0 : index
    %1 = vector.load %arg3[%c0_1, %c0_2] : memref<8x8xf32, #tpu.memory_space<vmem>>, vector<8x8xf32>
    %c0_3 = arith.constant 0 : index
    %c0_4 = arith.constant 0 : index
    %2 = vector.load %arg2[%c0_3, %c0_4] : memref<8x625xf32, #tpu.memory_space<vmem>>, vector<8x625xf32>
    %cst = arith.constant dense<0.000000e+00> : vector<8x625xf32>
    %3 = tpu.matmul %1, %2, %cst {dimension_numbers = #tpu.dot_dimension_numbers<[1], [0], [0], [1], [0, 0, 1, 1], [], []>} : vector<8x8xf32>, vector<8x625xf32>, vector<8x625xf32> -> vector<8x625xf32>
    %4 = arith.addf %0, %3 : vector<8x625xf32>
    %c0_5 = arith.constant 0 : index
    %c0_6 = arith.constant 0 : index
    %5 = vector.load %arg4[%c0_5, %c0_6] : memref<8x1xf32, #tpu.memory_space<vmem>>, vector<8x1xf32>
    %6 = vector.broadcast %5 : vector<8x1xf32> to vector<8x625xf32>
    %7 = arith.addf %4, %6 : vector<8x625xf32>
    %8 = math.tanh %7 : vector<8x625xf32>
    %c0_7 = arith.constant 0 : index
    %c0_8 = arith.constant 0 : index
    %9 = vector.load %arg5[%c0_7, %c0_8] : memref<8x625xf32, #tpu.memory_space<vmem>>, vector<8x625xf32>
    tpu.vector_store %arg5[%c0_7, %c0_8], %8 {strides = array<i32>} : memref<8x625xf32, #tpu.memory_space<vmem>>, vector<8x625xf32>,
    return
  }
  func.func @transform_0(%arg0: i32) -> (i32, i32) {
    %c0_i32 = arith.constant 0 : i32
    %c0_i32_0 = arith.constant 0 : i32
    return %arg0, %c0_i32 : i32, i32
  }
  func.func @transform_1(%arg0: i32) -> (i32, i32) {
    %c0_i32 = arith.constant 0 : i32
    %c0_i32_0 = arith.constant 0 : i32
    return %arg0, %c0_i32 : i32, i32
  }
  func.func @transform_2(%arg0: i32) -> (i32, i32) {
    %c0_i32 = arith.constant 0 : i32
    %c0_i32_0 = arith.constant 0 : i32
    %c0_i32_1 = arith.constant 0 : i32
    return %c0_i32, %c0_i32_0 : i32, i32
  }
  func.func @transform_3(%arg0: i32) -> (i32, i32) {
    %c0_i32 = arith.constant 0 : i32
    %c0_i32_0 = arith.constant 0 : i32
    %c0_i32_1 = arith.constant 0 : i32
    return %c0_i32, %c0_i32_0 : i32, i32
  }
  func.func @transform_4(%arg0: i32) -> (i32, i32) {
    %c0_i32 = arith.constant 0 : i32
    %c0_i32_0 = arith.constant 0 : i32
    return %arg0, %c0_i32 : i32, i32
  }
}

module attributes {stable_mosaic.version = 11 : i64} {
  func.func @_block1_kernel(%arg0: i32, %arg1: memref<8x625xf32, #tpu.memory_space<vmem>>, %arg2: memref<8x625xf32, #tpu.memory_space<vmem>>, %arg3: memref<8x8xf32, #tpu.memory_space<vmem>>, %arg4: memref<8x1xf32, #tpu.memory_space<vmem>>, %arg5: memref<8x625xf32, #tpu.memory_space<vmem>>, %arg6: memref<1x8x1xf32, #tpu.memory_space<vmem>>, %arg7: memref<1x8x1xf32, #tpu.memory_space<vmem>>) attributes {dimension_semantics = [#tpu.dimension_semantics<parallel>], iteration_bounds = array<i64: 2>, scalar_prefetch = 0 : i64, scratch_operands = 0 : i64, tpu.core_type = #tpu.core_type<tc>, window_params = [{transform_indices = @transform_0, window_bounds = array<i64: 8, 625>}, {transform_indices = @transform_1, window_bounds = array<i64: 8, 625>}, {pipeline_mode = #tpu.pipeline_mode<synchronous>, transform_indices = @transform_2, window_bounds = array<i64: 8, 8>}, {pipeline_mode = #tpu.pipeline_mode<synchronous>, transform_indices = @transform_3, window_bounds = array<i64: 8, 1>}, {transform_indices = @transform_4, window_bounds = array<i64: 8, 625>}, {transform_indices = @transform_5, window_bounds = array<i64: 1, 8, 1>}, {transform_indices = @transform_6, window_bounds = array<i64: 1, 8, 1>}]} {
    %c0 = arith.constant 0 : index
    %c0_0 = arith.constant 0 : index
    %0 = vector.load %arg1[%c0, %c0_0] : memref<8x625xf32, #tpu.memory_space<vmem>>, vector<8x625xf32>
    %c0_1 = arith.constant 0 : index
    %c0_2 = arith.constant 0 : index
    %1 = vector.load %arg3[%c0_1, %c0_2] : memref<8x8xf32, #tpu.memory_space<vmem>>, vector<8x8xf32>
    %c0_3 = arith.constant 0 : index
    %c0_4 = arith.constant 0 : index
    %2 = vector.load %arg2[%c0_3, %c0_4] : memref<8x625xf32, #tpu.memory_space<vmem>>, vector<8x625xf32>
    %cst = arith.constant dense<0.000000e+00> : vector<8x625xf32>
    %3 = tpu.matmul %1, %2, %cst {dimension_numbers = #tpu.dot_dimension_numbers<[1], [0], [0], [1], [0, 0, 1, 1], [], []>} : vector<8x8xf32>, vector<8x625xf32>, vector<8x625xf32> -> vector<8x625xf32>
    %4 = arith.addf %0, %3 : vector<8x625xf32>
    %c0_5 = arith.constant 0 : index
    %c0_6 = arith.constant 0 : index
    %5 = vector.load %arg4[%c0_5, %c0_6] : memref<8x1xf32, #tpu.memory_space<vmem>>, vector<8x1xf32>
    %6 = vector.broadcast %5 : vector<8x1xf32> to vector<8x625xf32>
    %7 = arith.addf %4, %6 : vector<8x625xf32>
    %c0_7 = arith.constant 0 : index
    %c0_8 = arith.constant 0 : index
    %8 = vector.load %arg5[%c0_7, %c0_8] : memref<8x625xf32, #tpu.memory_space<vmem>>, vector<8x625xf32>
    tpu.vector_store %arg5[%c0_7, %c0_8], %7 {strides = array<i32>} : memref<8x625xf32, #tpu.memory_space<vmem>>, vector<8x625xf32>,
    %cst_9 = arith.constant dense<0.000000e+00> : vector<8xf32>
    %9 = vector.multi_reduction <add>, %7, %cst_9 [1] : vector<8x625xf32> to vector<8xf32>
    %10 = vector.shape_cast %9 : vector<8xf32> to vector<8x1xf32>
    %11 = vector.shape_cast %10 : vector<8x1xf32> to vector<1x8x1xf32>
    %c0_10 = arith.constant 0 : index
    %c0_11 = arith.constant 0 : index
    %c0_12 = arith.constant 0 : index
    %12 = vector.load %arg6[%c0_10, %c0_11, %c0_12] : memref<1x8x1xf32, #tpu.memory_space<vmem>>, vector<1x8x1xf32>
    tpu.vector_store %arg6[%c0_10, %c0_11, %c0_12], %11 {strides = array<i32>} : memref<1x8x1xf32, #tpu.memory_space<vmem>>, vector<1x8x1xf32>,
    %13 = arith.mulf %7, %7 : vector<8x625xf32>
    %cst_13 = arith.constant dense<0.000000e+00> : vector<8xf32>
    %14 = vector.multi_reduction <add>, %13, %cst_13 [1] : vector<8x625xf32> to vector<8xf32>
    %15 = vector.shape_cast %14 : vector<8xf32> to vector<8x1xf32>
    %16 = vector.shape_cast %15 : vector<8x1xf32> to vector<1x8x1xf32>
    %c0_14 = arith.constant 0 : index
    %c0_15 = arith.constant 0 : index
    %c0_16 = arith.constant 0 : index
    %17 = vector.load %arg7[%c0_14, %c0_15, %c0_16] : memref<1x8x1xf32, #tpu.memory_space<vmem>>, vector<1x8x1xf32>
    tpu.vector_store %arg7[%c0_14, %c0_15, %c0_16], %16 {strides = array<i32>} : memref<1x8x1xf32, #tpu.memory_space<vmem>>, vector<1x8x1xf32>,
    return
  }
  func.func @transform_0(%arg0: i32) -> (i32, i32) {
    %c0_i32 = arith.constant 0 : i32
    %c0_i32_0 = arith.constant 0 : i32
    return %arg0, %c0_i32 : i32, i32
  }
  func.func @transform_1(%arg0: i32) -> (i32, i32) {
    %c0_i32 = arith.constant 0 : i32
    %c0_i32_0 = arith.constant 0 : i32
    return %arg0, %c0_i32 : i32, i32
  }
  func.func @transform_2(%arg0: i32) -> (i32, i32) {
    %c0_i32 = arith.constant 0 : i32
    %c0_i32_0 = arith.constant 0 : i32
    %c0_i32_1 = arith.constant 0 : i32
    return %c0_i32, %c0_i32_0 : i32, i32
  }
  func.func @transform_3(%arg0: i32) -> (i32, i32) {
    %c0_i32 = arith.constant 0 : i32
    %c0_i32_0 = arith.constant 0 : i32
    %c0_i32_1 = arith.constant 0 : i32
    return %c0_i32, %c0_i32_0 : i32, i32
  }
  func.func @transform_4(%arg0: i32) -> (i32, i32) {
    %c0_i32 = arith.constant 0 : i32
    %c0_i32_0 = arith.constant 0 : i32
    return %arg0, %c0_i32 : i32, i32
  }
  func.func @transform_5(%arg0: i32) -> (i32, i32, i32) {
    %c0_i32 = arith.constant 0 : i32
    %c0_i32_0 = arith.constant 0 : i32
    %c0_i32_1 = arith.constant 0 : i32
    return %arg0, %c0_i32, %c0_i32_0 : i32, i32, i32
  }
  func.func @transform_6(%arg0: i32) -> (i32, i32, i32) {
    %c0_i32 = arith.constant 0 : i32
    %c0_i32_0 = arith.constant 0 : i32
    %c0_i32_1 = arith.constant 0 : i32
    return %arg0, %c0_i32, %c0_i32_0 : i32, i32, i32
  }
}

module attributes {stable_mosaic.version = 11 : i64} {
  func.func @_head_kernel(%arg0: i32, %arg1: memref<8x256xf32, #tpu.memory_space<vmem>>, %arg2: memref<8x1xf32, #tpu.memory_space<vmem>>, %arg3: memref<8x1xf32, #tpu.memory_space<vmem>>, %arg4: memref<128x8xf32, #tpu.memory_space<vmem>>, %arg5: memref<128x1xf32, #tpu.memory_space<vmem>>, %arg6: memref<1x128xf32, #tpu.memory_space<vmem>>, %arg7: memref<1x1xf32, #tpu.memory_space<vmem>>, %arg8: memref<1x1x256xf32, #tpu.memory_space<vmem>>) attributes {dimension_semantics = [#tpu.dimension_semantics<parallel>], iteration_bounds = array<i64: 2>, scalar_prefetch = 0 : i64, scratch_operands = 0 : i64, tpu.core_type = #tpu.core_type<tc>, window_params = [{transform_indices = @transform_0, window_bounds = array<i64: 8, 256>}, {pipeline_mode = #tpu.pipeline_mode<synchronous>, transform_indices = @transform_1, window_bounds = array<i64: 8, 1>}, {pipeline_mode = #tpu.pipeline_mode<synchronous>, transform_indices = @transform_2, window_bounds = array<i64: 8, 1>}, {pipeline_mode = #tpu.pipeline_mode<synchronous>, transform_indices = @transform_3, window_bounds = array<i64: 128, 8>}, {pipeline_mode = #tpu.pipeline_mode<synchronous>, transform_indices = @transform_4, window_bounds = array<i64: 128, 1>}, {pipeline_mode = #tpu.pipeline_mode<synchronous>, transform_indices = @transform_5, window_bounds = array<i64: 1, 128>}, {pipeline_mode = #tpu.pipeline_mode<synchronous>, transform_indices = @transform_6, window_bounds = array<i64: 1, 1>}, {transform_indices = @transform_7, window_bounds = array<i64: 1, 1, 256>}]} {
    %c0 = arith.constant 0 : index
    %c0_0 = arith.constant 0 : index
    %0 = vector.load %arg1[%c0, %c0_0] : memref<8x256xf32, #tpu.memory_space<vmem>>, vector<8x256xf32>
    %c0_1 = arith.constant 0 : index
    %c0_2 = arith.constant 0 : index
    %1 = vector.load %arg2[%c0_1, %c0_2] : memref<8x1xf32, #tpu.memory_space<vmem>>, vector<8x1xf32>
    %2 = vector.broadcast %1 : vector<8x1xf32> to vector<8x256xf32>
    %3 = arith.mulf %0, %2 : vector<8x256xf32>
    %c0_3 = arith.constant 0 : index
    %c0_4 = arith.constant 0 : index
    %4 = vector.load %arg3[%c0_3, %c0_4] : memref<8x1xf32, #tpu.memory_space<vmem>>, vector<8x1xf32>
    %5 = vector.broadcast %4 : vector<8x1xf32> to vector<8x256xf32>
    %6 = arith.addf %3, %5 : vector<8x256xf32>
    %7 = math.tanh %6 : vector<8x256xf32>
    %c0_5 = arith.constant 0 : index
    %c0_6 = arith.constant 0 : index
    %8 = vector.load %arg4[%c0_5, %c0_6] : memref<128x8xf32, #tpu.memory_space<vmem>>, vector<128x8xf32>
    %cst = arith.constant dense<0.000000e+00> : vector<128x256xf32>
    %9 = tpu.matmul %8, %7, %cst {dimension_numbers = #tpu.dot_dimension_numbers<[1], [0], [0], [1], [0, 0, 1, 1], [], []>} : vector<128x8xf32>, vector<8x256xf32>, vector<128x256xf32> -> vector<128x256xf32>
    %c0_7 = arith.constant 0 : index
    %c0_8 = arith.constant 0 : index
    %10 = vector.load %arg5[%c0_7, %c0_8] : memref<128x1xf32, #tpu.memory_space<vmem>>, vector<128x1xf32>
    %11 = vector.broadcast %10 : vector<128x1xf32> to vector<128x256xf32>
    %12 = arith.addf %9, %11 : vector<128x256xf32>
    %13 = math.tanh %12 : vector<128x256xf32>
    %c0_9 = arith.constant 0 : index
    %c0_10 = arith.constant 0 : index
    %14 = vector.load %arg6[%c0_9, %c0_10] : memref<1x128xf32, #tpu.memory_space<vmem>>, vector<1x128xf32>
    %cst_11 = arith.constant dense<0.000000e+00> : vector<1x256xf32>
    %15 = tpu.matmul %14, %13, %cst_11 {dimension_numbers = #tpu.dot_dimension_numbers<[1], [0], [0], [1], [0, 0, 1, 1], [], []>} : vector<1x128xf32>, vector<128x256xf32>, vector<1x256xf32> -> vector<1x256xf32>
    %c0_12 = arith.constant 0 : index
    %c0_13 = arith.constant 0 : index
    %16 = vector.load %arg7[%c0_12, %c0_13] : memref<1x1xf32, #tpu.memory_space<vmem>>, vector<1x1xf32>
    %17 = vector.broadcast %16 : vector<1x1xf32> to vector<1x256xf32>
    %18 = arith.addf %15, %17 : vector<1x256xf32>
    %19 = arith.negf %18 : vector<1x256xf32>
    %20 = math.exp %19 : vector<1x256xf32>
    %cst_14 = arith.constant 1.000000e+00 : f32
    %21 = vector.broadcast %cst_14 : f32 to vector<1x256xf32>
    %22 = arith.addf %21, %20 : vector<1x256xf32>
    %23 = arith.divf %21, %22 : vector<1x256xf32>
    %cst_15 = arith.constant 0.949999988 : f32
    %24 = vector.broadcast %cst_15 : f32 to vector<1x256xf32>
    %25 = arith.mulf %24, %23 : vector<1x256xf32>
    %cst_16 = arith.constant 5.000000e-02 : f32
    %26 = vector.broadcast %cst_16 : f32 to vector<1x256xf32>
    %27 = arith.addf %26, %25 : vector<1x256xf32>
    %28 = vector.shape_cast %27 : vector<1x256xf32> to vector<1x1x256xf32>
    %c0_17 = arith.constant 0 : index
    %c0_18 = arith.constant 0 : index
    %c0_19 = arith.constant 0 : index
    %29 = vector.load %arg8[%c0_17, %c0_18, %c0_19] : memref<1x1x256xf32, #tpu.memory_space<vmem>>, vector<1x1x256xf32>
    tpu.vector_store %arg8[%c0_17, %c0_18, %c0_19], %28 {strides = array<i32>} : memref<1x1x256xf32, #tpu.memory_space<vmem>>, vector<1x1x256xf32>,
    return
  }
  func.func @transform_0(%arg0: i32) -> (i32, i32) {
    %c0_i32 = arith.constant 0 : i32
    %c0_i32_0 = arith.constant 0 : i32
    return %arg0, %c0_i32 : i32, i32
  }
  func.func @transform_1(%arg0: i32) -> (i32, i32) {
    %c0_i32 = arith.constant 0 : i32
    %c0_i32_0 = arith.constant 0 : i32
    %c0_i32_1 = arith.constant 0 : i32
    return %c0_i32, %c0_i32_0 : i32, i32
  }
  func.func @transform_2(%arg0: i32) -> (i32, i32) {
    %c0_i32 = arith.constant 0 : i32
    %c0_i32_0 = arith.constant 0 : i32
    %c0_i32_1 = arith.constant 0 : i32
    return %c0_i32, %c0_i32_0 : i32, i32
  }
  func.func @transform_3(%arg0: i32) -> (i32, i32) {
    %c0_i32 = arith.constant 0 : i32
    %c0_i32_0 = arith.constant 0 : i32
    %c0_i32_1 = arith.constant 0 : i32
    return %c0_i32, %c0_i32_0 : i32, i32
  }
  func.func @transform_4(%arg0: i32) -> (i32, i32) {
    %c0_i32 = arith.constant 0 : i32
    %c0_i32_0 = arith.constant 0 : i32
    %c0_i32_1 = arith.constant 0 : i32
    return %c0_i32, %c0_i32_0 : i32, i32
  }
  func.func @transform_5(%arg0: i32) -> (i32, i32) {
    %c0_i32 = arith.constant 0 : i32
    %c0_i32_0 = arith.constant 0 : i32
    %c0_i32_1 = arith.constant 0 : i32
    return %c0_i32, %c0_i32_0 : i32, i32
  }
  func.func @transform_6(%arg0: i32) -> (i32, i32) {
    %c0_i32 = arith.constant 0 : i32
    %c0_i32_0 = arith.constant 0 : i32
    %c0_i32_1 = arith.constant 0 : i32
    return %c0_i32, %c0_i32_0 : i32, i32
  }
  func.func @transform_7(%arg0: i32) -> (i32, i32, i32) {
    %c0_i32 = arith.constant 0 : i32
    %c0_i32_0 = arith.constant 0 : i32
    %c0_i32_1 = arith.constant 0 : i32
    return %arg0, %c0_i32, %c0_i32_0 : i32, i32, i32
  }
}

</mosaic_0001>

<llo_original>
// kernel: alpha_fno2d_forward.5
$region0: #{alpha_fno2d_forward.5}
  #allocation0 [shape = 'u32[]', space=smem, size = 0x4, offset = 0x4, fixed_abs, tag = 'smem constant byte address 0x4 - core index']
  #allocation1 [shape = 'u32[144,128]{1,0:T(1,128)}', space=vmem, size = 0x12000, scoped, tag = 'internal scratch']
  %s0 = inlined_call_operand.vmem [shape: f32[2,8,72], index: 0, kind: input, shape index: {}]
  %s1 = inlined_call_operand.vmem [shape: f32[2,8,72], index: 1, kind: input, shape index: {}]
  %s2 = inlined_call_operand.vmem [shape: f32[8,8,72], index: 2, kind: input, shape index: {}]
  %s3 = inlined_call_operand.vmem [shape: f32[8,8,72], index: 3, kind: input, shape index: {}]
  %s4 = inlined_call_operand.vmem [shape: f32[2,8,72], index: 4, kind: output, shape index: {0}]
  %s5 = inlined_call_operand.vmem [shape: f32[2,8,72], index: 5, kind: output, shape index: {1}]
  %6 = xla_tuple %s4, %s5
  %s7 = sld [smem:[#allocation0]]
  $region34: #{alpha_fno2d_forward.5} parent=0
    _
  %s9 = ssub.s32 1, %s7
  %s10 = scalar_select 0, %s9, %s7
  // Predicated region
  $region2: #{alpha_fno2d_forward.5} parent=0 // pred_check
    _
  $region3: #{alpha_fno2d_forward.5} parent=0 // pred_check_branch
    %12 = sbr.rel (0) target = $region5
  $region4: #{alpha_fno2d_forward.5} parent=0 // pred_region
    _
  $region5: #{alpha_fno2d_forward.5} parent=0 // pred_fallthru
    _
  // Predicated region
  $region6: #{alpha_fno2d_forward.5} parent=0 // pred_check
    _
  $region7: #{alpha_fno2d_forward.5} parent=0 // pred_check_branch
    %14 = sbr.rel (0) target = $region9
  $region8: #{alpha_fno2d_forward.5} parent=0 // pred_region
    _
  $region9: #{alpha_fno2d_forward.5} parent=0 // pred_fallthru
    _
  // Predicated region
  $region10: #{alpha_fno2d_forward.5} parent=0 // pred_check
    _
  $region11: #{alpha_fno2d_forward.5} parent=0 // pred_check_branch
    %16 = sbr.rel (0) target = $region13
  $region12: #{alpha_fno2d_forward.5} parent=0 // pred_region
    _
  $region13: #{alpha_fno2d_forward.5} parent=0 // pred_fallthru
    _
  // Predicated region
  $region14: #{alpha_fno2d_forward.5} parent=0 // pred_check
    _
  $region15: #{alpha_fno2d_forward.5} parent=0 // pred_check_branch
    %18 = sbr.rel (0) target = $region17
  $region16: #{alpha_fno2d_forward.5} parent=0 // pred_region
    _
  $region17: #{alpha_fno2d_forward.5} parent=0 // pred_fallthru
    _
  %v19 = vld [vmem:[%s0] sm:$0xff]
  %v20 = vld [vmem:[%s0 + $0x8] sm:$0xff]
  %v21 = vld [vmem:[%s1] sm:$0xff]
  %v22 = vld [vmem:[%s1 + $0x8] sm:$0xff]
  %v23 = vld [vmem:[%s2] sm:$0xff]
  %v24 = vld [vmem:[%s2 + $0x8] sm:$0xff]
  %v25 = vld [vmem:[%s2 + $0x10] sm:$0xff]
  %v26 = vld [vmem:[%s2 + $0x18] sm:$0xff]
  %v27 = vld [vmem:[%s2 + $0x20] sm:$0xff]
  %v28 = vld [vmem:[%s2 + $0x28] sm:$0xff]
  %v29 = vld [vmem:[%s2 + $0x30] sm:$0xff]
  %v30 = vld [vmem:[%s2 + $0x38] sm:$0xff]
  %v31 = vld [vmem:[%s3] sm:$0xff]
  %v32 = vld [vmem:[%s3 + $0x8] sm:$0xff]
  %v33 = vld [vmem:[%s3 + $0x10] sm:$0xff]
  %v34 = vld [vmem:[%s3 + $0x18] sm:$0xff]
  %v35 = vld [vmem:[%s3 + $0x20] sm:$0xff]
  %v36 = vld [vmem:[%s3 + $0x28] sm:$0xff]
  %v37 = vld [vmem:[%s3 + $0x30] sm:$0xff]
  %v38 = vld [vmem:[%s3 + $0x38] sm:$0xff]
  %v39 = vlaneseq
  %v40 = vshrl.u32 %v39, 7
  %v41 = vsub.s32 0, %v40
  %v42 = vrot.slane %v19, %v41
  %v43 = vlaneseq
  %v44 = vshrl.u32 %v43, 7
  %v45 = vsub.s32 0, %v44
  %v46 = vrot.slane %v20, %v45
  %v47 = vmul.f32 %v42, %v23
  %v48 = vmul.f32 %v46, %v23
  %v49 = vadd.f32 %v47, 0.0
  %v50 = vadd.f32 %v48, 0.0
  %v51 = vlaneseq
  %v52 = vshrl.u32 %v51, 7
  %v53 = vsub.s32 0, %v52
  %v54 = vrot.slane %v21, %v53
  %v55 = vlaneseq
  %v56 = vshrl.u32 %v55, 7
  %v57 = vsub.s32 0, %v56
  %v58 = vrot.slane %v22, %v57
  %v59 = vmul.f32 %v54, %v31
  %v60 = vmul.f32 %v58, %v31
  %v61 = vsub.f32 %v49, %v59
  %v62 = vsub.f32 %v50, %v60
  %v63 = vmul.f32 %v42, %v31
  %v64 = vmul.f32 %v46, %v31
  %v65 = vadd.f32 %v63, 0.0
  %v66 = vadd.f32 %v64, 0.0
  %v67 = vmul.f32 %v54, %v23
  %v68 = vmul.f32 %v58, %v23
  %v69 = vadd.f32 %v65, %v67
  %v70 = vadd.f32 %v66, %v68
  %v71 = vlaneseq
  %v72 = vshrl.u32 %v71, 7
  %v73 = vsub.s32 1, %v72
  %v74 = vrot.slane %v19, %v73
  %v75 = vlaneseq
  %v76 = vshrl.u32 %v75, 7
  %v77 = vsub.s32 1, %v76
  %v78 = vrot.slane %v20, %v77
  %v79 = vmul.f32 %v74, %v24
  %v80 = vmul.f32 %v78, %v24
  %v81 = vadd.f32 %v61, %v79
  %v82 = vadd.f32 %v62, %v80
  %v83 = vlaneseq
  %v84 = vshrl.u32 %v83, 7
  %v85 = vsub.s32 1, %v84
  %v86 = vrot.slane %v21, %v85
  %v87 = vlaneseq
  %v88 = vshrl.u32 %v87, 7
  %v89 = vsub.s32 1, %v88
  %v90 = vrot.slane %v22, %v89
  %v91 = vmul.f32 %v86, %v32
  %v92 = vmul.f32 %v90, %v32
  %v93 = vsub.f32 %v81, %v91
  %v94 = vsub.f32 %v82, %v92
  %v95 = vmul.f32 %v74, %v32
  %v96 = vmul.f32 %v78, %v32
  %v97 = vadd.f32 %v69, %v95
  %v98 = vadd.f32 %v70, %v96
  %v99 = vmul.f32 %v86, %v24
  %v100 = vmul.f32 %v90, %v24
  %v101 = vadd.f32 %v97, %v99
  %v102 = vadd.f32 %v98, %v100
  %v103 = vlaneseq
  %v104 = vshrl.u32 %v103, 7
  %v105 = vsub.s32 2, %v104
  %v106 = vrot.slane %v19, %v105
  %v107 = vlaneseq
  %v108 = vshrl.u32 %v107, 7
  %v109 = vsub.s32 2, %v108
  %v110 = vrot.slane %v20, %v109
  %v111 = vmul.f32 %v106, %v25
  %v112 = vmul.f32 %v110, %v25
  %v113 = vadd.f32 %v93, %v111
  %v114 = vadd.f32 %v94, %v112
  %v115 = vlaneseq
  %v116 = vshrl.u32 %v115, 7
  %v117 = vsub.s32 2, %v116
  %v118 = vrot.slane %v21, %v117
  %v119 = vlaneseq
  %v120 = vshrl.u32 %v119, 7
  %v121 = vsub.s32 2, %v120
  %v122 = vrot.slane %v22, %v121
  %v123 = vmul.f32 %v118, %v33
  %v124 = vmul.f32 %v122, %v33
  %v125 = vsub.f32 %v113, %v123
  %v126 = vsub.f32 %v114, %v124
  %v127 = vmul.f32 %v106, %v33
  %v128 = vmul.f32 %v110, %v33
  %v129 = vadd.f32 %v101, %v127
  %v130 = vadd.f32 %v102, %v128
  %v131 = vmul.f32 %v118, %v25
  %v132 = vmul.f32 %v122, %v25
  %v133 = vadd.f32 %v129, %v131
  %v134 = vadd.f32 %v130, %v132
  %v135 = vlaneseq
  %v136 = vshrl.u32 %v135, 7
  %v137 = vsub.s32 3, %v136
  %v138 = vrot.slane %v19, %v137
  %v139 = vlaneseq
  %v140 = vshrl.u32 %v139, 7
  %v141 = vsub.s32 3, %v140
  %v142 = vrot.slane %v20, %v141
  %v143 = vmul.f32 %v138, %v26
  %v144 = vmul.f32 %v142, %v26
  %v145 = vadd.f32 %v125, %v143
  %v146 = vadd.f32 %v126, %v144
  %v147 = vlaneseq
  %v148 = vshrl.u32 %v147, 7
  %v149 = vsub.s32 3, %v148
  %v150 = vrot.slane %v21, %v149
  %v151 = vlaneseq
  %v152 = vshrl.u32 %v151, 7
  %v153 = vsub.s32 3, %v152
  %v154 = vrot.slane %v22, %v153
  %v155 = vmul.f32 %v150, %v34
  %v156 = vmul.f32 %v154, %v34
  %v157 = vsub.f32 %v145, %v155
  %v158 = vsub.f32 %v146, %v156
  %v159 = vmul.f32 %v138, %v34
  %v160 = vmul.f32 %v142, %v34
  %v161 = vadd.f32 %v133, %v159
  %v162 = vadd.f32 %v134, %v160
  %v163 = vmul.f32 %v150, %v26
  %v164 = vmul.f32 %v154, %v26
  %v165 = vadd.f32 %v161, %v163
  %v166 = vadd.f32 %v162, %v164
  %v167 = vlaneseq
  %v168 = vshrl.u32 %v167, 7
  %v169 = vsub.s32 4, %v168
  %v170 = vrot.slane %v19, %v169
  %v171 = vlaneseq
  %v172 = vshrl.u32 %v171, 7
  %v173 = vsub.s32 4, %v172
  %v174 = vrot.slane %v20, %v173
  %v175 = vmul.f32 %v170, %v27
  %v176 = vmul.f32 %v174, %v27
  %v177 = vadd.f32 %v157, %v175
  %v178 = vadd.f32 %v158, %v176
  %v179 = vlaneseq
  %v180 = vshrl.u32 %v179, 7
  %v181 = vsub.s32 4, %v180
  %v182 = vrot.slane %v21, %v181
  %v183 = vlaneseq
  %v184 = vshrl.u32 %v183, 7
  %v185 = vsub.s32 4, %v184
  %v186 = vrot.slane %v22, %v185
  %v187 = vmul.f32 %v182, %v35
  %v188 = vmul.f32 %v186, %v35
  %v189 = vsub.f32 %v177, %v187
  %v190 = vsub.f32 %v178, %v188
  %v191 = vmul.f32 %v170, %v35
  %v192 = vmul.f32 %v174, %v35
  %v193 = vadd.f32 %v165, %v191
  %v194 = vadd.f32 %v166, %v192
  %v195 = vmul.f32 %v182, %v27
  %v196 = vmul.f32 %v186, %v27
  %v197 = vadd.f32 %v193, %v195
  %v198 = vadd.f32 %v194, %v196
  %v199 = vlaneseq
  %v200 = vshrl.u32 %v199, 7
  %v201 = vsub.s32 5, %v200
  %v202 = vrot.slane %v19, %v201
  %v203 = vlaneseq
  %v204 = vshrl.u32 %v203, 7
  %v205 = vsub.s32 5, %v204
  %v206 = vrot.slane %v20, %v205
  %v207 = vmul.f32 %v202, %v28
  %v208 = vmul.f32 %v206, %v28
  %v209 = vadd.f32 %v189, %v207
  %v210 = vadd.f32 %v190, %v208
  %v211 = vlaneseq
  %v212 = vshrl.u32 %v211, 7
  %v213 = vsub.s32 5, %v212
  %v214 = vrot.slane %v21, %v213
  %v215 = vlaneseq
  %v216 = vshrl.u32 %v215, 7
  %v217 = vsub.s32 5, %v216
  %v218 = vrot.slane %v22, %v217
  %v219 = vmul.f32 %v214, %v36
  %v220 = vmul.f32 %v218, %v36
  %v221 = vsub.f32 %v209, %v219
  %v222 = vsub.f32 %v210, %v220
  %v223 = vmul.f32 %v202, %v36
  %v224 = vmul.f32 %v206, %v36
  %v225 = vadd.f32 %v197, %v223
  %v226 = vadd.f32 %v198, %v224
  %v227 = vmul.f32 %v214, %v28
  %v228 = vmul.f32 %v218, %v28
  %v229 = vadd.f32 %v225, %v227
  %v230 = vadd.f32 %v226, %v228
  %v231 = vlaneseq
  %v232 = vshrl.u32 %v231, 7
  %v233 = vsub.s32 6, %v232
  %v234 = vrot.slane %v19, %v233
  %v235 = vlaneseq
  %v236 = vshrl.u32 %v235, 7
  %v237 = vsub.s32 6, %v236
  %v238 = vrot.slane %v20, %v237
  %v239 = vmul.f32 %v234, %v29
  %v240 = vmul.f32 %v238, %v29
  %v241 = vadd.f32 %v221, %v239
  %v242 = vadd.f32 %v222, %v240
  %v243 = vlaneseq
  %v244 = vshrl.u32 %v243, 7
  %v245 = vsub.s32 6, %v244
  %v246 = vrot.slane %v21, %v245
  %v247 = vlaneseq
  %v248 = vshrl.u32 %v247, 7
  %v249 = vsub.s32 6, %v248
  %v250 = vrot.slane %v22, %v249
  %v251 = vmul.f32 %v246, %v37
  %v252 = vmul.f32 %v250, %v37
  %v253 = vsub.f32 %v241, %v251
  %v254 = vsub.f32 %v242, %v252
  %v255 = vmul.f32 %v234, %v37
  %v256 = vmul.f32 %v238, %v37
  %v257 = vadd.f32 %v229, %v255
  %v258 = vadd.f32 %v230, %v256
  %v259 = vmul.f32 %v246, %v29
  %v260 = vmul.f32 %v250, %v29
  %v261 = vadd.f32 %v257, %v259
  %v262 = vadd.f32 %v258, %v260
  %v263 = vlaneseq
  %v264 = vshrl.u32 %v263, 7
  %v265 = vsub.s32 7, %v264
  %v266 = vrot.slane %v19, %v265
  %v267 = vlaneseq
  %v268 = vshrl.u32 %v267, 7
  %v269 = vsub.s32 7, %v268
  %v270 = vrot.slane %v20, %v269
  %v271 = vmul.f32 %v266, %v30
  %v272 = vmul.f32 %v270, %v30
  %v273 = vadd.f32 %v253, %v271
  %v274 = vadd.f32 %v254, %v272
  %v275 = vlaneseq
  %v276 = vshrl.u32 %v275, 7
  %v277 = vsub.s32 7, %v276
  %v278 = vrot.slane %v21, %v277
  %v279 = vlaneseq
  %v280 = vshrl.u32 %v279, 7
  %v281 = vsub.s32 7, %v280
  %v282 = vrot.slane %v22, %v281
  %v283 = vmul.f32 %v278, %v38
  %v284 = vmul.f32 %v282, %v38
  %v285 = vsub.f32 %v273, %v283
  %v286 = vsub.f32 %v274, %v284
  %v287 = vmul.f32 %v266, %v38
  %v288 = vmul.f32 %v270, %v38
  %v289 = vadd.f32 %v261, %v287
  %v290 = vadd.f32 %v262, %v288
  %v291 = vmul.f32 %v278, %v30
  %v292 = vmul.f32 %v282, %v30
  %v293 = vadd.f32 %v289, %v291
  %v294 = vadd.f32 %v290, %v292
  %vm295 = vcmask 588800
  %296 = vst.msk [vmem:[%s4] sm:$0xff] %vm295, %v285
  %297 = vst.msk [vmem:[%s4 + $0x8] sm:$0xff] %vm295, %v286
  %298 = vst.msk [vmem:[%s5] sm:$0xff] %vm295, %v293
  %299 = vst.msk [vmem:[%s5 + $0x8] sm:$0xff] %vm295, %v294
  // Predicated region
  $region18: #{alpha_fno2d_forward.5} parent=0 // pred_check
    _
  $region19: #{alpha_fno2d_forward.5} parent=0 // pred_check_branch
    %301 = sbr.rel (0) target = $region21
  $region20: #{alpha_fno2d_forward.5} parent=0 // pred_region
    _
  $region21: #{alpha_fno2d_forward.5} parent=0 // pred_fallthru
    _
  // Predicated region
  $region22: #{alpha_fno2d_forward.5} parent=0 // pred_check
    _
  $region23: #{alpha_fno2d_forward.5} parent=0 // pred_check_branch
    %303 = sbr.rel (0) target = $region25
  $region24: #{alpha_fno2d_forward.5} parent=0 // pred_region
    _
  $region25: #{alpha_fno2d_forward.5} parent=0 // pred_fallthru
    _
  // Predicated region
  $region26: #{alpha_fno2d_forward.5} parent=0 // pred_check
    _
  $region27: #{alpha_fno2d_forward.5} parent=0 // pred_check_branch
    %305 = sbr.rel (0) target = $region29
  $region28: #{alpha_fno2d_forward.5} parent=0 // pred_region
    _
  $region29: #{alpha_fno2d_forward.5} parent=0 // pred_fallthru
    _
  // Predicated region
  $region30: #{alpha_fno2d_forward.5} parent=0 // pred_check
    _
  $region31: #{alpha_fno2d_forward.5} parent=0 // pred_check_branch
    %307 = sbr.rel (0) target = $region33
  $region32: #{alpha_fno2d_forward.5} parent=0 // pred_region
    _
  $region33: #{alpha_fno2d_forward.5} parent=0 // pred_fallthru
    _

// kernel: reverse.5
$region0: #{reverse.5}
  %s0 = inlined_call_operand.vmem [shape: f32[2,8,25,12], index: 0, kind: input, shape index: {}]
  %s1 = inlined_call_operand.vmem [shape: f32[2,8,25,12], index: 1, kind: output, shape index: {}]
  $region1: #{reverse.5} parent=0
    #allocation0 [shape = 'u8[196608]{0}', space=vmem, size = 0x30000, scoped, tag = 'operand span for operand 0']
    #allocation1 [shape = 'u8[131072]{0}', space=vmem, size = 0x20000, scoped, tag = 'operand span for operand 1']
    %s2 = scalar_lea.vmem [#allocation0], 8
    // Predicated region
    $region2: #{reverse.5} parent=1 // pred_check
      _
    $region3: #{reverse.5} parent=1 // pred_check_branch
      %4 = sbr.rel (0) target = $region5
    $region4: #{reverse.5} parent=1 // pred_region
      // Predicated region
      $region6: #{reverse.5} parent=4 // pred_check
        _
      $region7: #{reverse.5} parent=4 // pred_check_branch
        %6 = sbr.rel (0) target = $region9
      $region8: #{reverse.5} parent=4 // pred_region
        // Predicated region
        $region21: #{reverse.5} parent=8 // pred_check
          _
        $region22: #{reverse.5} parent=8 // pred_check_branch
          %84 = sbr.rel (0) target = $region24
        $region23: #{reverse.5} parent=8 // pred_region
          loop: start=0, step=1, limit=1
          $region25: #{reverse.5} parent=23 // loop_pre_header
            _
          $region26: #{reverse.5} parent=23 // loop_header
            %s86 = sphi 0, %s90
            %p87 = scmp.ge.s32.totalorder %s86, 1
            %s91 = sphi %s0, %s0
            %s92 = sphi %s2, %s2
          $region27: #{reverse.5} parent=23 // loop_header_branch
            %89 = sbr.rel (%p87) target = $region31
          $region28: #{reverse.5} parent=23 // loop_body
            %v93 = vld [vmem:[%s91] sm:$0xff]
            %94 = vst [vmem:[%s92] sm:$0xff] %v93
            %v95 = vld [vmem:[%s91 + $0x8] sm:$0xff]
            %96 = vst [vmem:[%s92 + $0x8] sm:$0xff] %v95
            %v97 = vld [vmem:[%s91 + $0x10] sm:$0xff]
            %98 = vst [vmem:[%s92 + $0x18] sm:$0xff] %v97
            %v99 = vld [vmem:[%s91 + $0x18] sm:$0xff]
            %100 = vst [vmem:[%s92 + $0x20] sm:$0xff] %v99
            %v101 = vld [vmem:[%s91 + $0x20] sm:$0xff]
            %102 = vst [vmem:[%s92 + $0x30] sm:$0xff] %v101
            %v103 = vld [vmem:[%s91 + $0x28] sm:$0xff]
            %104 = vst [vmem:[%s92 + $0x38] sm:$0xff] %v103
            %v105 = vld [vmem:[%s91 + $0x30] sm:$0xff]
            %106 = vst [vmem:[%s92 + $0x48] sm:$0xff] %v105
            %v107 = vld [vmem:[%s91 + $0x38] sm:$0xff]
            %108 = vst [vmem:[%s92 + $0x50] sm:$0xff] %v107
            %v109 = vld [vmem:[%s91 + $0x40] sm:$0xff]
            %110 = vst [vmem:[%s92 + $0x60] sm:$0xff] %v109
            %v111 = vld [vmem:[%s91 + $0x48] sm:$0xff]
            %112 = vst [vmem:[%s92 + $0x68] sm:$0xff] %v111
            %v113 = vld [vmem:[%s91 + $0x50] sm:$0xff]
            %114 = vst [vmem:[%s92 + $0x78] sm:$0xff] %v113
            %v115 = vld [vmem:[%s91 + $0x58] sm:$0xff]
            %116 = vst [vmem:[%s92 + $0x80] sm:$0xff] %v115
            %v117 = vld [vmem:[%s91 + $0x60] sm:$0xff]
            %118 = vst [vmem:[%s92 + $0x90] sm:$0xff] %v117
            %v119 = vld [vmem:[%s91 + $0x68] sm:$0xff]
            %120 = vst [vmem:[%s92 + $0x98] sm:$0xff] %v119
            %v121 = vld [vmem:[%s91 + $0x70] sm:$0xff]
            %122 = vst [vmem:[%s92 + $0xa8] sm:$0xff] %v121
            %v123 = vld [vmem:[%s91 + $0x78] sm:$0xff]
            %124 = vst [vmem:[%s92 + $0xb0] sm:$0xff] %v123
            %v125 = vld [vmem:[%s91 + $0x80] sm:$0xff]
            %126 = vst [vmem:[%s92 + $0xc0] sm:$0xff] %v125
            %v127 = vld [vmem:[%s91 + $0x88] sm:$0xff]
            %128 = vst [vmem:[%s92 + $0xc8] sm:$0xff] %v127
            %v129 = vld [vmem:[%s91 + $0x90] sm:$0xff]
            %130 = vst [vmem:[%s92 + $0xd8] sm:$0xff] %v129
            %v131 = vld [vmem:[%s91 + $0x98] sm:$0xff]
            %132 = vst [vmem:[%s92 + $0xe0] sm:$0xff] %v131
            %v133 = vld [vmem:[%s91 + $0xa0] sm:$0xff]
            %134 = vst [vmem:[%s92 + $0xf0] sm:$0xff] %v133
            %v135 = vld [vmem:[%s91 + $0xa8] sm:$0xff]
            %136 = vst [vmem:[%s92 + $0xf8] sm:$0xff] %v135
            %v137 = vld [vmem:[%s91 + $0xb0] sm:$0xff]
            %138 = vst [vmem:[%s92 + $0x108] sm:$0xff] %v137
            %v139 = vld [vmem:[%s91 + $0xb8] sm:$0xff]
            %140 = vst [vmem:[%s92 + $0x110] sm:$0xff] %v139
            %v141 = vld [vmem:[%s91 + $0xc0] sm:$0xff]
            %142 = vst [vmem:[%s92 + $0x120] sm:$0xff] %v141
            %v143 = vld [vmem:[%s91 + $0xc8] sm:$0xff]
            %144 = vst [vmem:[%s92 + $0x128] sm:$0xff] %v143
            %v145 = vld [vmem:[%s91 + $0xd0] sm:$0xff]
            %146 = vst [vmem:[%s92 + $0x138] sm:$0xff] %v145
            %v147 = vld [vmem:[%s91 + $0xd8] sm:$0xff]
            %148 = vst [vmem:[%s92 + $0x140] sm:$0xff] %v147
            %v149 = vld [vmem:[%s91 + $0xe0] sm:$0xff]
            %150 = vst [vmem:[%s92 + $0x150] sm:$0xff] %v149
            %v151 = vld [vmem:[%s91 + $0xe8] sm:$0xff]
            %152 = vst [vmem:[%s92 + $0x158] sm:$0xff] %v151
            %v153 = vld [vmem:[%s91 + $0xf0] sm:$0xff]
            %154 = vst [vmem:[%s92 + $0x168] sm:$0xff] %v153
            %v155 = vld [vmem:[%s91 + $0xf8] sm:$0xff]
            %156 = vst [vmem:[%s92 + $0x170] sm:$0xff] %v155
          $region29: #{reverse.5} parent=23 // loop_footer
            %s90 = sadd.s32 1, %s86
          $region30: #{reverse.5} parent=23 // loop_footer_branch
            %85 = sbr.rel target = $region26
          $region31: #{reverse.5} parent=23 // loop_exit
            _
        $region24: #{reverse.5} parent=8 // pred_fallthru
          _
        // Predicated region
        $region32: #{reverse.5} parent=8 // pred_check
          _
        $region33: #{reverse.5} parent=8 // pred_check_branch
          %158 = sbr.rel target = $region35
        $region34: #{reverse.5} parent=8 // pred_region
          _
        $region35: #{reverse.5} parent=8 // pred_fallthru
          _
      $region9: #{reverse.5} parent=4 // pred_fallthru
        _
      // Predicated region
      $region10: #{reverse.5} parent=4 // pred_check
        _
      $region11: #{reverse.5} parent=4 // pred_check_branch
        %8 = sbr.rel target = $region13
      $region12: #{reverse.5} parent=4 // pred_region
        %s10 = ssub.s32 256, 1
        loop: start=0, step=1, limit=1
        $region14: #{reverse.5} parent=12 // loop_pre_header
          _
        $region15: #{reverse.5} parent=12 // loop_header
          %s12 = sphi 0, %s16
          %p13 = scmp.ge.s32.totalorder %s12, 1
          %s17 = sphi %s0, %s0
          %s18 = sphi %s2, %s2
        $region16: #{reverse.5} parent=12 // loop_header_branch
          %15 = sbr.rel (%p13) target = $region20
        $region17: #{reverse.5} parent=12 // loop_body
          %v19 = vld [vmem:[%s17] sm:%s10]
          %20 = vst [vmem:[%s18] sm:%s10] %v19
          %v21 = vld [vmem:[%s17 + $0x8] sm:%s10]
          %22 = vst [vmem:[%s18 + $0x8] sm:%s10] %v21
          %v23 = vld [vmem:[%s17 + $0x10] sm:%s10]
          %24 = vst [vmem:[%s18 + $0x18] sm:%s10] %v23
          %v25 = vld [vmem:[%s17 + $0x18] sm:%s10]
          %26 = vst [vmem:[%s18 + $0x20] sm:%s10] %v25
          %v27 = vld [vmem:[%s17 + $0x20] sm:%s10]
          %28 = vst [vmem:[%s18 + $0x30] sm:%s10] %v27
          %v29 = vld [vmem:[%s17 + $0x28] sm:%s10]
          %30 = vst [vmem:[%s18 + $0x38] sm:%s10] %v29
          %v31 = vld [vmem:[%s17 + $0x30] sm:%s10]
          %32 = vst [vmem:[%s18 + $0x48] sm:%s10] %v31
          %v33 = vld [vmem:[%s17 + $0x38] sm:%s10]
          %34 = vst [vmem:[%s18 + $0x50] sm:%s10] %v33
          %v35 = vld [vmem:[%s17 + $0x40] sm:%s10]
          %36 = vst [vmem:[%s18 + $0x60] sm:%s10] %v35
          %v37 = vld [vmem:[%s17 + $0x48] sm:%s10]
          %38 = vst [vmem:[%s18 + $0x68] sm:%s10] %v37
          %v39 = vld [vmem:[%s17 + $0x50] sm:%s10]
          %40 = vst [vmem:[%s18 + $0x78] sm:%s10] %v39
          %v41 = vld [vmem:[%s17 + $0x58] sm:%s10]
          %42 = vst [vmem:[%s18 + $0x80] sm:%s10] %v41
          %v43 = vld [vmem:[%s17 + $0x60] sm:%s10]
          %44 = vst [vmem:[%s18 + $0x90] sm:%s10] %v43
          %v45 = vld [vmem:[%s17 + $0x68] sm:%s10]
          %46 = vst [vmem:[%s18 + $0x98] sm:%s10] %v45
          %v47 = vld [vmem:[%s17 + $0x70] sm:%s10]
          %48 = vst [vmem:[%s18 + $0xa8] sm:%s10] %v47
          %v49 = vld [vmem:[%s17 + $0x78] sm:%s10]
          %50 = vst [vmem:[%s18 + $0xb0] sm:%s10] %v49
          %v51 = vld [vmem:[%s17 + $0x80] sm:%s10]
          %52 = vst [vmem:[%s18 + $0xc0] sm:%s10] %v51
          %v53 = vld [vmem:[%s17 + $0x88] sm:%s10]
          %54 = vst [vmem:[%s18 + $0xc8] sm:%s10] %v53
          %v55 = vld [vmem:[%s17 + $0x90] sm:%s10]
          %56 = vst [vmem:[%s18 + $0xd8] sm:%s10] %v55
          %v57 = vld [vmem:[%s17 + $0x98] sm:%s10]
          %58 = vst [vmem:[%s18 + $0xe0] sm:%s10] %v57
          %v59 = vld [vmem:[%s17 + $0xa0] sm:%s10]
          %60 = vst [vmem:[%s18 + $0xf0] sm:%s10] %v59
          %v61 = vld [vmem:[%s17 + $0xa8] sm:%s10]
          %62 = vst [vmem:[%s18 + $0xf8] sm:%s10] %v61
          %v63 = vld [vmem:[%s17 + $0xb0] sm:%s10]
          %64 = vst [vmem:[%s18 + $0x108] sm:%s10] %v63
          %v65 = vld [vmem:[%s17 + $0xb8] sm:%s10]
          %66 = vst [vmem:[%s18 + $0x110] sm:%s10] %v65
          %v67 = vld [vmem:[%s17 + $0xc0] sm:%s10]
          %68 = vst [vmem:[%s18 + $0x120] sm:%s10] %v67
          %v69 = vld [vmem:[%s17 + $0xc8] sm:%s10]
          %70 = vst [vmem:[%s18 + $0x128] sm:%s10] %v69
          %v71 = vld [vmem:[%s17 + $0xd0] sm:%s10]
          %72 = vst [vmem:[%s18 + $0x138] sm:%s10] %v71
          %v73 = vld [vmem:[%s17 + $0xd8] sm:%s10]
          %74 = vst [vmem:[%s18 + $0x140] sm:%s10] %v73
          %v75 = vld [vmem:[%s17 + $0xe0] sm:%s10]
          %76 = vst [vmem:[%s18 + $0x150] sm:%s10] %v75
          %v77 = vld [vmem:[%s17 + $0xe8] sm:%s10]
          %78 = vst [vmem:[%s18 + $0x158] sm:%s10] %v77
          %v79 = vld [vmem:[%s17 + $0xf0] sm:%s10]
          %80 = vst [vmem:[%s18 + $0x168] sm:%s10] %v79
          %v81 = vld [vmem:[%s17 + $0xf8] sm:%s10]
          %82 = vst [vmem:[%s18 + $0x170] sm:%s10] %v81
        $region18: #{reverse.5} parent=12 // loop_footer
          %s16 = sadd.s32 1, %s12
        $region19: #{reverse.5} parent=12 // loop_footer_branch
          %11 = sbr.rel target = $region15
        $region20: #{reverse.5} parent=12 // loop_exit
          _
      $region13: #{reverse.5} parent=4 // pred_fallthru
        _
    $region5: #{reverse.5} parent=1 // pred_fallthru
      _
    %159 = vnop
    %s160 = scalar_lea.vmem [#allocation0], 8
    %s161 = scalar_lea.vmem %s160, 7 [#allocation0]
    %v162 = vld [vmem:[%s161] ss:$-1 sm:$0xff]
    %v163 = vrot.slane %v162, 4
    %164 = vst [vmem:[#allocation1] sm:$0xff] %v163
    %s165 = scalar_lea.vmem [#allocation0], 16
    %s166 = scalar_lea.vmem %s165, 7 [#allocation0]
    %v167 = vld [vmem:[%s166] ss:$-1 sm:$0xff]
    %v168 = vrot.slane %v167, 4
    %v169 = vlaneseq
    %v170 = vshrl.u32 %v169, 7
    %vm171 = vcmp.lt.s32.totalorder %v170, 4
    %172 = vst.msk [vmem:[#allocation1] sm:$0xff] %vm171, %v168
    %s173 = scalar_lea.vmem [#allocation1], 8
    %s174 = scalar_lea.vmem [#allocation0], 7
    %v175 = vld [vmem:[%s174] ss:$-1 sm:$0xff]
    %v176 = vrot.slane %v175, 4
    %177 = vst [vmem:[%s173] sm:$0xff] %v176
    %s178 = scalar_lea.vmem [#allocation0], 8
    %s179 = scalar_lea.vmem %s178, 7 [#allocation0]
    %v180 = vld [vmem:[%s179] ss:$-1 sm:$0xff]
    %v181 = vrot.slane %v180, 4
    %v182 = vlaneseq
    %v183 = vshrl.u32 %v182, 7
    %vm184 = vcmp.lt.s32.totalorder %v183, 4
    %185 = vst.msk [vmem:[%s173] sm:$0xff] %vm184, %v181
    %s186 = scalar_lea.vmem [#allocation1], 16
    %s187 = scalar_lea.vmem [#allocation0], 24
    %s188 = scalar_lea.vmem %s187, 8 [#allocation0]
    %s189 = scalar_lea.vmem %s188, 7 [#allocation0]
    %v190 = vld [vmem:[%s189] ss:$-1 sm:$0xff]
    %v191 = vrot.slane %v190, 4
    %192 = vst [vmem:[%s186] sm:$0xff] %v191
    %s193 = scalar_lea.vmem %s187, 16 [#allocation0]
    %s194 = scalar_lea.vmem %s193, 7 [#allocation0]
    %v195 = vld [vmem:[%s194] ss:$-1 sm:$0xff]
    %v196 = vrot.slane %v195, 4
    %v197 = vlaneseq
    %v198 = vshrl.u32 %v197, 7
    %vm199 = vcmp.lt.s32.totalorder %v198, 4
    %200 = vst.msk [vmem:[%s186] sm:$0xff] %vm199, %v196
    %s201 = scalar_lea.vmem %s186, 8 [#allocation1]
    %s202 = scalar_lea.vmem %s187, 7 [#allocation0]
    %v203 = vld [vmem:[%s202] ss:$-1 sm:$0xff]
    %v204 = vrot.slane %v203, 4
    %205 = vst [vmem:[%s201] sm:$0xff] %v204
    %s206 = scalar_lea.vmem %s187, 8 [#allocation0]
    %s207 = scalar_lea.vmem %s206, 7 [#allocation0]
    %v208 = vld [vmem:[%s207] ss:$-1 sm:$0xff]
    %v209 = vrot.slane %v208, 4
    %v210 = vlaneseq
    %v211 = vshrl.u32 %v210, 7
    %vm212 = vcmp.lt.s32.totalorder %v211, 4
    %213 = vst.msk [vmem:[%s201] sm:$0xff] %vm212, %v209
    %s214 = scalar_lea.vmem [#allocation1], 32
    %s215 = scalar_lea.vmem [#allocation0], 48
    %s216 = scalar_lea.vmem %s215, 8 [#allocation0]
    %s217 = scalar_lea.vmem %s216, 7 [#allocation0]
    %v218 = vld [vmem:[%s217] ss:$-1 sm:$0xff]
    %v219 = vrot.slane %v218, 4
    %220 = vst [vmem:[%s214] sm:$0xff] %v219
    %s221 = scalar_lea.vmem %s215, 16 [#allocation0]
    %s222 = scalar_lea.vmem %s221, 7 [#allocation0]
    %v223 = vld [vmem:[%s222] ss:$-1 sm:$0xff]
    %v224 = vrot.slane %v223, 4
    %v225 = vlaneseq
    %v226 = vshrl.u32 %v225, 7
    %vm227 = vcmp.lt.s32.totalorder %v226, 4
    %228 = vst.msk [vmem:[%s214] sm:$0xff] %vm227, %v224
    %s229 = scalar_lea.vmem %s214, 8 [#allocation1]
    %s230 = scalar_lea.vmem %s215, 7 [#allocation0]
    %v231 = vld [vmem:[%s230] ss:$-1 sm:$0xff]
    %v232 = vrot.slane %v231, 4
    %233 = vst [vmem:[%s229] sm:$0xff] %v232
    %s234 = scalar_lea.vmem %s215, 8 [#allocation0]
    %s235 = scalar_lea.vmem %s234, 7 [#allocation0]
    %v236 = vld [vmem:[%s235] ss:$-1 sm:$0xff]
    %v237 = vrot.slane %v236, 4
    %v238 = vlaneseq
    %v239 = vshrl.u32 %v238, 7
    %vm240 = vcmp.lt.s32.totalorder %v239, 4
    %241 = vst.msk [vmem:[%s229] sm:$0xff] %vm240, %v237
    %s242 = scalar_lea.vmem [#allocation1], 48
    %s243 = scalar_lea.vmem [#allocation0], 72
    %s244 = scalar_lea.vmem %s243, 8 [#allocation0]
    %s245 = scalar_lea.vmem %s244, 7 [#allocation0]
    %v246 = vld [vmem:[%s245] ss:$-1 sm:$0xff]
    %v247 = vrot.slane %v246, 4
    %248 = vst [vmem:[%s242] sm:$0xff] %v247
    %s249 = scalar_lea.vmem %s243, 16 [#allocation0]
    %s250 = scalar_lea.vmem %s249, 7 [#allocation0]
    %v251 = vld [vmem:[%s250] ss:$-1 sm:$0xff]
    %v252 = vrot.slane %v251, 4
    %v253 = vlaneseq
    %v254 = vshrl.u32 %v253, 7
    %vm255 = vcmp.lt.s32.totalorder %v254, 4
    %256 = vst.msk [vmem:[%s242] sm:$0xff] %vm255, %v252
    %s257 = scalar_lea.vmem %s242, 8 [#allocation1]
    %s258 = scalar_lea.vmem %s243, 7 [#allocation0]
    %v259 = vld [vmem:[%s258] ss:$-1 sm:$0xff]
    %v260 = vrot.slane %v259, 4
    %261 = vst [vmem:[%s257] sm:$0xff] %v260
    %s262 = scalar_lea.vmem %s243, 8 [#allocation0]
    %s263 = scalar_lea.vmem %s262, 7 [#allocation0]
    %v264 = vld [vmem:[%s263] ss:$-1 sm:$0xff]
    %v265 = vrot.slane %v264, 4
    %v266 = vlaneseq
    %v267 = vshrl.u32 %v266, 7
    %vm268 = vcmp.lt.s32.totalorder %v267, 4
    %269 = vst.msk [vmem:[%s257] sm:$0xff] %vm268, %v265
    %s270 = scalar_lea.vmem [#allocation1], 64
    %s271 = scalar_lea.vmem [#allocation0], 96
    %s272 = scalar_lea.vmem %s271, 8 [#allocation0]
    %s273 = scalar_lea.vmem %s272, 7 [#allocation0]
    %v274 = vld [vmem:[%s273] ss:$-1 sm:$0xff]
    %v275 = vrot.slane %v274, 4
    %276 = vst [vmem:[%s270] sm:$0xff] %v275
    %s277 = scalar_lea.vmem %s271, 16 [#allocation0]
    %s278 = scalar_lea.vmem %s277, 7 [#allocation0]
    %v279 = vld [vmem:[%s278] ss:$-1 sm:$0xff]
    %v280 = vrot.slane %v279, 4
    %v281 = vlaneseq
    %v282 = vshrl.u32 %v281, 7
    %vm283 = vcmp.lt.s32.totalorder %v282, 4
    %284 = vst.msk [vmem:[%s270] sm:$0xff] %vm283, %v280
    %s285 = scalar_lea.vmem %s270, 8 [#allocation1]
    %s286 = scalar_lea.vmem %s271, 7 [#allocation0]
    %v287 = vld [vmem:[%s286] ss:$-1 sm:$0xff]
    %v288 = vrot.slane %v287, 4
    %289 = vst [vmem:[%s285] sm:$0xff] %v288
    %s290 = scalar_lea.vmem %s271, 8 [#allocation0]
    %s291 = scalar_lea.vmem %s290, 7 [#allocation0]
    %v292 = vld [vmem:[%s291] ss:$-1 sm:$0xff]
    %v293 = vrot.slane %v292, 4
    %v294 = vlaneseq
    %v295 = vshrl.u32 %v294, 7
    %vm296 = vcmp.lt.s32.totalorder %v295, 4
    %297 = vst.msk [vmem:[%s285] sm:$0xff] %vm296, %v293
    %s298 = scalar_lea.vmem [#allocation1], 80
    %s299 = scalar_lea.vmem [#allocation0], 120
    %s300 = scalar_lea.vmem %s299, 8 [#allocation0]
    %s301 = scalar_lea.vmem %s300, 7 [#allocation0]
    %v302 = vld [vmem:[%s301] ss:$-1 sm:$0xff]
    %v303 = vrot.slane %v302, 4
    %304 = vst [vmem:[%s298] sm:$0xff] %v303
    %s305 = scalar_lea.vmem %s299, 16 [#allocation0]
    %s306 = scalar_lea.vmem %s305, 7 [#allocation0]
    %v307 = vld [vmem:[%s306] ss:$-1 sm:$0xff]
    %v308 = vrot.slane %v307, 4
    %v309 = vlaneseq
    %v310 = vshrl.u32 %v309, 7
    %vm311 = vcmp.lt.s32.totalorder %v310, 4
    %312 = vst.msk [vmem:[%s298] sm:$0xff] %vm311, %v308
    %s313 = scalar_lea.vmem %s298, 8 [#allocation1]
    %s314 = scalar_lea.vmem %s299, 7 [#allocation0]
    %v315 = vld [vmem:[%s314] ss:$-1 sm:$0xff]
    %v316 = vrot.slane %v315, 4
    %317 = vst [vmem:[%s313] sm:$0xff] %v316
    %s318 = scalar_lea.vmem %s299, 8 [#allocation0]
    %s319 = scalar_lea.vmem %s318, 7 [#allocation0]
    %v320 = vld [vmem:[%s319] ss:$-1 sm:$0xff]
    %v321 = vrot.slane %v320, 4
    %v322 = vlaneseq
    %v323 = vshrl.u32 %v322, 7
    %vm324 = vcmp.lt.s32.totalorder %v323, 4
    %325 = vst.msk [vmem:[%s313] sm:$0xff] %vm324, %v321
    %s326 = scalar_lea.vmem [#allocation1], 96
    %s327 = scalar_lea.vmem [#allocation0], 144
    %s328 = scalar_lea.vmem %s327, 8 [#allocation0]
    %s329 = scalar_lea.vmem %s328, 7 [#allocation0]
    %v330 = vld [vmem:[%s329] ss:$-1 sm:$0xff]
    %v331 = vrot.slane %v330, 4
    %332 = vst [vmem:[%s326] sm:$0xff] %v331
    %s333 = scalar_lea.vmem %s327, 16 [#allocation0]
    %s334 = scalar_lea.vmem %s333, 7 [#allocation0]
    %v335 = vld [vmem:[%s334] ss:$-1 sm:$0xff]
    %v336 = vrot.slane %v335, 4
    %v337 = vlaneseq
    %v338 = vshrl.u32 %v337, 7
    %vm339 = vcmp.lt.s32.totalorder %v338, 4
    %340 = vst.msk [vmem:[%s326] sm:$0xff] %vm339, %v336
    %s341 = scalar_lea.vmem %s326, 8 [#allocation1]
    %s342 = scalar_lea.vmem %s327, 7 [#allocation0]
    %v343 = vld [vmem:[%s342] ss:$-1 sm:$0xff]
    %v344 = vrot.slane %v343, 4
    %345 = vst [vmem:[%s341] sm:$0xff] %v344
    %s346 = scalar_lea.vmem %s327, 8 [#allocation0]
    %s347 = scalar_lea.vmem %s346, 7 [#allocation0]
    %v348 = vld [vmem:[%s347] ss:$-1 sm:$0xff]
    %v349 = vrot.slane %v348, 4
    %v350 = vlaneseq
    %v351 = vshrl.u32 %v350, 7
    %vm352 = vcmp.lt.s32.totalorder %v351, 4
    %353 = vst.msk [vmem:[%s341] sm:$0xff] %vm352, %v349
    %s354 = scalar_lea.vmem [#allocation1], 112
    %s355 = scalar_lea.vmem [#allocation0], 168
    %s356 = scalar_lea.vmem %s355, 8 [#allocation0]
    %s357 = scalar_lea.vmem %s356, 7 [#allocation0]
    %v358 = vld [vmem:[%s357] ss:$-1 sm:$0xff]
    %v359 = vrot.slane %v358, 4
    %360 = vst [vmem:[%s354] sm:$0xff] %v359
    %s361 = scalar_lea.vmem %s355, 16 [#allocation0]
    %s362 = scalar_lea.vmem %s361, 7 [#allocation0]
    %v363 = vld [vmem:[%s362] ss:$-1 sm:$0xff]
    %v364 = vrot.slane %v363, 4
    %v365 = vlaneseq
    %v366 = vshrl.u32 %v365, 7
    %vm367 = vcmp.lt.s32.totalorder %v366, 4
    %368 = vst.msk [vmem:[%s354] sm:$0xff] %vm367, %v364
    %s369 = scalar_lea.vmem %s354, 8 [#allocation1]
    %s370 = scalar_lea.vmem %s355, 7 [#allocation0]
    %v371 = vld [vmem:[%s370] ss:$-1 sm:$0xff]
    %v372 = vrot.slane %v371, 4
    %373 = vst [vmem:[%s369] sm:$0xff] %v372
    %s374 = scalar_lea.vmem %s355, 8 [#allocation0]
    %s375 = scalar_lea.vmem %s374, 7 [#allocation0]
    %v376 = vld [vmem:[%s375] ss:$-1 sm:$0xff]
    %v377 = vrot.slane %v376, 4
    %v378 = vlaneseq
    %v379 = vshrl.u32 %v378, 7
    %vm380 = vcmp.lt.s32.totalorder %v379, 4
    %381 = vst.msk [vmem:[%s369] sm:$0xff] %vm380, %v377
    %s382 = scalar_lea.vmem [#allocation1], 128
    %s383 = scalar_lea.vmem [#allocation0], 192
    %s384 = scalar_lea.vmem %s383, 8 [#allocation0]
    %s385 = scalar_lea.vmem %s384, 7 [#allocation0]
    %v386 = vld [vmem:[%s385] ss:$-1 sm:$0xff]
    %v387 = vrot.slane %v386, 4
    %388 = vst [vmem:[%s382] sm:$0xff] %v387
    %s389 = scalar_lea.vmem %s383, 16 [#allocation0]
    %s390 = scalar_lea.vmem %s389, 7 [#allocation0]
    %v391 = vld [vmem:[%s390] ss:$-1 sm:$0xff]
    %v392 = vrot.slane %v391, 4
    %v393 = vlaneseq
    %v394 = vshrl.u32 %v393, 7
    %vm395 = vcmp.lt.s32.totalorder %v394, 4
    %396 = vst.msk [vmem:[%s382] sm:$0xff] %vm395, %v392
    %s397 = scalar_lea.vmem %s382, 8 [#allocation1]
    %s398 = scalar_lea.vmem %s383, 7 [#allocation0]
    %v399 = vld [vmem:[%s398] ss:$-1 sm:$0xff]
    %v400 = vrot.slane %v399, 4
    %401 = vst [vmem:[%s397] sm:$0xff] %v400
    %s402 = scalar_lea.vmem %s383, 8 [#allocation0]
    %s403 = scalar_lea.vmem %s402, 7 [#allocation0]
    %v404 = vld [vmem:[%s403] ss:$-1 sm:$0xff]
    %v405 = vrot.slane %v404, 4
    %v406 = vlaneseq
    %v407 = vshrl.u32 %v406, 7
    %vm408 = vcmp.lt.s32.totalorder %v407, 4
    %409 = vst.msk [vmem:[%s397] sm:$0xff] %vm408, %v405
    %s410 = scalar_lea.vmem [#allocation1], 144
    %s411 = scalar_lea.vmem [#allocation0], 216
    %s412 = scalar_lea.vmem %s411, 8 [#allocation0]
    %s413 = scalar_lea.vmem %s412, 7 [#allocation0]
    %v414 = vld [vmem:[%s413] ss:$-1 sm:$0xff]
    %v415 = vrot.slane %v414, 4
    %416 = vst [vmem:[%s410] sm:$0xff] %v415
    %s417 = scalar_lea.vmem %s411, 16 [#allocation0]
    %s418 = scalar_lea.vmem %s417, 7 [#allocation0]
    %v419 = vld [vmem:[%s418] ss:$-1 sm:$0xff]
    %v420 = vrot.slane %v419, 4
    %v421 = vlaneseq
    %v422 = vshrl.u32 %v421, 7
    %vm423 = vcmp.lt.s32.totalorder %v422, 4
    %424 = vst.msk [vmem:[%s410] sm:$0xff] %vm423, %v420
    %s425 = scalar_lea.vmem %s410, 8 [#allocation1]
    %s426 = scalar_lea.vmem %s411, 7 [#allocation0]
    %v427 = vld [vmem:[%s426] ss:$-1 sm:$0xff]
    %v428 = vrot.slane %v427, 4
    %429 = vst [vmem:[%s425] sm:$0xff] %v428
    %s430 = scalar_lea.vmem %s411, 8 [#allocation0]
    %s431 = scalar_lea.vmem %s430, 7 [#allocation0]
    %v432 = vld [vmem:[%s431] ss:$-1 sm:$0xff]
    %v433 = vrot.slane %v432, 4
    %v434 = vlaneseq
    %v435 = vshrl.u32 %v434, 7
    %vm436 = vcmp.lt.s32.totalorder %v435, 4
    %437 = vst.msk [vmem:[%s425] sm:$0xff] %vm436, %v433
    %s438 = scalar_lea.vmem [#allocation1], 160
    %s439 = scalar_lea.vmem [#allocation0], 240
    %s440 = scalar_lea.vmem %s439, 8 [#allocation0]
    %s441 = scalar_lea.vmem %s440, 7 [#allocation0]
    %v442 = vld [vmem:[%s441] ss:$-1 sm:$0xff]
    %v443 = vrot.slane %v442, 4
    %444 = vst [vmem:[%s438] sm:$0xff] %v443
    %s445 = scalar_lea.vmem %s439, 16 [#allocation0]
    %s446 = scalar_lea.vmem %s445, 7 [#allocation0]
    %v447 = vld [vmem:[%s446] ss:$-1 sm:$0xff]
    %v448 = vrot.slane %v447, 4
    %v449 = vlaneseq
    %v450 = vshrl.u32 %v449, 7
    %vm451 = vcmp.lt.s32.totalorder %v450, 4
    %452 = vst.msk [vmem:[%s438] sm:$0xff] %vm451, %v448
    %s453 = scalar_lea.vmem %s438, 8 [#allocation1]
    %s454 = scalar_lea.vmem %s439, 7 [#allocation0]
    %v455 = vld [vmem:[%s454] ss:$-1 sm:$0xff]
    %v456 = vrot.slane %v455, 4
    %457 = vst [vmem:[%s453] sm:$0xff] %v456
    %s458 = scalar_lea.vmem %s439, 8 [#allocation0]
    %s459 = scalar_lea.vmem %s458, 7 [#allocation0]
    %v460 = vld [vmem:[%s459] ss:$-1 sm:$0xff]
    %v461 = vrot.slane %v460, 4
    %v462 = vlaneseq
    %v463 = vshrl.u32 %v462, 7
    %vm464 = vcmp.lt.s32.totalorder %v463, 4
    %465 = vst.msk [vmem:[%s453] sm:$0xff] %vm464, %v461
    %s466 = scalar_lea.vmem [#allocation1], 176
    %s467 = scalar_lea.vmem [#allocation0], 264
    %s468 = scalar_lea.vmem %s467, 8 [#allocation0]
    %s469 = scalar_lea.vmem %s468, 7 [#allocation0]
    %v470 = vld [vmem:[%s469] ss:$-1 sm:$0xff]
    %v471 = vrot.slane %v470, 4
    %472 = vst [vmem:[%s466] sm:$0xff] %v471
    %s473 = scalar_lea.vmem %s467, 16 [#allocation0]
    %s474 = scalar_lea.vmem %s473, 7 [#allocation0]
    %v475 = vld [vmem:[%s474] ss:$-1 sm:$0xff]
    %v476 = vrot.slane %v475, 4
    %v477 = vlaneseq
    %v478 = vshrl.u32 %v477, 7
    %vm479 = vcmp.lt.s32.totalorder %v478, 4
    %480 = vst.msk [vmem:[%s466] sm:$0xff] %vm479, %v476
    %s481 = scalar_lea.vmem %s466, 8 [#allocation1]
    %s482 = scalar_lea.vmem %s467, 7 [#allocation0]
    %v483 = vld [vmem:[%s482] ss:$-1 sm:$0xff]
    %v484 = vrot.slane %v483, 4
    %485 = vst [vmem:[%s481] sm:$0xff] %v484
    %s486 = scalar_lea.vmem %s467, 8 [#allocation0]
    %s487 = scalar_lea.vmem %s486, 7 [#allocation0]
    %v488 = vld [vmem:[%s487] ss:$-1 sm:$0xff]
    %v489 = vrot.slane %v488, 4
    %v490 = vlaneseq
    %v491 = vshrl.u32 %v490, 7
    %vm492 = vcmp.lt.s32.totalorder %v491, 4
    %493 = vst.msk [vmem:[%s481] sm:$0xff] %vm492, %v489
    %s494 = scalar_lea.vmem [#allocation1], 192
    %s495 = scalar_lea.vmem [#allocation0], 288
    %s496 = scalar_lea.vmem %s495, 8 [#allocation0]
    %s497 = scalar_lea.vmem %s496, 7 [#allocation0]
    %v498 = vld [vmem:[%s497] ss:$-1 sm:$0xff]
    %v499 = vrot.slane %v498, 4
    %500 = vst [vmem:[%s494] sm:$0xff] %v499
    %s501 = scalar_lea.vmem %s495, 16 [#allocation0]
    %s502 = scalar_lea.vmem %s501, 7 [#allocation0]
    %v503 = vld [vmem:[%s502] ss:$-1 sm:$0xff]
    %v504 = vrot.slane %v503, 4
    %v505 = vlaneseq
    %v506 = vshrl.u32 %v505, 7
    %vm507 = vcmp.lt.s32.totalorder %v506, 4
    %508 = vst.msk [vmem:[%s494] sm:$0xff] %vm507, %v504
    %s509 = scalar_lea.vmem %s494, 8 [#allocation1]
    %s510 = scalar_lea.vmem %s495, 7 [#allocation0]
    %v511 = vld [vmem:[%s510] ss:$-1 sm:$0xff]
    %v512 = vrot.slane %v511, 4
    %513 = vst [vmem:[%s509] sm:$0xff] %v512
    %s514 = scalar_lea.vmem %s495, 8 [#allocation0]
    %s515 = scalar_lea.vmem %s514, 7 [#allocation0]
    %v516 = vld [vmem:[%s515] ss:$-1 sm:$0xff]
    %v517 = vrot.slane %v516, 4
    %v518 = vlaneseq
    %v519 = vshrl.u32 %v518, 7
    %vm520 = vcmp.lt.s32.totalorder %v519, 4
    %521 = vst.msk [vmem:[%s509] sm:$0xff] %vm520, %v517
    %s522 = scalar_lea.vmem [#allocation1], 208
    %s523 = scalar_lea.vmem [#allocation0], 312
    %s524 = scalar_lea.vmem %s523, 8 [#allocation0]
    %s525 = scalar_lea.vmem %s524, 7 [#allocation0]
    %v526 = vld [vmem:[%s525] ss:$-1 sm:$0xff]
    %v527 = vrot.slane %v526, 4
    %528 = vst [vmem:[%s522] sm:$0xff] %v527
    %s529 = scalar_lea.vmem %s523, 16 [#allocation0]
    %s530 = scalar_lea.vmem %s529, 7 [#allocation0]
    %v531 = vld [vmem:[%s530] ss:$-1 sm:$0xff]
    %v532 = vrot.slane %v531, 4
    %v533 = vlaneseq
    %v534 = vshrl.u32 %v533, 7
    %vm535 = vcmp.lt.s32.totalorder %v534, 4
    %536 = vst.msk [vmem:[%s522] sm:$0xff] %vm535, %v532
    %s537 = scalar_lea.vmem %s522, 8 [#allocation1]
    %s538 = scalar_lea.vmem %s523, 7 [#allocation0]
    %v539 = vld [vmem:[%s538] ss:$-1 sm:$0xff]
    %v540 = vrot.slane %v539, 4
    %541 = vst [vmem:[%s537] sm:$0xff] %v540
    %s542 = scalar_lea.vmem %s523, 8 [#allocation0]
    %s543 = scalar_lea.vmem %s542, 7 [#allocation0]
    %v544 = vld [vmem:[%s543] ss:$-1 sm:$0xff]
    %v545 = vrot.slane %v544, 4
    %v546 = vlaneseq
    %v547 = vshrl.u32 %v546, 7
    %vm548 = vcmp.lt.s32.totalorder %v547, 4
    %549 = vst.msk [vmem:[%s537] sm:$0xff] %vm548, %v545
    %s550 = scalar_lea.vmem [#allocation1], 224
    %s551 = scalar_lea.vmem [#allocation0], 336
    %s552 = scalar_lea.vmem %s551, 8 [#allocation0]
    %s553 = scalar_lea.vmem %s552, 7 [#allocation0]
    %v554 = vld [vmem:[%s553] ss:$-1 sm:$0xff]
    %v555 = vrot.slane %v554, 4
    %556 = vst [vmem:[%s550] sm:$0xff] %v555
    %s557 = scalar_lea.vmem %s551, 16 [#allocation0]
    %s558 = scalar_lea.vmem %s557, 7 [#allocation0]
    %v559 = vld [vmem:[%s558] ss:$-1 sm:$0xff]
    %v560 = vrot.slane %v559, 4
    %v561 = vlaneseq
    %v562 = vshrl.u32 %v561, 7
    %vm563 = vcmp.lt.s32.totalorder %v562, 4
    %564 = vst.msk [vmem:[%s550] sm:$0xff] %vm563, %v560
    %s565 = scalar_lea.vmem %s550, 8 [#allocation1]
    %s566 = scalar_lea.vmem %s551, 7 [#allocation0]
    %v567 = vld [vmem:[%s566] ss:$-1 sm:$0xff]
    %v568 = vrot.slane %v567, 4
    %569 = vst [vmem:[%s565] sm:$0xff] %v568
    %s570 = scalar_lea.vmem %s551, 8 [#allocation0]
    %s571 = scalar_lea.vmem %s570, 7 [#allocation0]
    %v572 = vld [vmem:[%s571] ss:$-1 sm:$0xff]
    %v573 = vrot.slane %v572, 4
    %v574 = vlaneseq
    %v575 = vshrl.u32 %v574, 7
    %vm576 = vcmp.lt.s32.totalorder %v575, 4
    %577 = vst.msk [vmem:[%s565] sm:$0xff] %vm576, %v573
    %s578 = scalar_lea.vmem [#allocation1], 240
    %s579 = scalar_lea.vmem [#allocation0], 360
    %s580 = scalar_lea.vmem %s579, 8 [#allocation0]
    %s581 = scalar_lea.vmem %s580, 7 [#allocation0]
    %v582 = vld [vmem:[%s581] ss:$-1 sm:$0xff]
    %v583 = vrot.slane %v582, 4
    %584 = vst [vmem:[%s578] sm:$0xff] %v583
    %s585 = scalar_lea.vmem %s579, 16 [#allocation0]
    %s586 = scalar_lea.vmem %s585, 7 [#allocation0]
    %v587 = vld [vmem:[%s586] ss:$-1 sm:$0xff]
    %v588 = vrot.slane %v587, 4
    %v589 = vlaneseq
    %v590 = vshrl.u32 %v589, 7
    %vm591 = vcmp.lt.s32.totalorder %v590, 4
    %592 = vst.msk [vmem:[%s578] sm:$0xff] %vm591, %v588
    %s593 = scalar_lea.vmem %s578, 8 [#allocation1]
    %s594 = scalar_lea.vmem %s579, 7 [#allocation0]
    %v595 = vld [vmem:[%s594] ss:$-1 sm:$0xff]
    %v596 = vrot.slane %v595, 4
    %597 = vst [vmem:[%s593] sm:$0xff] %v596
    %s598 = scalar_lea.vmem %s579, 8 [#allocation0]
    %s599 = scalar_lea.vmem %s598, 7 [#allocation0]
    %v600 = vld [vmem:[%s599] ss:$-1 sm:$0xff]
    %v601 = vrot.slane %v600, 4
    %v602 = vlaneseq
    %v603 = vshrl.u32 %v602, 7
    %vm604 = vcmp.lt.s32.totalorder %v603, 4
    %605 = vst.msk [vmem:[%s593] sm:$0xff] %vm604, %v601
    // Predicated region
    $region36: #{reverse.5} parent=1 // pred_check
      _
    $region37: #{reverse.5} parent=1 // pred_check_branch
      %607 = sbr.rel (0) target = $region39
    $region38: #{reverse.5} parent=1 // pred_region
      // Predicated region
      $region40: #{reverse.5} parent=38 // pred_check
        _
      $region41: #{reverse.5} parent=38 // pred_check_branch
        %609 = sbr.rel (0) target = $region43
      $region42: #{reverse.5} parent=38 // pred_region
        // Predicated region
        $region55: #{reverse.5} parent=42 // pred_check
          _
        $region56: #{reverse.5} parent=42 // pred_check_branch
          %687 = sbr.rel (0) target = $region58
        $region57: #{reverse.5} parent=42 // pred_region
          loop: start=0, step=1, limit=1
          $region59: #{reverse.5} parent=57 // loop_pre_header
            _
          $region60: #{reverse.5} parent=57 // loop_header
            %s689 = sphi 0, %s693
            %p690 = scmp.ge.s32.totalorder %s689, 1
            %s694 = sphi [#allocation1], [#allocation1]
            %s695 = sphi %s1, %s1
          $region61: #{reverse.5} parent=57 // loop_header_branch
            %692 = sbr.rel (%p690) target = $region65
          $region62: #{reverse.5} parent=57 // loop_body
            %v696 = vld [vmem:[%s694] sm:$0xff]
            %697 = vst [vmem:[%s695] sm:$0xff] %v696
            %v698 = vld [vmem:[%s694 + $0x8] sm:$0xff]
            %699 = vst [vmem:[%s695 + $0x8] sm:$0xff] %v698
            %v700 = vld [vmem:[%s694 + $0x10] sm:$0xff]
            %701 = vst [vmem:[%s695 + $0x10] sm:$0xff] %v700
            %v702 = vld [vmem:[%s694 + $0x18] sm:$0xff]
            %703 = vst [vmem:[%s695 + $0x18] sm:$0xff] %v702
            %v704 = vld [vmem:[%s694 + $0x20] sm:$0xff]
            %705 = vst [vmem:[%s695 + $0x20] sm:$0xff] %v704
            %v706 = vld [vmem:[%s694 + $0x28] sm:$0xff]
            %707 = vst [vmem:[%s695 + $0x28] sm:$0xff] %v706
            %v708 = vld [vmem:[%s694 + $0x30] sm:$0xff]
            %709 = vst [vmem:[%s695 + $0x30] sm:$0xff] %v708
            %v710 = vld [vmem:[%s694 + $0x38] sm:$0xff]
            %711 = vst [vmem:[%s695 + $0x38] sm:$0xff] %v710
            %v712 = vld [vmem:[%s694 + $0x40] sm:$0xff]
            %713 = vst [vmem:[%s695 + $0x40] sm:$0xff] %v712
            %v714 = vld [vmem:[%s694 + $0x48] sm:$0xff]
            %715 = vst [vmem:[%s695 + $0x48] sm:$0xff] %v714
            %v716 = vld [vmem:[%s694 + $0x50] sm:$0xff]
            %717 = vst [vmem:[%s695 + $0x50] sm:$0xff] %v716
            %v718 = vld [vmem:[%s694 + $0x58] sm:$0xff]
            %719 = vst [vmem:[%s695 + $0x58] sm:$0xff] %v718
            %v720 = vld [vmem:[%s694 + $0x60] sm:$0xff]
            %721 = vst [vmem:[%s695 + $0x60] sm:$0xff] %v720
            %v722 = vld [vmem:[%s694 + $0x68] sm:$0xff]
            %723 = vst [vmem:[%s695 + $0x68] sm:$0xff] %v722
            %v724 = vld [vmem:[%s694 + $0x70] sm:$0xff]
            %725 = vst [vmem:[%s695 + $0x70] sm:$0xff] %v724
            %v726 = vld [vmem:[%s694 + $0x78] sm:$0xff]
            %727 = vst [vmem:[%s695 + $0x78] sm:$0xff] %v726
            %v728 = vld [vmem:[%s694 + $0x80] sm:$0xff]
            %729 = vst [vmem:[%s695 + $0x80] sm:$0xff] %v728
            %v730 = vld [vmem:[%s694 + $0x88] sm:$0xff]
            %731 = vst [vmem:[%s695 + $0x88] sm:$0xff] %v730
            %v732 = vld [vmem:[%s694 + $0x90] sm:$0xff]
            %733 = vst [vmem:[%s695 + $0x90] sm:$0xff] %v732
            %v734 = vld [vmem:[%s694 + $0x98] sm:$0xff]
            %735 = vst [vmem:[%s695 + $0x98] sm:$0xff] %v734
            %v736 = vld [vmem:[%s694 + $0xa0] sm:$0xff]
            %737 = vst [vmem:[%s695 + $0xa0] sm:$0xff] %v736
            %v738 = vld [vmem:[%s694 + $0xa8] sm:$0xff]
            %739 = vst [vmem:[%s695 + $0xa8] sm:$0xff] %v738
            %v740 = vld [vmem:[%s694 + $0xb0] sm:$0xff]
            %741 = vst [vmem:[%s695 + $0xb0] sm:$0xff] %v740
            %v742 = vld [vmem:[%s694 + $0xb8] sm:$0xff]
            %743 = vst [vmem:[%s695 + $0xb8] sm:$0xff] %v742
            %v744 = vld [vmem:[%s694 + $0xc0] sm:$0xff]
            %745 = vst [vmem:[%s695 + $0xc0] sm:$0xff] %v744
            %v746 = vld [vmem:[%s694 + $0xc8] sm:$0xff]
            %747 = vst [vmem:[%s695 + $0xc8] sm:$0xff] %v746
            %v748 = vld [vmem:[%s694 + $0xd0] sm:$0xff]
            %749 = vst [vmem:[%s695 + $0xd0] sm:$0xff] %v748
            %v750 = vld [vmem:[%s694 + $0xd8] sm:$0xff]
            %751 = vst [vmem:[%s695 + $0xd8] sm:$0xff] %v750
            %v752 = vld [vmem:[%s694 + $0xe0] sm:$0xff]
            %753 = vst [vmem:[%s695 + $0xe0] sm:$0xff] %v752
            %v754 = vld [vmem:[%s694 + $0xe8] sm:$0xff]
            %755 = vst [vmem:[%s695 + $0xe8] sm:$0xff] %v754
            %v756 = vld [vmem:[%s694 + $0xf0] sm:$0xff]
            %757 = vst [vmem:[%s695 + $0xf0] sm:$0xff] %v756
            %v758 = vld [vmem:[%s694 + $0xf8] sm:$0xff]
            %759 = vst [vmem:[%s695 + $0xf8] sm:$0xff] %v758
          $region63: #{reverse.5} parent=57 // loop_footer
            %s693 = sadd.s32 1, %s689
          $region64: #{reverse.5} parent=57 // loop_footer_branch
            %688 = sbr.rel target = $region60
          $region65: #{reverse.5} parent=57 // loop_exit
            _
        $region58: #{reverse.5} parent=42 // pred_fallthru
          _
        // Predicated region
        $region66: #{reverse.5} parent=42 // pred_check
          _
        $region67: #{reverse.5} parent=42 // pred_check_branch
          %761 = sbr.rel target = $region69
        $region68: #{reverse.5} parent=42 // pred_region
          _
        $region69: #{reverse.5} parent=42 // pred_fallthru
          _
      $region43: #{reverse.5} parent=38 // pred_fallthru
        _
      // Predicated region
      $region44: #{reverse.5} parent=38 // pred_check
        _
      $region45: #{reverse.5} parent=38 // pred_check_branch
        %611 = sbr.rel target = $region47
      $region46: #{reverse.5} parent=38 // pred_region
        %s613 = ssub.s32 256, 1
        loop: start=0, step=1, limit=1
        $region48: #{reverse.5} parent=46 // loop_pre_header
          _
        $region49: #{reverse.5} parent=46 // loop_header
          %s615 = sphi 0, %s619
          %p616 = scmp.ge.s32.totalorder %s615, 1
          %s620 = sphi [#allocation1], [#allocation1]
          %s621 = sphi %s1, %s1
        $region50: #{reverse.5} parent=46 // loop_header_branch
          %618 = sbr.rel (%p616) target = $region54
        $region51: #{reverse.5} parent=46 // loop_body
          %v622 = vld [vmem:[%s620] sm:%s613]
          %623 = vst [vmem:[%s621] sm:%s613] %v622
          %v624 = vld [vmem:[%s620 + $0x8] sm:%s613]
          %625 = vst [vmem:[%s621 + $0x8] sm:%s613] %v624
          %v626 = vld [vmem:[%s620 + $0x10] sm:%s613]
          %627 = vst [vmem:[%s621 + $0x10] sm:%s613] %v626
          %v628 = vld [vmem:[%s620 + $0x18] sm:%s613]
          %629 = vst [vmem:[%s621 + $0x18] sm:%s613] %v628
          %v630 = vld [vmem:[%s620 + $0x20] sm:%s613]
          %631 = vst [vmem:[%s621 + $0x20] sm:%s613] %v630
          %v632 = vld [vmem:[%s620 + $0x28] sm:%s613]
          %633 = vst [vmem:[%s621 + $0x28] sm:%s613] %v632
          %v634 = vld [vmem:[%s620 + $0x30] sm:%s613]
          %635 = vst [vmem:[%s621 + $0x30] sm:%s613] %v634
          %v636 = vld [vmem:[%s620 + $0x38] sm:%s613]
          %637 = vst [vmem:[%s621 + $0x38] sm:%s613] %v636
          %v638 = vld [vmem:[%s620 + $0x40] sm:%s613]
          %639 = vst [vmem:[%s621 + $0x40] sm:%s613] %v638
          %v640 = vld [vmem:[%s620 + $0x48] sm:%s613]
          %641 = vst [vmem:[%s621 + $0x48] sm:%s613] %v640
          %v642 = vld [vmem:[%s620 + $0x50] sm:%s613]
          %643 = vst [vmem:[%s621 + $0x50] sm:%s613] %v642
          %v644 = vld [vmem:[%s620 + $0x58] sm:%s613]
          %645 = vst [vmem:[%s621 + $0x58] sm:%s613] %v644
          %v646 = vld [vmem:[%s620 + $0x60] sm:%s613]
          %647 = vst [vmem:[%s621 + $0x60] sm:%s613] %v646
          %v648 = vld [vmem:[%s620 + $0x68] sm:%s613]
          %649 = vst [vmem:[%s621 + $0x68] sm:%s613] %v648
          %v650 = vld [vmem:[%s620 + $0x70] sm:%s613]
          %651 = vst [vmem:[%s621 + $0x70] sm:%s613] %v650
          %v652 = vld [vmem:[%s620 + $0x78] sm:%s613]
          %653 = vst [vmem:[%s621 + $0x78] sm:%s613] %v652
          %v654 = vld [vmem:[%s620 + $0x80] sm:%s613]
          %655 = vst [vmem:[%s621 + $0x80] sm:%s613] %v654
          %v656 = vld [vmem:[%s620 + $0x88] sm:%s613]
          %657 = vst [vmem:[%s621 + $0x88] sm:%s613] %v656
          %v658 = vld [vmem:[%s620 + $0x90] sm:%s613]
          %659 = vst [vmem:[%s621 + $0x90] sm:%s613] %v658
          %v660 = vld [vmem:[%s620 + $0x98] sm:%s613]
          %661 = vst [vmem:[%s621 + $0x98] sm:%s613] %v660
          %v662 = vld [vmem:[%s620 + $0xa0] sm:%s613]
          %663 = vst [vmem:[%s621 + $0xa0] sm:%s613] %v662
          %v664 = vld [vmem:[%s620 + $0xa8] sm:%s613]
          %665 = vst [vmem:[%s621 + $0xa8] sm:%s613] %v664
          %v666 = vld [vmem:[%s620 + $0xb0] sm:%s613]
          %667 = vst [vmem:[%s621 + $0xb0] sm:%s613] %v666
          %v668 = vld [vmem:[%s620 + $0xb8] sm:%s613]
          %669 = vst [vmem:[%s621 + $0xb8] sm:%s613] %v668
          %v670 = vld [vmem:[%s620 + $0xc0] sm:%s613]
          %671 = vst [vmem:[%s621 + $0xc0] sm:%s613] %v670
          %v672 = vld [vmem:[%s620 + $0xc8] sm:%s613]
          %673 = vst [vmem:[%s621 + $0xc8] sm:%s613] %v672
          %v674 = vld [vmem:[%s620 + $0xd0] sm:%s613]
          %675 = vst [vmem:[%s621 + $0xd0] sm:%s613] %v674
          %v676 = vld [vmem:[%s620 + $0xd8] sm:%s613]
          %677 = vst [vmem:[%s621 + $0xd8] sm:%s613] %v676
          %v678 = vld [vmem:[%s620 + $0xe0] sm:%s613]
          %679 = vst [vmem:[%s621 + $0xe0] sm:%s613] %v678
          %v680 = vld [vmem:[%s620 + $0xe8] sm:%s613]
          %681 = vst [vmem:[%s621 + $0xe8] sm:%s613] %v680
          %v682 = vld [vmem:[%s620 + $0xf0] sm:%s613]
          %683 = vst [vmem:[%s621 + $0xf0] sm:%s613] %v682
          %v684 = vld [vmem:[%s620 + $0xf8] sm:%s613]
          %685 = vst [vmem:[%s621 + $0xf8] sm:%s613] %v684
        $region52: #{reverse.5} parent=46 // loop_footer
          %s619 = sadd.s32 1, %s615
        $region53: #{reverse.5} parent=46 // loop_footer_branch
          %614 = sbr.rel target = $region49
        $region54: #{reverse.5} parent=46 // loop_exit
          _
      $region47: #{reverse.5} parent=38 // pred_fallthru
        _
    $region39: #{reverse.5} parent=1 // pred_fallthru
      _
    %762 = vnop

// kernel: alpha_fno2d_forward.6
$region0: #{alpha_fno2d_forward.6}
  #allocation0 [shape = 'u32[]', space=smem, size = 0x4, offset = 0x4, fixed_abs, tag = 'smem constant byte address 0x4 - core index']
  #allocation1 [shape = 'u32[144,128]{1,0:T(1,128)}', space=vmem, size = 0x12000, scoped, tag = 'internal scratch']
  %s0 = inlined_call_operand.vmem [shape: f32[16,625], index: 0, kind: input, shape index: {}]
  %s1 = inlined_call_operand.vmem [shape: f32[16,625], index: 1, kind: input, shape index: {}]
  %s2 = inlined_call_operand.vmem [shape: f32[8,8], index: 2, kind: input, shape index: {}]
  %s3 = inlined_call_operand.vmem [shape: f32[8,1], index: 3, kind: input, shape index: {}]
  %s4 = inlined_call_operand.vmem [shape: f32[16,625], index: 4, kind: output, shape index: {}]
  %s5 = sld [smem:[#allocation0]]
  $region49: #{alpha_fno2d_forward.6} parent=0
    _
  %s7 = ssub.s32 1, %s5
  %s8 = scalar_select 0, %s7, %s5
  loop: start=0, step=1, limit=4
  $region2: #{alpha_fno2d_forward.6} parent=0 // loop_pre_header
    _
  $region3: #{alpha_fno2d_forward.6} parent=0 // loop_header
    %s10 = sphi 0, %s14
    %p11 = scmp.ge.s32.totalorder %s10, 4
    %s20 = sphi 0, %s22
    %s23 = sphi 0, %s20
    %s24 = sphi 0, %s23
    %s40 = sphi 0, %s24
    %s46 = sphi 0, %s48
    %s49 = sphi 0, %s46
    %s50 = sphi 0, %s49
    %s66 = sphi 0, %s50
    %s70 = sphi 0, %s70
    %s72 = sphi 0, %s70
    %s73 = sphi 0, %s72
    %s87 = sphi 0, %s73
    %s91 = sphi 0, %s91
    %s93 = sphi 0, %s91
    %s94 = sphi 0, %s93
    %s108 = sphi 0, %s94
    %s114 = sphi 0, %s116
    %s117 = sphi 0, %s114
    %s118 = sphi 0, %s117
    %s134 = sphi 0, %s118
  $region4: #{alpha_fno2d_forward.6} parent=0 // loop_header_branch
    %13 = sbr.rel (%p11) target = $region8
  $region5: #{alpha_fno2d_forward.6} parent=0 // loop_body
    %s15 = ssub.s32 %s10, 1
    %s16 = ssub.s32 %s10, 2
    %s17 = sadd.s32 %s10, 1
    %s18 = ssub.s32 %s10, %s17
    %p19 = scmp.eq.s32.totalorder %s18, 0
    %s21 = sadd.s32 %s20, 1
    %s22 = scalar_select %p19, %s20, %s21
    %p25 = pneg %p19
    %p26 = scmp.eq.s32.totalorder %s10, 1
    %p27 = por %p25, %p26
    %p28 = scmp.ne.s32.totalorder %s20, %s23
    %p29 = scmp.eq.s32.totalorder %s10, 0
    %p30 = por %p28, %p29
    %p31 = scmp.ne.s32.totalorder %s20, %s23
    %p32 = scmp.eq.s32.totalorder %s15, 1
    %p33 = por %p31, %p32
    %p34 = scmp.ne.s32.totalorder %s23, %s24
    %p35 = scmp.eq.s32.totalorder %s15, 0
    %p36 = por %p34, %p35
    %p37 = scmp.ne.s32.totalorder %s23, %s24
    %p38 = scmp.eq.s32.totalorder %s16, 1
    %p39 = por %p37, %p38
    %p41 = scmp.ne.s32.totalorder %s24, %s40
    %p42 = scmp.eq.s32.totalorder %s16, 0
    %p43 = por %p41, %p42
    %s44 = ssub.s32 %s10, %s17
    %p45 = scmp.eq.s32.totalorder %s44, 0
    %s47 = sadd.s32 %s46, 1
    %s48 = scalar_select %p45, %s46, %s47
    %p51 = pneg %p45
    %p52 = scmp.eq.s32.totalorder %s10, 1
    %p53 = por %p51, %p52
    %p54 = scmp.ne.s32.totalorder %s46, %s49
    %p55 = scmp.eq.s32.totalorder %s10, 0
    %p56 = por %p54, %p55
    %p57 = scmp.ne.s32.totalorder %s46, %s49
    %p58 = scmp.eq.s32.totalorder %s15, 1
    %p59 = por %p57, %p58
    %p60 = scmp.ne.s32.totalorder %s49, %s50
    %p61 = scmp.eq.s32.totalorder %s15, 0
    %p62 = por %p60, %p61
    %p63 = scmp.ne.s32.totalorder %s49, %s50
    %p64 = scmp.eq.s32.totalorder %s16, 1
    %p65 = por %p63, %p64
    %p67 = scmp.ne.s32.totalorder %s50, %s66
    %p68 = scmp.eq.s32.totalorder %s16, 0
    %p69 = por %p67, %p68
    %s71 = sadd.s32 %s70, 1
    %p74 = scmp.eq.s32.totalorder %s10, 1
    %p75 = scmp.ne.s32.totalorder %s70, %s72
    %p76 = scmp.eq.s32.totalorder %s10, 0
    %p77 = por %p75, %p76
    %p78 = scmp.ne.s32.totalorder %s70, %s72
    %p79 = scmp.eq.s32.totalorder %s15, 1
    %p80 = por %p78, %p79
    %p81 = scmp.ne.s32.totalorder %s72, %s73
    %p82 = scmp.eq.s32.totalorder %s15, 0
    %p83 = por %p81, %p82
    %p84 = scmp.ne.s32.totalorder %s72, %s73
    %p85 = scmp.eq.s32.totalorder %s16, 1
    %p86 = por %p84, %p85
    %p88 = scmp.ne.s32.totalorder %s73, %s87
    %p89 = scmp.eq.s32.totalorder %s16, 0
    %p90 = por %p88, %p89
    %s92 = sadd.s32 %s91, 1
    %p95 = scmp.eq.s32.totalorder %s10, 1
    %p96 = scmp.ne.s32.totalorder %s91, %s93
    %p97 = scmp.eq.s32.totalorder %s10, 0
    %p98 = por %p96, %p97
    %p99 = scmp.ne.s32.totalorder %s91, %s93
    %p100 = scmp.eq.s32.totalorder %s15, 1
    %p101 = por %p99, %p100
    %p102 = scmp.ne.s32.totalorder %s93, %s94
    %p103 = scmp.eq.s32.totalorder %s15, 0
    %p104 = por %p102, %p103
    %p105 = scmp.ne.s32.totalorder %s93, %s94
    %p106 = scmp.eq.s32.totalorder %s16, 1
    %p107 = por %p105, %p106
    %p109 = scmp.ne.s32.totalorder %s94, %s108
    %p110 = scmp.eq.s32.totalorder %s16, 0
    %p111 = por %p109, %p110
    %s112 = ssub.s32 %s10, %s17
    %p113 = scmp.eq.s32.totalorder %s112, 0
    %s115 = sadd.s32 %s114, 1
    %s116 = scalar_select %p113, %s114, %s115
    %p119 = pneg %p113
    %p120 = scmp.eq.s32.totalorder %s10, 1
    %p121 = por %p119, %p120
    %p122 = scmp.ne.s32.totalorder %s114, %s117
    %p123 = scmp.eq.s32.totalorder %s10, 0
    %p124 = por %p122, %p123
    %p125 = scmp.ne.s32.totalorder %s114, %s117
    %p126 = scmp.eq.s32.totalorder %s15, 1
    %p127 = por %p125, %p126
    %p128 = scmp.ne.s32.totalorder %s117, %s118
    %p129 = scmp.eq.s32.totalorder %s15, 0
    %p130 = por %p128, %p129
    %p131 = scmp.ne.s32.totalorder %s117, %s118
    %p132 = scmp.eq.s32.totalorder %s16, 1
    %p133 = por %p131, %p132
    %p135 = scmp.ne.s32.totalorder %s118, %s134
    %p136 = scmp.eq.s32.totalorder %s16, 0
    %p137 = por %p135, %p136
    %p138 = scmp.le.s32.totalorder 1, %s10
    %p139 = scmp.lt.s32.totalorder %s10, 3
    %p140 = pnand %p138, %p139
    %p141 = pneg %p140
    // Predicated region
    $region9: #{alpha_fno2d_forward.6} parent=5 // pred_check
      _
    $region10: #{alpha_fno2d_forward.6} parent=5 // pred_check_branch
      %143 = sbr.rel (%p140) target = $region12
    $region11: #{alpha_fno2d_forward.6} parent=5 // pred_region
      %s144 = ssub.s32 %s10, 1
      // Predicated region
      $region13: #{alpha_fno2d_forward.6} parent=11 // pred_check
        %p145 = pneg %p83
      $region14: #{alpha_fno2d_forward.6} parent=11 // pred_check_branch
        %147 = sbr.rel (%p145) target = $region16
      $region15: #{alpha_fno2d_forward.6} parent=11 // pred_region
        _
      $region16: #{alpha_fno2d_forward.6} parent=11 // pred_fallthru
        _
      // Predicated region
      $region17: #{alpha_fno2d_forward.6} parent=11 // pred_check
        %p148 = pneg %p104
      $region18: #{alpha_fno2d_forward.6} parent=11 // pred_check_branch
        %150 = sbr.rel (%p148) target = $region20
      $region19: #{alpha_fno2d_forward.6} parent=11 // pred_region
        _
      $region20: #{alpha_fno2d_forward.6} parent=11 // pred_fallthru
        _
    $region12: #{alpha_fno2d_forward.6} parent=5 // pred_fallthru
      _
    %p151 = scmp.lt.s32.totalorder %s10, 2
    // Predicated region
    $region21: #{alpha_fno2d_forward.6} parent=5 // pred_check
      %p152 = pneg %p151
    $region22: #{alpha_fno2d_forward.6} parent=5 // pred_check_branch
      %154 = sbr.rel (%p152) target = $region24
    $region23: #{alpha_fno2d_forward.6} parent=5 // pred_region
      // Predicated region
      $region25: #{alpha_fno2d_forward.6} parent=23 // pred_check
        %p155 = pneg %p30
      $region26: #{alpha_fno2d_forward.6} parent=23 // pred_check_branch
        %157 = sbr.rel (%p155) target = $region28
      $region27: #{alpha_fno2d_forward.6} parent=23 // pred_region
        %p158 = scmp.lt.s32.totalorder %s10, 1
        %s159 = scalar_select %p158, %s10, 1
        %s160 = smul.addr %s159, 5
        %s161 = smul.addr %s160, 8
        %s162 = scalar_lea.vmem %s0, %s161
      $region28: #{alpha_fno2d_forward.6} parent=23 // pred_fallthru
        _
      // Predicated region
      $region29: #{alpha_fno2d_forward.6} parent=23 // pred_check
        %p163 = pneg %p56
      $region30: #{alpha_fno2d_forward.6} parent=23 // pred_check_branch
        %165 = sbr.rel (%p163) target = $region32
      $region31: #{alpha_fno2d_forward.6} parent=23 // pred_region
        %p166 = scmp.lt.s32.totalorder %s10, 1
        %s167 = scalar_select %p166, %s10, 1
        %s168 = smul.addr %s167, 5
        %s169 = smul.addr %s168, 8
        %s170 = scalar_lea.vmem %s1, %s169
      $region32: #{alpha_fno2d_forward.6} parent=23 // pred_fallthru
        _
    $region24: #{alpha_fno2d_forward.6} parent=5 // pred_fallthru
      _
    %p171 = scmp.le.s32.totalorder 1, %s10
    %p172 = scmp.lt.s32.totalorder %s10, 3
    %p173 = pnand %p171, %p172
    %p174 = pneg %p173
    // Predicated region
    $region33: #{alpha_fno2d_forward.6} parent=5 // pred_check
      _
    $region34: #{alpha_fno2d_forward.6} parent=5 // pred_check_branch
      %176 = sbr.rel (%p173) target = $region36
    $region35: #{alpha_fno2d_forward.6} parent=5 // pred_region
      %s177 = ssub.s32 %s10, 1
      %p178 = scmp.lt.s32.totalorder %s15, 1
      %s179 = scalar_select %p178, %s15, 1
      %s180 = smul.addr %s179, 5
      %s181 = smul.addr %s180, 8
      %s182 = scalar_lea.vmem %s0, %s181
      %p183 = pneg %p36
      %p184 = pneg %p33
      %p185 = scmp.lt.s32.totalorder %s15, 1
      %s186 = scalar_select %p185, %s15, 1
      %s187 = smul.addr %s186, 5
      %s188 = smul.addr %s187, 8
      %s189 = scalar_lea.vmem %s1, %s188
      %p190 = pneg %p62
      %p191 = pneg %p59
      %p192 = pneg %p83
      %p193 = pneg %p80
      %p194 = pneg %p104
      %p195 = pneg %p101
      %p196 = pneg %p130
      %p197 = pneg %p127
      %p198 = scmp.lt.s32.totalorder %s15, 1
      %s199 = scalar_select %p198, %s15, 1
      %s200 = smul.addr %s199, 5
      %s201 = smul.addr %s200, 8
      %s202 = scalar_lea.vmem %s4, %s201
      %p203 = scmp.lt.s32.totalorder %s15, 1
      %s204 = scalar_select %p203, %s15, 1
      %s205 = smul.addr %s204, 5
      %s206 = smul.addr %s205, 8
      %s207 = scalar_lea.vmem %s0, %s206
      %p208 = scmp.lt.s32.totalorder %s15, 1
      %s209 = scalar_select %p208, %s15, 1
      %s210 = smul.addr %s209, 5
      %s211 = smul.addr %s210, 8
      %s212 = scalar_lea.vmem %s1, %s211
      %p213 = scmp.lt.s32.totalorder %s15, 1
      %s214 = scalar_select %p213, %s15, 1
      %s215 = smul.addr %s214, 5
      %s216 = smul.addr %s215, 8
      %s217 = scalar_lea.vmem %s4, %s216
      %v218 = vld [vmem:[%s207] sm:$0xff]
      %v219 = vld [vmem:[%s207 + $0x8] sm:$0xff]
      %v220 = vld [vmem:[%s207 + $0x10] sm:$0xff]
      %v221 = vld [vmem:[%s207 + $0x18] sm:$0xff]
      %v222 = vld [vmem:[%s207 + $0x20] sm:$0xff]
      %v223 = vld [vmem:[%s2] sm:$0xff]
      %v224 = vld [vmem:[%s212] sm:$0xff]
      %v225 = vld [vmem:[%s212 + $0x8] sm:$0xff]
      %v226 = vld [vmem:[%s212 + $0x10] sm:$0xff]
      %v227 = vld [vmem:[%s212 + $0x18] sm:$0xff]
      %v228 = vld [vmem:[%s212 + $0x20] sm:$0xff]
      %vm229 = vcmask 64512
      %v231 = vsel %vm229, %v223, 0
      %233 = vmatprep.subr.mxu0 0.0
      %234 = vmatpush1.msra.mxu0 0.0
      %235 = vmatprep.subr.mxu0 0.0
      %236 = vmatpush1.msra.mxu0 0.0
      %237 = vmatprep.subr.mxu0 0.0
      %238 = vmatpush1.msra.mxu0 0.0
      %239 = vmatprep.subr.mxu0 0.0
      %240 = vmatpush1.msra.mxu0 0.0
      %241 = vmatprep.subr.mxu0 0.0
      %242 = vmatpush1.msra.mxu0 0.0
      %243 = vmatprep.subr.mxu0 0.0
      %244 = vmatpush1.msra.mxu0 0.0
      %245 = vmatprep.subr.mxu0 0.0
      %246 = vmatpush1.msra.mxu0 0.0
      %247 = vmatprep.subr.mxu0 0.0
      %248 = vmatpush1.msra.mxu0 0.0
      %249 = vmatprep.subr.mxu0 0.0
      %250 = vmatpush1.msra.mxu0 0.0
      %251 = vmatprep.subr.mxu0 0.0
      %252 = vmatpush1.msra.mxu0 0.0
      %253 = vmatprep.subr.mxu0 0.0
      %254 = vmatpush1.msra.mxu0 0.0
      %255 = vmatprep.subr.mxu0 0.0
      %256 = vmatpush1.msra.mxu0 0.0
      %257 = vmatprep.subr.mxu0 0.0
      %258 = vmatpush1.msra.mxu0 0.0
      %259 = vmatprep.subr.mxu0 0.0
      %260 = vmatpush1.msra.mxu0 0.0
      %261 = vmatprep.subr.mxu0 0.0
      %262 = vmatpush1.msra.mxu0 0.0
      %263 = vmatprep.subr.mxu0 %v225
      %264 = vmatpush1.msra.mxu0 %v224
      %265 = vmatprep.subr.mxu0 0.0
      %266 = vmatpush2.msra.mxu0 0.0
      %267 = vmatprep.subr.mxu0 0.0
      %268 = vmatpush2.msra.mxu0 0.0
      %269 = vmatprep.subr.mxu0 0.0
      %270 = vmatpush2.msra.mxu0 0.0
      %271 = vmatprep.subr.mxu0 0.0
      %272 = vmatpush2.msra.mxu0 0.0
      %273 = vmatprep.subr.mxu0 0.0
      %274 = vmatpush2.msra.mxu0 0.0
      %275 = vmatprep.subr.mxu0 0.0
      %276 = vmatpush2.msra.mxu0 0.0
      %277 = vmatprep.subr.mxu0 0.0
      %278 = vmatpush2.msra.mxu0 0.0
      %279 = vmatprep.subr.mxu0 0.0
      %280 = vmatpush2.msra.mxu0 0.0
      %281 = vmatprep.subr.mxu0 0.0
      %282 = vmatpush2.msra.mxu0 0.0
      %283 = vmatprep.subr.mxu0 0.0
      %284 = vmatpush2.msra.mxu0 0.0
      %285 = vmatprep.subr.mxu0 0.0
      %286 = vmatpush2.msra.mxu0 0.0
      %287 = vmatprep.subr.mxu0 0.0
      %288 = vmatpush2.msra.mxu0 0.0
      %289 = vmatprep.subr.mxu0 0.0
      %290 = vmatpush2.msra.mxu0 0.0
      %291 = vmatprep.subr.mxu0 0.0
      %292 = vmatpush2.msra.mxu0 0.0
      %293 = vmatprep.subr.mxu0 0.0
      %294 = vmatpush2.msra.mxu0 0.0
      %295 = vmatprep.subr.mxu0 0.0
      %296 = vmatpush2.msra.mxu0 0.0
      %297 = vmatprep.mubr.f32.mxu0 0.0
      %298 = vmatmul.mubr.f32.gmra.mxu0 %v231
      %v299 = vpop.f32.mrf.mxu0
      %v300 = vadd.f32 0.0, %v299
      %v301 = vpop.f32.mrf.mxu0
      %v302 = vadd.f32 0.0, %v301
      %303 = vdwg.mxu0
      %304 = vmatprep.subr.mxu0 0.0
      %305 = vmatpush1.msra.mxu0 0.0
      %306 = vmatprep.subr.mxu0 0.0
      %307 = vmatpush1.msra.mxu0 0.0
      %308 = vmatprep.subr.mxu0 0.0
      %309 = vmatpush1.msra.mxu0 0.0
      %310 = vmatprep.subr.mxu0 0.0
      %311 = vmatpush1.msra.mxu0 0.0
      %312 = vmatprep.subr.mxu0 0.0
      %313 = vmatpush1.msra.mxu0 0.0
      %314 = vmatprep.subr.mxu0 0.0
      %315 = vmatpush1.msra.mxu0 0.0
      %316 = vmatprep.subr.mxu0 0.0
      %317 = vmatpush1.msra.mxu0 0.0
      %318 = vmatprep.subr.mxu0 0.0
      %319 = vmatpush1.msra.mxu0 0.0
      %320 = vmatprep.subr.mxu0 0.0
      %321 = vmatpush1.msra.mxu0 0.0
      %322 = vmatprep.subr.mxu0 0.0
      %323 = vmatpush1.msra.mxu0 0.0
      %324 = vmatprep.subr.mxu0 0.0
      %325 = vmatpush1.msra.mxu0 0.0
      %326 = vmatprep.subr.mxu0 0.0
      %327 = vmatpush1.msra.mxu0 0.0
      %328 = vmatprep.subr.mxu0 0.0
      %329 = vmatpush1.msra.mxu0 0.0
      %330 = vmatprep.subr.mxu0 0.0
      %331 = vmatpush1.msra.mxu0 0.0
      %332 = vmatprep.subr.mxu0 0.0
      %333 = vmatpush1.msra.mxu0 0.0
      %334 = vmatprep.subr.mxu0 %v227
      %335 = vmatpush1.msra.mxu0 %v226
      %336 = vmatprep.subr.mxu0 0.0
      %337 = vmatpush2.msra.mxu0 0.0
      %338 = vmatprep.subr.mxu0 0.0
      %339 = vmatpush2.msra.mxu0 0.0
      %340 = vmatprep.subr.mxu0 0.0
      %341 = vmatpush2.msra.mxu0 0.0
      %342 = vmatprep.subr.mxu0 0.0
      %343 = vmatpush2.msra.mxu0 0.0
      %344 = vmatprep.subr.mxu0 0.0
      %345 = vmatpush2.msra.mxu0 0.0
      %346 = vmatprep.subr.mxu0 0.0
      %347 = vmatpush2.msra.mxu0 0.0
      %348 = vmatprep.subr.mxu0 0.0
      %349 = vmatpush2.msra.mxu0 0.0
      %350 = vmatprep.subr.mxu0 0.0
      %351 = vmatpush2.msra.mxu0 0.0
      %352 = vmatprep.subr.mxu0 0.0
      %353 = vmatpush2.msra.mxu0 0.0
      %354 = vmatprep.subr.mxu0 0.0
      %355 = vmatpush2.msra.mxu0 0.0
      %356 = vmatprep.subr.mxu0 0.0
      %357 = vmatpush2.msra.mxu0 0.0
      %358 = vmatprep.subr.mxu0 0.0
      %359 = vmatpush2.msra.mxu0 0.0
      %360 = vmatprep.subr.mxu0 0.0
      %361 = vmatpush2.msra.mxu0 0.0
      %362 = vmatprep.subr.mxu0 0.0
      %363 = vmatpush2.msra.mxu0 0.0
      %364 = vmatprep.subr.mxu0 0.0
      %365 = vmatpush2.msra.mxu0 0.0
      %366 = vmatprep.subr.mxu0 0.0
      %367 = vmatpush2.msra.mxu0 0.0
      %368 = vmatprep.mubr.f32.mxu0 0.0
      %369 = vmatmul.mubr.f32.gmra.mxu0 %v231
      %v370 = vpop.f32.mrf.mxu0
      %v371 = vadd.f32 0.0, %v370
      %v372 = vpop.f32.mrf.mxu0
      %v373 = vadd.f32 0.0, %v372
      %374 = vdwg.mxu0
      %375 = vmatprep.subr.mxu0 0.0
      %376 = vmatpush1.msra.mxu0 0.0
      %377 = vmatprep.subr.mxu0 0.0
      %378 = vmatpush1.msra.mxu0 0.0
      %379 = vmatprep.subr.mxu0 0.0
      %380 = vmatpush1.msra.mxu0 0.0
      %381 = vmatprep.subr.mxu0 0.0
      %382 = vmatpush1.msra.mxu0 0.0
      %383 = vmatprep.subr.mxu0 0.0
      %384 = vmatpush1.msra.mxu0 0.0
      %385 = vmatprep.subr.mxu0 0.0
      %386 = vmatpush1.msra.mxu0 0.0
      %387 = vmatprep.subr.mxu0 0.0
      %388 = vmatpush1.msra.mxu0 0.0
      %389 = vmatprep.subr.mxu0 0.0
      %390 = vmatpush1.msra.mxu0 0.0
      %391 = vmatprep.subr.mxu0 0.0
      %392 = vmatpush1.msra.mxu0 0.0
      %393 = vmatprep.subr.mxu0 0.0
      %394 = vmatpush1.msra.mxu0 0.0
      %395 = vmatprep.subr.mxu0 0.0
      %396 = vmatpush1.msra.mxu0 0.0
      %397 = vmatprep.subr.mxu0 0.0
      %398 = vmatpush1.msra.mxu0 0.0
      %399 = vmatprep.subr.mxu0 0.0
      %400 = vmatpush1.msra.mxu0 0.0
      %401 = vmatprep.subr.mxu0 0.0
      %402 = vmatpush1.msra.mxu0 0.0
      %403 = vmatprep.subr.mxu0 0.0
      %404 = vmatpush1.msra.mxu0 0.0
      %405 = vmatprep.subr.mxu0 0.0
      %406 = vmatpush1.msra.mxu0 %v228
      %407 = vmatprep.subr.mxu0 0.0
      %408 = vmatpush2.msra.mxu0 0.0
      %409 = vmatprep.subr.mxu0 0.0
      %410 = vmatpush2.msra.mxu0 0.0
      %411 = vmatprep.subr.mxu0 0.0
      %412 = vmatpush2.msra.mxu0 0.0
      %413 = vmatprep.subr.mxu0 0.0
      %414 = vmatpush2.msra.mxu0 0.0
      %415 = vmatprep.subr.mxu0 0.0
      %416 = vmatpush2.msra.mxu0 0.0
      %417 = vmatprep.subr.mxu0 0.0
      %418 = vmatpush2.msra.mxu0 0.0
      %419 = vmatprep.subr.mxu0 0.0
      %420 = vmatpush2.msra.mxu0 0.0
      %421 = vmatprep.subr.mxu0 0.0
      %422 = vmatpush2.msra.mxu0 0.0
      %423 = vmatprep.subr.mxu0 0.0
      %424 = vmatpush2.msra.mxu0 0.0
      %425 = vmatprep.subr.mxu0 0.0
      %426 = vmatpush2.msra.mxu0 0.0
      %427 = vmatprep.subr.mxu0 0.0
      %428 = vmatpush2.msra.mxu0 0.0
      %429 = vmatprep.subr.mxu0 0.0
      %430 = vmatpush2.msra.mxu0 0.0
      %431 = vmatprep.subr.mxu0 0.0
      %432 = vmatpush2.msra.mxu0 0.0
      %433 = vmatprep.subr.mxu0 0.0
      %434 = vmatpush2.msra.mxu0 0.0
      %435 = vmatprep.subr.mxu0 0.0
      %436 = vmatpush2.msra.mxu0 0.0
      %437 = vmatprep.subr.mxu0 0.0
      %438 = vmatpush2.msra.mxu0 0.0
      %439 = vmatprep.mubr.f32.mxu0 0.0
      %440 = vmatmul.mubr.f32.gmra.mxu0 %v231
      %v441 = vpop.f32.mrf.mxu0
      %v442 = vadd.f32 0.0, %v441
      %v443 = vpop.f32.mrf.mxu0
      %444 = vdwg.mxu0
      %v445 = vadd.f32 %v218, %v300
      %v446 = vadd.f32 %v219, %v302
      %v447 = vadd.f32 %v220, %v371
      %v448 = vadd.f32 %v221, %v373
      %v449 = vadd.f32 %v222, %v442
      %v450 = vld [vmem:[%s3] sm:$0xff]
      %452 = vset.pattern.permute.xlu0 0
      %453 = vperm.xlu0 %452, %v450
      %v454 = vpop.permute.xlu0 %453
      %v456 = vadd.f32 %v445, %v454
      %v457 = vadd.f32 %v446, %v454
      %v458 = vadd.f32 %v447, %v454
      %v459 = vadd.f32 %v448, %v454
      %v460 = vadd.f32 %v449, %v454
      %v461 = vtanh.pop %v456
      %v462 = vtanh.pop %v457
      %v463 = vtanh.pop %v458
      %v464 = vtanh.pop %v459
      %v465 = vtanh.pop %v460
      %466 = vst [vmem:[%s217] sm:$0xff] %v461
      %467 = vst [vmem:[%s217 + $0x8] sm:$0xff] %v462
      %468 = vst [vmem:[%s217 + $0x10] sm:$0xff] %v463
      %469 = vst [vmem:[%s217 + $0x18] sm:$0xff] %v464
      %vm470 = vcmask 924672
      %471 = vst.msk [vmem:[%s217 + $0x20] sm:$0xff] %vm470, %v465
      %p472 = scmp.lt.s32.totalorder %s15, 1
      %s473 = scalar_select %p472, %s15, 1
      %s474 = smul.addr %s473, 5
      %s475 = smul.addr %s474, 8
      %s476 = scalar_lea.vmem %s4, %s475
      // Predicated region
      $region37: #{alpha_fno2d_forward.6} parent=35 // pred_check
        %p477 = pneg %p127
      $region38: #{alpha_fno2d_forward.6} parent=35 // pred_check_branch
        %479 = sbr.rel (%p477) target = $region40
      $region39: #{alpha_fno2d_forward.6} parent=35 // pred_region
        _
      $region40: #{alpha_fno2d_forward.6} parent=35 // pred_fallthru
        _
    $region36: #{alpha_fno2d_forward.6} parent=5 // pred_fallthru
      _
    %p480 = scmp.le.s32.totalorder 2, %s10
    // Predicated region
    $region41: #{alpha_fno2d_forward.6} parent=5 // pred_check
      %p481 = pneg %p480
    $region42: #{alpha_fno2d_forward.6} parent=5 // pred_check_branch
      %483 = sbr.rel (%p481) target = $region44
    $region43: #{alpha_fno2d_forward.6} parent=5 // pred_region
      %s484 = ssub.s32 %s10, 2
      // Predicated region
      $region45: #{alpha_fno2d_forward.6} parent=43 // pred_check
        %p485 = pneg %p133
      $region46: #{alpha_fno2d_forward.6} parent=43 // pred_check_branch
        %487 = sbr.rel (%p485) target = $region48
      $region47: #{alpha_fno2d_forward.6} parent=43 // pred_region
        %p488 = scmp.lt.s32.totalorder %s16, 1
        %s489 = scalar_select %p488, %s16, 1
        %s490 = smul.addr %s489, 5
        %s491 = smul.addr %s490, 8
        %s492 = scalar_lea.vmem %s4, %s491
      $region48: #{alpha_fno2d_forward.6} parent=43 // pred_fallthru
        _
    $region44: #{alpha_fno2d_forward.6} parent=5 // pred_fallthru
      _
  $region6: #{alpha_fno2d_forward.6} parent=0 // loop_footer
    %s14 = sadd.s32 1, %s10
  $region7: #{alpha_fno2d_forward.6} parent=0 // loop_footer_branch
    %9 = sbr.rel target = $region3
  $region8: #{alpha_fno2d_forward.6} parent=0 // loop_exit
    _

// kernel: alpha_fno2d_forward.8
$region0: #{alpha_fno2d_forward.8}
  #allocation0 [shape = 'u32[]', space=smem, size = 0x4, offset = 0x4, fixed_abs, tag = 'smem constant byte address 0x4 - core index']
  #allocation1 [shape = 'u32[144,128]{1,0:T(1,128)}', space=vmem, size = 0x12000, scoped, tag = 'internal scratch']
  %s0 = inlined_call_operand.vmem [shape: f32[16,625], index: 0, kind: input, shape index: {}]
  %s1 = inlined_call_operand.vmem [shape: f32[16,625], index: 1, kind: input, shape index: {}]
  %s2 = inlined_call_operand.vmem [shape: f32[8,8], index: 2, kind: input, shape index: {}]
  %s3 = inlined_call_operand.vmem [shape: f32[8,1], index: 3, kind: input, shape index: {}]
  %s4 = inlined_call_operand.vmem [shape: f32[16,625], index: 4, kind: output, shape index: {0}]
  %s5 = inlined_call_operand.vmem [shape: f32[2,8,1], index: 5, kind: output, shape index: {1}]
  %s6 = inlined_call_operand.vmem [shape: f32[2,8,1], index: 6, kind: output, shape index: {2}]
  %7 = xla_tuple %s4, %s5, %s6
  %s8 = sld [smem:[#allocation0]]
  $region65: #{alpha_fno2d_forward.8} parent=0
    _
  %s10 = ssub.s32 1, %s8
  %s11 = scalar_select 0, %s10, %s8
  loop: start=0, step=1, limit=4
  $region2: #{alpha_fno2d_forward.8} parent=0 // loop_pre_header
    _
  $region3: #{alpha_fno2d_forward.8} parent=0 // loop_header
    %s13 = sphi 0, %s17
    %p14 = scmp.ge.s32.totalorder %s13, 4
    %s23 = sphi 0, %s25
    %s26 = sphi 0, %s23
    %s27 = sphi 0, %s26
    %s43 = sphi 0, %s27
    %s49 = sphi 0, %s51
    %s52 = sphi 0, %s49
    %s53 = sphi 0, %s52
    %s69 = sphi 0, %s53
    %s73 = sphi 0, %s73
    %s75 = sphi 0, %s73
    %s76 = sphi 0, %s75
    %s90 = sphi 0, %s76
    %s94 = sphi 0, %s94
    %s96 = sphi 0, %s94
    %s97 = sphi 0, %s96
    %s111 = sphi 0, %s97
    %s117 = sphi 0, %s119
    %s120 = sphi 0, %s117
    %s121 = sphi 0, %s120
    %s137 = sphi 0, %s121
    %s143 = sphi 0, %s145
    %s146 = sphi 0, %s143
    %s147 = sphi 0, %s146
    %s163 = sphi 0, %s147
    %s169 = sphi 0, %s171
    %s172 = sphi 0, %s169
    %s173 = sphi 0, %s172
    %s189 = sphi 0, %s173
  $region4: #{alpha_fno2d_forward.8} parent=0 // loop_header_branch
    %16 = sbr.rel (%p14) target = $region8
  $region5: #{alpha_fno2d_forward.8} parent=0 // loop_body
    %s18 = ssub.s32 %s13, 1
    %s19 = ssub.s32 %s13, 2
    %s20 = sadd.s32 %s13, 1
    %s21 = ssub.s32 %s13, %s20
    %p22 = scmp.eq.s32.totalorder %s21, 0
    %s24 = sadd.s32 %s23, 1
    %s25 = scalar_select %p22, %s23, %s24
    %p28 = pneg %p22
    %p29 = scmp.eq.s32.totalorder %s13, 1
    %p30 = por %p28, %p29
    %p31 = scmp.ne.s32.totalorder %s23, %s26
    %p32 = scmp.eq.s32.totalorder %s13, 0
    %p33 = por %p31, %p32
    %p34 = scmp.ne.s32.totalorder %s23, %s26
    %p35 = scmp.eq.s32.totalorder %s18, 1
    %p36 = por %p34, %p35
    %p37 = scmp.ne.s32.totalorder %s26, %s27
    %p38 = scmp.eq.s32.totalorder %s18, 0
    %p39 = por %p37, %p38
    %p40 = scmp.ne.s32.totalorder %s26, %s27
    %p41 = scmp.eq.s32.totalorder %s19, 1
    %p42 = por %p40, %p41
    %p44 = scmp.ne.s32.totalorder %s27, %s43
    %p45 = scmp.eq.s32.totalorder %s19, 0
    %p46 = por %p44, %p45
    %s47 = ssub.s32 %s13, %s20
    %p48 = scmp.eq.s32.totalorder %s47, 0
    %s50 = sadd.s32 %s49, 1
    %s51 = scalar_select %p48, %s49, %s50
    %p54 = pneg %p48
    %p55 = scmp.eq.s32.totalorder %s13, 1
    %p56 = por %p54, %p55
    %p57 = scmp.ne.s32.totalorder %s49, %s52
    %p58 = scmp.eq.s32.totalorder %s13, 0
    %p59 = por %p57, %p58
    %p60 = scmp.ne.s32.totalorder %s49, %s52
    %p61 = scmp.eq.s32.totalorder %s18, 1
    %p62 = por %p60, %p61
    %p63 = scmp.ne.s32.totalorder %s52, %s53
    %p64 = scmp.eq.s32.totalorder %s18, 0
    %p65 = por %p63, %p64
    %p66 = scmp.ne.s32.totalorder %s52, %s53
    %p67 = scmp.eq.s32.totalorder %s19, 1
    %p68 = por %p66, %p67
    %p70 = scmp.ne.s32.totalorder %s53, %s69
    %p71 = scmp.eq.s32.totalorder %s19, 0
    %p72 = por %p70, %p71
    %s74 = sadd.s32 %s73, 1
    %p77 = scmp.eq.s32.totalorder %s13, 1
    %p78 = scmp.ne.s32.totalorder %s73, %s75
    %p79 = scmp.eq.s32.totalorder %s13, 0
    %p80 = por %p78, %p79
    %p81 = scmp.ne.s32.totalorder %s73, %s75
    %p82 = scmp.eq.s32.totalorder %s18, 1
    %p83 = por %p81, %p82
    %p84 = scmp.ne.s32.totalorder %s75, %s76
    %p85 = scmp.eq.s32.totalorder %s18, 0
    %p86 = por %p84, %p85
    %p87 = scmp.ne.s32.totalorder %s75, %s76
    %p88 = scmp.eq.s32.totalorder %s19, 1
    %p89 = por %p87, %p88
    %p91 = scmp.ne.s32.totalorder %s76, %s90
    %p92 = scmp.eq.s32.totalorder %s19, 0
    %p93 = por %p91, %p92
    %s95 = sadd.s32 %s94, 1
    %p98 = scmp.eq.s32.totalorder %s13, 1
    %p99 = scmp.ne.s32.totalorder %s94, %s96
    %p100 = scmp.eq.s32.totalorder %s13, 0
    %p101 = por %p99, %p100
    %p102 = scmp.ne.s32.totalorder %s94, %s96
    %p103 = scmp.eq.s32.totalorder %s18, 1
    %p104 = por %p102, %p103
    %p105 = scmp.ne.s32.totalorder %s96, %s97
    %p106 = scmp.eq.s32.totalorder %s18, 0
    %p107 = por %p105, %p106
    %p108 = scmp.ne.s32.totalorder %s96, %s97
    %p109 = scmp.eq.s32.totalorder %s19, 1
    %p110 = por %p108, %p109
    %p112 = scmp.ne.s32.totalorder %s97, %s111
    %p113 = scmp.eq.s32.totalorder %s19, 0
    %p114 = por %p112, %p113
    %s115 = ssub.s32 %s13, %s20
    %p116 = scmp.eq.s32.totalorder %s115, 0
    %s118 = sadd.s32 %s117, 1
    %s119 = scalar_select %p116, %s117, %s118
    %p122 = pneg %p116
    %p123 = scmp.eq.s32.totalorder %s13, 1
    %p124 = por %p122, %p123
    %p125 = scmp.ne.s32.totalorder %s117, %s120
    %p126 = scmp.eq.s32.totalorder %s13, 0
    %p127 = por %p125, %p126
    %p128 = scmp.ne.s32.totalorder %s117, %s120
    %p129 = scmp.eq.s32.totalorder %s18, 1
    %p130 = por %p128, %p129
    %p131 = scmp.ne.s32.totalorder %s120, %s121
    %p132 = scmp.eq.s32.totalorder %s18, 0
    %p133 = por %p131, %p132
    %p134 = scmp.ne.s32.totalorder %s120, %s121
    %p135 = scmp.eq.s32.totalorder %s19, 1
    %p136 = por %p134, %p135
    %p138 = scmp.ne.s32.totalorder %s121, %s137
    %p139 = scmp.eq.s32.totalorder %s19, 0
    %p140 = por %p138, %p139
    %s141 = ssub.s32 %s13, %s20
    %p142 = scmp.eq.s32.totalorder %s141, 0
    %s144 = sadd.s32 %s143, 1
    %s145 = scalar_select %p142, %s143, %s144
    %p148 = pneg %p142
    %p149 = scmp.eq.s32.totalorder %s13, 1
    %p150 = por %p148, %p149
    %p151 = scmp.ne.s32.totalorder %s143, %s146
    %p152 = scmp.eq.s32.totalorder %s13, 0
    %p153 = por %p151, %p152
    %p154 = scmp.ne.s32.totalorder %s143, %s146
    %p155 = scmp.eq.s32.totalorder %s18, 1
    %p156 = por %p154, %p155
    %p157 = scmp.ne.s32.totalorder %s146, %s147
    %p158 = scmp.eq.s32.totalorder %s18, 0
    %p159 = por %p157, %p158
    %p160 = scmp.ne.s32.totalorder %s146, %s147
    %p161 = scmp.eq.s32.totalorder %s19, 1
    %p162 = por %p160, %p161
    %p164 = scmp.ne.s32.totalorder %s147, %s163
    %p165 = scmp.eq.s32.totalorder %s19, 0
    %p166 = por %p164, %p165
    %s167 = ssub.s32 %s13, %s20
    %p168 = scmp.eq.s32.totalorder %s167, 0
    %s170 = sadd.s32 %s169, 1
    %s171 = scalar_select %p168, %s169, %s170
    %p174 = pneg %p168
    %p175 = scmp.eq.s32.totalorder %s13, 1
    %p176 = por %p174, %p175
    %p177 = scmp.ne.s32.totalorder %s169, %s172
    %p178 = scmp.eq.s32.totalorder %s13, 0
    %p179 = por %p177, %p178
    %p180 = scmp.ne.s32.totalorder %s169, %s172
    %p181 = scmp.eq.s32.totalorder %s18, 1
    %p182 = por %p180, %p181
    %p183 = scmp.ne.s32.totalorder %s172, %s173
    %p184 = scmp.eq.s32.totalorder %s18, 0
    %p185 = por %p183, %p184
    %p186 = scmp.ne.s32.totalorder %s172, %s173
    %p187 = scmp.eq.s32.totalorder %s19, 1
    %p188 = por %p186, %p187
    %p190 = scmp.ne.s32.totalorder %s173, %s189
    %p191 = scmp.eq.s32.totalorder %s19, 0
    %p192 = por %p190, %p191
    %p193 = scmp.le.s32.totalorder 1, %s13
    %p194 = scmp.lt.s32.totalorder %s13, 3
    %p195 = pnand %p193, %p194
    %p196 = pneg %p195
    // Predicated region
    $region9: #{alpha_fno2d_forward.8} parent=5 // pred_check
      _
    $region10: #{alpha_fno2d_forward.8} parent=5 // pred_check_branch
      %198 = sbr.rel (%p195) target = $region12
    $region11: #{alpha_fno2d_forward.8} parent=5 // pred_region
      %s199 = ssub.s32 %s13, 1
      // Predicated region
      $region13: #{alpha_fno2d_forward.8} parent=11 // pred_check
        %p200 = pneg %p86
      $region14: #{alpha_fno2d_forward.8} parent=11 // pred_check_branch
        %202 = sbr.rel (%p200) target = $region16
      $region15: #{alpha_fno2d_forward.8} parent=11 // pred_region
        _
      $region16: #{alpha_fno2d_forward.8} parent=11 // pred_fallthru
        _
      // Predicated region
      $region17: #{alpha_fno2d_forward.8} parent=11 // pred_check
        %p203 = pneg %p107
      $region18: #{alpha_fno2d_forward.8} parent=11 // pred_check_branch
        %205 = sbr.rel (%p203) target = $region20
      $region19: #{alpha_fno2d_forward.8} parent=11 // pred_region
        _
      $region20: #{alpha_fno2d_forward.8} parent=11 // pred_fallthru
        _
    $region12: #{alpha_fno2d_forward.8} parent=5 // pred_fallthru
      _
    %p206 = scmp.lt.s32.totalorder %s13, 2
    // Predicated region
    $region21: #{alpha_fno2d_forward.8} parent=5 // pred_check
      %p207 = pneg %p206
    $region22: #{alpha_fno2d_forward.8} parent=5 // pred_check_branch
      %209 = sbr.rel (%p207) target = $region24
    $region23: #{alpha_fno2d_forward.8} parent=5 // pred_region
      // Predicated region
      $region25: #{alpha_fno2d_forward.8} parent=23 // pred_check
        %p210 = pneg %p33
      $region26: #{alpha_fno2d_forward.8} parent=23 // pred_check_branch
        %212 = sbr.rel (%p210) target = $region28
      $region27: #{alpha_fno2d_forward.8} parent=23 // pred_region
        %p213 = scmp.lt.s32.totalorder %s13, 1
        %s214 = scalar_select %p213, %s13, 1
        %s215 = smul.addr %s214, 5
        %s216 = smul.addr %s215, 8
        %s217 = scalar_lea.vmem %s0, %s216
      $region28: #{alpha_fno2d_forward.8} parent=23 // pred_fallthru
        _
      // Predicated region
      $region29: #{alpha_fno2d_forward.8} parent=23 // pred_check
        %p218 = pneg %p59
      $region30: #{alpha_fno2d_forward.8} parent=23 // pred_check_branch
        %220 = sbr.rel (%p218) target = $region32
      $region31: #{alpha_fno2d_forward.8} parent=23 // pred_region
        %p221 = scmp.lt.s32.totalorder %s13, 1
        %s222 = scalar_select %p221, %s13, 1
        %s223 = smul.addr %s222, 5
        %s224 = smul.addr %s223, 8
        %s225 = scalar_lea.vmem %s1, %s224
      $region32: #{alpha_fno2d_forward.8} parent=23 // pred_fallthru
        _
    $region24: #{alpha_fno2d_forward.8} parent=5 // pred_fallthru
      _
    %p226 = scmp.le.s32.totalorder 1, %s13
    %p227 = scmp.lt.s32.totalorder %s13, 3
    %p228 = pnand %p226, %p227
    %p229 = pneg %p228
    // Predicated region
    $region33: #{alpha_fno2d_forward.8} parent=5 // pred_check
      _
    $region34: #{alpha_fno2d_forward.8} parent=5 // pred_check_branch
      %231 = sbr.rel (%p228) target = $region36
    $region35: #{alpha_fno2d_forward.8} parent=5 // pred_region
      %s232 = ssub.s32 %s13, 1
      %p233 = scmp.lt.s32.totalorder %s18, 1
      %s234 = scalar_select %p233, %s18, 1
      %s235 = smul.addr %s234, 5
      %s236 = smul.addr %s235, 8
      %s237 = scalar_lea.vmem %s0, %s236
      %p238 = pneg %p39
      %p239 = pneg %p36
      %p240 = scmp.lt.s32.totalorder %s18, 1
      %s241 = scalar_select %p240, %s18, 1
      %s242 = smul.addr %s241, 5
      %s243 = smul.addr %s242, 8
      %s244 = scalar_lea.vmem %s1, %s243
      %p245 = pneg %p65
      %p246 = pneg %p62
      %p247 = pneg %p86
      %p248 = pneg %p83
      %p249 = pneg %p107
      %p250 = pneg %p104
      %p251 = pneg %p133
      %p252 = pneg %p130
      %p253 = scmp.lt.s32.totalorder %s18, 1
      %s254 = scalar_select %p253, %s18, 1
      %s255 = smul.addr %s254, 5
      %s256 = smul.addr %s255, 8
      %s257 = scalar_lea.vmem %s4, %s256
      %p258 = pneg %p159
      %p259 = pneg %p156
      %p260 = scmp.lt.s32.totalorder %s18, 1
      %s261 = scalar_select %p260, %s18, 1
      %s262 = smul.addr %s261, 8
      %s263 = scalar_lea.vmem %s5, %s262
      %p264 = pneg %p185
      %p265 = pneg %p182
      %p266 = scmp.lt.s32.totalorder %s18, 1
      %s267 = scalar_select %p266, %s18, 1
      %s268 = smul.addr %s267, 8
      %s269 = scalar_lea.vmem %s6, %s268
      %p270 = scmp.lt.s32.totalorder %s18, 1
      %s271 = scalar_select %p270, %s18, 1
      %s272 = smul.addr %s271, 5
      %s273 = smul.addr %s272, 8
      %s274 = scalar_lea.vmem %s0, %s273
      %p275 = scmp.lt.s32.totalorder %s18, 1
      %s276 = scalar_select %p275, %s18, 1
      %s277 = smul.addr %s276, 5
      %s278 = smul.addr %s277, 8
      %s279 = scalar_lea.vmem %s1, %s278
      %p280 = scmp.lt.s32.totalorder %s18, 1
      %s281 = scalar_select %p280, %s18, 1
      %s282 = smul.addr %s281, 5
      %s283 = smul.addr %s282, 8
      %s284 = scalar_lea.vmem %s4, %s283
      %p285 = scmp.lt.s32.totalorder %s18, 1
      %s286 = scalar_select %p285, %s18, 1
      %s287 = smul.addr %s286, 8
      %s288 = scalar_lea.vmem %s5, %s287
      %p289 = scmp.lt.s32.totalorder %s18, 1
      %s290 = scalar_select %p289, %s18, 1
      %s291 = smul.addr %s290, 8
      %s292 = scalar_lea.vmem %s6, %s291
      %v293 = vld [vmem:[%s274] sm:$0xff]
      %v294 = vld [vmem:[%s274 + $0x8] sm:$0xff]
      %v295 = vld [vmem:[%s274 + $0x10] sm:$0xff]
      %v296 = vld [vmem:[%s274 + $0x18] sm:$0xff]
      %v297 = vld [vmem:[%s274 + $0x20] sm:$0xff]
      %v298 = vld [vmem:[%s2] sm:$0xff]
      %v299 = vld [vmem:[%s279] sm:$0xff]
      %v300 = vld [vmem:[%s279 + $0x8] sm:$0xff]
      %v301 = vld [vmem:[%s279 + $0x10] sm:$0xff]
      %v302 = vld [vmem:[%s279 + $0x18] sm:$0xff]
      %v303 = vld [vmem:[%s279 + $0x20] sm:$0xff]
      %vm304 = vcmask 64512
      %v306 = vsel %vm304, %v298, 0
      %308 = vmatprep.subr.mxu0 0.0
      %309 = vmatpush1.msra.mxu0 0.0
      %310 = vmatprep.subr.mxu0 0.0
      %311 = vmatpush1.msra.mxu0 0.0
      %312 = vmatprep.subr.mxu0 0.0
      %313 = vmatpush1.msra.mxu0 0.0
      %314 = vmatprep.subr.mxu0 0.0
      %315 = vmatpush1.msra.mxu0 0.0
      %316 = vmatprep.subr.mxu0 0.0
      %317 = vmatpush1.msra.mxu0 0.0
      %318 = vmatprep.subr.mxu0 0.0
      %319 = vmatpush1.msra.mxu0 0.0
      %320 = vmatprep.subr.mxu0 0.0
      %321 = vmatpush1.msra.mxu0 0.0
      %322 = vmatprep.subr.mxu0 0.0
      %323 = vmatpush1.msra.mxu0 0.0
      %324 = vmatprep.subr.mxu0 0.0
      %325 = vmatpush1.msra.mxu0 0.0
      %326 = vmatprep.subr.mxu0 0.0
      %327 = vmatpush1.msra.mxu0 0.0
      %328 = vmatprep.subr.mxu0 0.0
      %329 = vmatpush1.msra.mxu0 0.0
      %330 = vmatprep.subr.mxu0 0.0
      %331 = vmatpush1.msra.mxu0 0.0
      %332 = vmatprep.subr.mxu0 0.0
      %333 = vmatpush1.msra.mxu0 0.0
      %334 = vmatprep.subr.mxu0 0.0
      %335 = vmatpush1.msra.mxu0 0.0
      %336 = vmatprep.subr.mxu0 0.0
      %337 = vmatpush1.msra.mxu0 0.0
      %338 = vmatprep.subr.mxu0 %v300
      %339 = vmatpush1.msra.mxu0 %v299
      %340 = vmatprep.subr.mxu0 0.0
      %341 = vmatpush2.msra.mxu0 0.0
      %342 = vmatprep.subr.mxu0 0.0
      %343 = vmatpush2.msra.mxu0 0.0
      %344 = vmatprep.subr.mxu0 0.0
      %345 = vmatpush2.msra.mxu0 0.0
      %346 = vmatprep.subr.mxu0 0.0
      %347 = vmatpush2.msra.mxu0 0.0
      %348 = vmatprep.subr.mxu0 0.0
      %349 = vmatpush2.msra.mxu0 0.0
      %350 = vmatprep.subr.mxu0 0.0
      %351 = vmatpush2.msra.mxu0 0.0
      %352 = vmatprep.subr.mxu0 0.0
      %353 = vmatpush2.msra.mxu0 0.0
      %354 = vmatprep.subr.mxu0 0.0
      %355 = vmatpush2.msra.mxu0 0.0
      %356 = vmatprep.subr.mxu0 0.0
      %357 = vmatpush2.msra.mxu0 0.0
      %358 = vmatprep.subr.mxu0 0.0
      %359 = vmatpush2.msra.mxu0 0.0
      %360 = vmatprep.subr.mxu0 0.0
      %361 = vmatpush2.msra.mxu0 0.0
      %362 = vmatprep.subr.mxu0 0.0
      %363 = vmatpush2.msra.mxu0 0.0
      %364 = vmatprep.subr.mxu0 0.0
      %365 = vmatpush2.msra.mxu0 0.0
      %366 = vmatprep.subr.mxu0 0.0
      %367 = vmatpush2.msra.mxu0 0.0
      %368 = vmatprep.subr.mxu0 0.0
      %369 = vmatpush2.msra.mxu0 0.0
      %370 = vmatprep.subr.mxu0 0.0
      %371 = vmatpush2.msra.mxu0 0.0
      %372 = vmatprep.mubr.f32.mxu0 0.0
      %373 = vmatmul.mubr.f32.gmra.mxu0 %v306
      %v374 = vpop.f32.mrf.mxu0
      %v375 = vadd.f32 0.0, %v374
      %v376 = vpop.f32.mrf.mxu0
      %v377 = vadd.f32 0.0, %v376
      %378 = vdwg.mxu0
      %379 = vmatprep.subr.mxu0 0.0
      %380 = vmatpush1.msra.mxu0 0.0
      %381 = vmatprep.subr.mxu0 0.0
      %382 = vmatpush1.msra.mxu0 0.0
      %383 = vmatprep.subr.mxu0 0.0
      %384 = vmatpush1.msra.mxu0 0.0
      %385 = vmatprep.subr.mxu0 0.0
      %386 = vmatpush1.msra.mxu0 0.0
      %387 = vmatprep.subr.mxu0 0.0
      %388 = vmatpush1.msra.mxu0 0.0
      %389 = vmatprep.subr.mxu0 0.0
      %390 = vmatpush1.msra.mxu0 0.0
      %391 = vmatprep.subr.mxu0 0.0
      %392 = vmatpush1.msra.mxu0 0.0
      %393 = vmatprep.subr.mxu0 0.0
      %394 = vmatpush1.msra.mxu0 0.0
      %395 = vmatprep.subr.mxu0 0.0
      %396 = vmatpush1.msra.mxu0 0.0
      %397 = vmatprep.subr.mxu0 0.0
      %398 = vmatpush1.msra.mxu0 0.0
      %399 = vmatprep.subr.mxu0 0.0
      %400 = vmatpush1.msra.mxu0 0.0
      %401 = vmatprep.subr.mxu0 0.0
      %402 = vmatpush1.msra.mxu0 0.0
      %403 = vmatprep.subr.mxu0 0.0
      %404 = vmatpush1.msra.mxu0 0.0
      %405 = vmatprep.subr.mxu0 0.0
      %406 = vmatpush1.msra.mxu0 0.0
      %407 = vmatprep.subr.mxu0 0.0
      %408 = vmatpush1.msra.mxu0 0.0
      %409 = vmatprep.subr.mxu0 %v302
      %410 = vmatpush1.msra.mxu0 %v301
      %411 = vmatprep.subr.mxu0 0.0
      %412 = vmatpush2.msra.mxu0 0.0
      %413 = vmatprep.subr.mxu0 0.0
      %414 = vmatpush2.msra.mxu0 0.0
      %415 = vmatprep.subr.mxu0 0.0
      %416 = vmatpush2.msra.mxu0 0.0
      %417 = vmatprep.subr.mxu0 0.0
      %418 = vmatpush2.msra.mxu0 0.0
      %419 = vmatprep.subr.mxu0 0.0
      %420 = vmatpush2.msra.mxu0 0.0
      %421 = vmatprep.subr.mxu0 0.0
      %422 = vmatpush2.msra.mxu0 0.0
      %423 = vmatprep.subr.mxu0 0.0
      %424 = vmatpush2.msra.mxu0 0.0
      %425 = vmatprep.subr.mxu0 0.0
      %426 = vmatpush2.msra.mxu0 0.0
      %427 = vmatprep.subr.mxu0 0.0
      %428 = vmatpush2.msra.mxu0 0.0
      %429 = vmatprep.subr.mxu0 0.0
      %430 = vmatpush2.msra.mxu0 0.0
      %431 = vmatprep.subr.mxu0 0.0
      %432 = vmatpush2.msra.mxu0 0.0
      %433 = vmatprep.subr.mxu0 0.0
      %434 = vmatpush2.msra.mxu0 0.0
      %435 = vmatprep.subr.mxu0 0.0
      %436 = vmatpush2.msra.mxu0 0.0
      %437 = vmatprep.subr.mxu0 0.0
      %438 = vmatpush2.msra.mxu0 0.0
      %439 = vmatprep.subr.mxu0 0.0
      %440 = vmatpush2.msra.mxu0 0.0
      %441 = vmatprep.subr.mxu0 0.0
      %442 = vmatpush2.msra.mxu0 0.0
      %443 = vmatprep.mubr.f32.mxu0 0.0
      %444 = vmatmul.mubr.f32.gmra.mxu0 %v306
      %v445 = vpop.f32.mrf.mxu0
      %v446 = vadd.f32 0.0, %v445
      %v447 = vpop.f32.mrf.mxu0
      %v448 = vadd.f32 0.0, %v447
      %449 = vdwg.mxu0
      %450 = vmatprep.subr.mxu0 0.0
      %451 = vmatpush1.msra.mxu0 0.0
      %452 = vmatprep.subr.mxu0 0.0
      %453 = vmatpush1.msra.mxu0 0.0
      %454 = vmatprep.subr.mxu0 0.0
      %455 = vmatpush1.msra.mxu0 0.0
      %456 = vmatprep.subr.mxu0 0.0
      %457 = vmatpush1.msra.mxu0 0.0
      %458 = vmatprep.subr.mxu0 0.0
      %459 = vmatpush1.msra.mxu0 0.0
      %460 = vmatprep.subr.mxu0 0.0
      %461 = vmatpush1.msra.mxu0 0.0
      %462 = vmatprep.subr.mxu0 0.0
      %463 = vmatpush1.msra.mxu0 0.0
      %464 = vmatprep.subr.mxu0 0.0
      %465 = vmatpush1.msra.mxu0 0.0
      %466 = vmatprep.subr.mxu0 0.0
      %467 = vmatpush1.msra.mxu0 0.0
      %468 = vmatprep.subr.mxu0 0.0
      %469 = vmatpush1.msra.mxu0 0.0
      %470 = vmatprep.subr.mxu0 0.0
      %471 = vmatpush1.msra.mxu0 0.0
      %472 = vmatprep.subr.mxu0 0.0
      %473 = vmatpush1.msra.mxu0 0.0
      %474 = vmatprep.subr.mxu0 0.0
      %475 = vmatpush1.msra.mxu0 0.0
      %476 = vmatprep.subr.mxu0 0.0
      %477 = vmatpush1.msra.mxu0 0.0
      %478 = vmatprep.subr.mxu0 0.0
      %479 = vmatpush1.msra.mxu0 0.0
      %480 = vmatprep.subr.mxu0 0.0
      %481 = vmatpush1.msra.mxu0 %v303
      %482 = vmatprep.subr.mxu0 0.0
      %483 = vmatpush2.msra.mxu0 0.0
      %484 = vmatprep.subr.mxu0 0.0
      %485 = vmatpush2.msra.mxu0 0.0
      %486 = vmatprep.subr.mxu0 0.0
      %487 = vmatpush2.msra.mxu0 0.0
      %488 = vmatprep.subr.mxu0 0.0
      %489 = vmatpush2.msra.mxu0 0.0
      %490 = vmatprep.subr.mxu0 0.0
      %491 = vmatpush2.msra.mxu0 0.0
      %492 = vmatprep.subr.mxu0 0.0
      %493 = vmatpush2.msra.mxu0 0.0
      %494 = vmatprep.subr.mxu0 0.0
      %495 = vmatpush2.msra.mxu0 0.0
      %496 = vmatprep.subr.mxu0 0.0
      %497 = vmatpush2.msra.mxu0 0.0
      %498 = vmatprep.subr.mxu0 0.0
      %499 = vmatpush2.msra.mxu0 0.0
      %500 = vmatprep.subr.mxu0 0.0
      %501 = vmatpush2.msra.mxu0 0.0
      %502 = vmatprep.subr.mxu0 0.0
      %503 = vmatpush2.msra.mxu0 0.0
      %504 = vmatprep.subr.mxu0 0.0
      %505 = vmatpush2.msra.mxu0 0.0
      %506 = vmatprep.subr.mxu0 0.0
      %507 = vmatpush2.msra.mxu0 0.0
      %508 = vmatprep.subr.mxu0 0.0
      %509 = vmatpush2.msra.mxu0 0.0
      %510 = vmatprep.subr.mxu0 0.0
      %511 = vmatpush2.msra.mxu0 0.0
      %512 = vmatprep.subr.mxu0 0.0
      %513 = vmatpush2.msra.mxu0 0.0
      %514 = vmatprep.mubr.f32.mxu0 0.0
      %515 = vmatmul.mubr.f32.gmra.mxu0 %v306
      %v516 = vpop.f32.mrf.mxu0
      %v517 = vadd.f32 0.0, %v516
      %v518 = vpop.f32.mrf.mxu0
      %519 = vdwg.mxu0
      %v520 = vadd.f32 %v293, %v375
      %v521 = vadd.f32 %v294, %v377
      %v522 = vadd.f32 %v295, %v446
      %v523 = vadd.f32 %v296, %v448
      %v524 = vadd.f32 %v297, %v517
      %v525 = vld [vmem:[%s3] sm:$0xff]
      %527 = vset.pattern.permute.xlu0 0
      %528 = vperm.xlu0 %527, %v525
      %v529 = vpop.permute.xlu0 %528
      %v531 = vadd.f32 %v520, %v529
      %v532 = vadd.f32 %v521, %v529
      %v533 = vadd.f32 %v522, %v529
      %v534 = vadd.f32 %v523, %v529
      %v535 = vadd.f32 %v524, %v529
      %536 = vst [vmem:[%s284] sm:$0xff] %v531
      %537 = vst [vmem:[%s284 + $0x8] sm:$0xff] %v532
      %538 = vst [vmem:[%s284 + $0x10] sm:$0xff] %v533
      %539 = vst [vmem:[%s284 + $0x18] sm:$0xff] %v534
      %vm540 = vcmask 924672
      %541 = vst.msk [vmem:[%s284 + $0x20] sm:$0xff] %vm540, %v535
      %v542 = vadd.f32 %v531, %v532
      %v543 = vadd.f32 %v542, %v533
      %v544 = vadd.f32 %v543, %v534
      %v545 = vsel %vm540, %v535, 0.0
      %v546 = vadd.f32 %v544, %v545
      %547 = vadd.xlane.f32.xlu0 %v546
      %v548 = vpop.xlane.xlu0 %547
      %vm549 = vcmask 7168
      %550 = vst.msk [vmem:[%s288] sm:$0xff] %vm549, %v548
      %v551 = vmul.f32 %v531, %v531
      %v552 = vmul.f32 %v532, %v532
      %v553 = vmul.f32 %v533, %v533
      %v554 = vmul.f32 %v534, %v534
      %v555 = vmul.f32 %v535, %v535
      %v556 = vadd.f32 %v551, %v552
      %v557 = vadd.f32 %v556, %v553
      %v558 = vadd.f32 %v557, %v554
      %v559 = vsel %vm540, %v555, 0.0
      %v560 = vadd.f32 %v558, %v559
      %561 = vadd.xlane.f32.xlu0 %v560
      %v562 = vpop.xlane.xlu0 %561
      %563 = vst.msk [vmem:[%s292] sm:$0xff] %vm549, %v562
      %p564 = scmp.lt.s32.totalorder %s18, 1
      %s565 = scalar_select %p564, %s18, 1
      %s566 = smul.addr %s565, 5
      %s567 = smul.addr %s566, 8
      %s568 = scalar_lea.vmem %s4, %s567
      %p569 = scmp.lt.s32.totalorder %s18, 1
      %s570 = scalar_select %p569, %s18, 1
      %s571 = smul.addr %s570, 8
      %s572 = scalar_lea.vmem %s5, %s571
      %p573 = scmp.lt.s32.totalorder %s18, 1
      %s574 = scalar_select %p573, %s18, 1
      %s575 = smul.addr %s574, 8
      %s576 = scalar_lea.vmem %s6, %s575
      // Predicated region
      $region37: #{alpha_fno2d_forward.8} parent=35 // pred_check
        %p577 = pneg %p130
      $region38: #{alpha_fno2d_forward.8} parent=35 // pred_check_branch
        %579 = sbr.rel (%p577) target = $region40
      $region39: #{alpha_fno2d_forward.8} parent=35 // pred_region
        _
      $region40: #{alpha_fno2d_forward.8} parent=35 // pred_fallthru
        _
      // Predicated region
      $region41: #{alpha_fno2d_forward.8} parent=35 // pred_check
        %p580 = pneg %p156
      $region42: #{alpha_fno2d_forward.8} parent=35 // pred_check_branch
        %582 = sbr.rel (%p580) target = $region44
      $region43: #{alpha_fno2d_forward.8} parent=35 // pred_region
        _
      $region44: #{alpha_fno2d_forward.8} parent=35 // pred_fallthru
        _
      // Predicated region
      $region45: #{alpha_fno2d_forward.8} parent=35 // pred_check
        %p583 = pneg %p182
      $region46: #{alpha_fno2d_forward.8} parent=35 // pred_check_branch
        %585 = sbr.rel (%p583) target = $region48
      $region47: #{alpha_fno2d_forward.8} parent=35 // pred_region
        _
      $region48: #{alpha_fno2d_forward.8} parent=35 // pred_fallthru
        _
    $region36: #{alpha_fno2d_forward.8} parent=5 // pred_fallthru
      _
    %p586 = scmp.le.s32.totalorder 2, %s13
    // Predicated region
    $region49: #{alpha_fno2d_forward.8} parent=5 // pred_check
      %p587 = pneg %p586
    $region50: #{alpha_fno2d_forward.8} parent=5 // pred_check_branch
      %589 = sbr.rel (%p587) target = $region52
    $region51: #{alpha_fno2d_forward.8} parent=5 // pred_region
      %s590 = ssub.s32 %s13, 2
      // Predicated region
      $region53: #{alpha_fno2d_forward.8} parent=51 // pred_check
        %p591 = pneg %p136
      $region54: #{alpha_fno2d_forward.8} parent=51 // pred_check_branch
        %593 = sbr.rel (%p591) target = $region56
      $region55: #{alpha_fno2d_forward.8} parent=51 // pred_region
        %p594 = scmp.lt.s32.totalorder %s19, 1
        %s595 = scalar_select %p594, %s19, 1
        %s596 = smul.addr %s595, 5
        %s597 = smul.addr %s596, 8
        %s598 = scalar_lea.vmem %s4, %s597
      $region56: #{alpha_fno2d_forward.8} parent=51 // pred_fallthru
        _
      // Predicated region
      $region57: #{alpha_fno2d_forward.8} parent=51 // pred_check
        %p599 = pneg %p162
      $region58: #{alpha_fno2d_forward.8} parent=51 // pred_check_branch
        %601 = sbr.rel (%p599) target = $region60
      $region59: #{alpha_fno2d_forward.8} parent=51 // pred_region
        %p602 = scmp.lt.s32.totalorder %s19, 1
        %s603 = scalar_select %p602, %s19, 1
        %s604 = smul.addr %s603, 8
        %s605 = scalar_lea.vmem %s5, %s604
      $region60: #{alpha_fno2d_forward.8} parent=51 // pred_fallthru
        _
      // Predicated region
      $region61: #{alpha_fno2d_forward.8} parent=51 // pred_check
        %p606 = pneg %p188
      $region62: #{alpha_fno2d_forward.8} parent=51 // pred_check_branch
        %608 = sbr.rel (%p606) target = $region64
      $region63: #{alpha_fno2d_forward.8} parent=51 // pred_region
        %p609 = scmp.lt.s32.totalorder %s19, 1
        %s610 = scalar_select %p609, %s19, 1
        %s611 = smul.addr %s610, 8
        %s612 = scalar_lea.vmem %s6, %s611
      $region64: #{alpha_fno2d_forward.8} parent=51 // pred_fallthru
        _
    $region52: #{alpha_fno2d_forward.8} parent=5 // pred_fallthru
      _
  $region6: #{alpha_fno2d_forward.8} parent=0 // loop_footer
    %s17 = sadd.s32 1, %s13
  $region7: #{alpha_fno2d_forward.8} parent=0 // loop_footer_branch
    %12 = sbr.rel target = $region3
  $region8: #{alpha_fno2d_forward.8} parent=0 // loop_exit
    _

// kernel: alpha_fno2d_forward.9
$region0: #{alpha_fno2d_forward.9}
  #allocation0 [shape = 'u32[]', space=smem, size = 0x4, offset = 0x4, fixed_abs, tag = 'smem constant byte address 0x4 - core index']
  #allocation1 [shape = 'u32[144,128]{1,0:T(1,128)}', space=vmem, size = 0x12000, scoped, tag = 'internal scratch']
  #allocation2 [shape = 'f32[1,1]{1,0:T(1,128)S(1)}', space=vmem, size = 0x200, scoped, tag = 'scoped memory for alpha_fno2d_forward.9']
  %s0 = inlined_call_operand.vmem [shape: f32[16,256], index: 0, kind: input, shape index: {}]
  %s1 = inlined_call_operand.vmem [shape: f32[8,1], index: 1, kind: input, shape index: {}]
  %s2 = inlined_call_operand.vmem [shape: f32[8,1], index: 2, kind: input, shape index: {}]
  %s3 = inlined_call_operand.vmem [shape: f32[128,8], index: 3, kind: input, shape index: {}]
  %s4 = inlined_call_operand.vmem [shape: f32[128,1], index: 4, kind: input, shape index: {}]
  %s5 = inlined_call_operand.vmem [shape: f32[1,128], index: 5, kind: input, shape index: {}]
  %s6 = inlined_call_operand.<no memory space> [shape: f32[1,1], index: 6, kind: input, shape index: {}]
  %s7 = inlined_call_operand.vmem [shape: f32[2,1,256], index: 7, kind: output, shape index: {}]
  %s8 = sld [smem:[#allocation0]]
  $region61: #{alpha_fno2d_forward.9} parent=0
    _
  %s10 = ssub.s32 1, %s8
  %s11 = scalar_select 0, %s10, %s8
  %v12 = vstv %s6
  %13 = vst [vmem:[#allocation2] sm:$0x1] %v12
  loop: start=0, step=1, limit=4
  $region2: #{alpha_fno2d_forward.9} parent=0 // loop_pre_header
    _
  $region3: #{alpha_fno2d_forward.9} parent=0 // loop_header
    %s15 = sphi 0, %s19
    %p16 = scmp.ge.s32.totalorder %s15, 4
    %s25 = sphi 0, %s27
    %s28 = sphi 0, %s25
    %s29 = sphi 0, %s28
    %s45 = sphi 0, %s29
    %s49 = sphi 0, %s49
    %s51 = sphi 0, %s49
    %s52 = sphi 0, %s51
    %s66 = sphi 0, %s52
    %s70 = sphi 0, %s70
    %s72 = sphi 0, %s70
    %s73 = sphi 0, %s72
    %s87 = sphi 0, %s73
    %s91 = sphi 0, %s91
    %s93 = sphi 0, %s91
    %s94 = sphi 0, %s93
    %s108 = sphi 0, %s94
    %s112 = sphi 0, %s112
    %s114 = sphi 0, %s112
    %s115 = sphi 0, %s114
    %s129 = sphi 0, %s115
    %s133 = sphi 0, %s133
    %s135 = sphi 0, %s133
    %s136 = sphi 0, %s135
    %s150 = sphi 0, %s136
    %s154 = sphi 0, %s154
    %s156 = sphi 0, %s154
    %s157 = sphi 0, %s156
    %s171 = sphi 0, %s157
    %s177 = sphi 0, %s179
    %s180 = sphi 0, %s177
    %s181 = sphi 0, %s180
    %s197 = sphi 0, %s181
  $region4: #{alpha_fno2d_forward.9} parent=0 // loop_header_branch
    %18 = sbr.rel (%p16) target = $region8
  $region5: #{alpha_fno2d_forward.9} parent=0 // loop_body
    %s20 = ssub.s32 %s15, 1
    %s21 = ssub.s32 %s15, 2
    %s22 = sadd.s32 %s15, 1
    %s23 = ssub.s32 %s15, %s22
    %p24 = scmp.eq.s32.totalorder %s23, 0
    %s26 = sadd.s32 %s25, 1
    %s27 = scalar_select %p24, %s25, %s26
    %p30 = pneg %p24
    %p31 = scmp.eq.s32.totalorder %s15, 1
    %p32 = por %p30, %p31
    %p33 = scmp.ne.s32.totalorder %s25, %s28
    %p34 = scmp.eq.s32.totalorder %s15, 0
    %p35 = por %p33, %p34
    %p36 = scmp.ne.s32.totalorder %s25, %s28
    %p37 = scmp.eq.s32.totalorder %s20, 1
    %p38 = por %p36, %p37
    %p39 = scmp.ne.s32.totalorder %s28, %s29
    %p40 = scmp.eq.s32.totalorder %s20, 0
    %p41 = por %p39, %p40
    %p42 = scmp.ne.s32.totalorder %s28, %s29
    %p43 = scmp.eq.s32.totalorder %s21, 1
    %p44 = por %p42, %p43
    %p46 = scmp.ne.s32.totalorder %s29, %s45
    %p47 = scmp.eq.s32.totalorder %s21, 0
    %p48 = por %p46, %p47
    %s50 = sadd.s32 %s49, 1
    %p53 = scmp.eq.s32.totalorder %s15, 1
    %p54 = scmp.ne.s32.totalorder %s49, %s51
    %p55 = scmp.eq.s32.totalorder %s15, 0
    %p56 = por %p54, %p55
    %p57 = scmp.ne.s32.totalorder %s49, %s51
    %p58 = scmp.eq.s32.totalorder %s20, 1
    %p59 = por %p57, %p58
    %p60 = scmp.ne.s32.totalorder %s51, %s52
    %p61 = scmp.eq.s32.totalorder %s20, 0
    %p62 = por %p60, %p61
    %p63 = scmp.ne.s32.totalorder %s51, %s52
    %p64 = scmp.eq.s32.totalorder %s21, 1
    %p65 = por %p63, %p64
    %p67 = scmp.ne.s32.totalorder %s52, %s66
    %p68 = scmp.eq.s32.totalorder %s21, 0
    %p69 = por %p67, %p68
    %s71 = sadd.s32 %s70, 1
    %p74 = scmp.eq.s32.totalorder %s15, 1
    %p75 = scmp.ne.s32.totalorder %s70, %s72
    %p76 = scmp.eq.s32.totalorder %s15, 0
    %p77 = por %p75, %p76
    %p78 = scmp.ne.s32.totalorder %s70, %s72
    %p79 = scmp.eq.s32.totalorder %s20, 1
    %p80 = por %p78, %p79
    %p81 = scmp.ne.s32.totalorder %s72, %s73
    %p82 = scmp.eq.s32.totalorder %s20, 0
    %p83 = por %p81, %p82
    %p84 = scmp.ne.s32.totalorder %s72, %s73
    %p85 = scmp.eq.s32.totalorder %s21, 1
    %p86 = por %p84, %p85
    %p88 = scmp.ne.s32.totalorder %s73, %s87
    %p89 = scmp.eq.s32.totalorder %s21, 0
    %p90 = por %p88, %p89
    %s92 = sadd.s32 %s91, 1
    %p95 = scmp.eq.s32.totalorder %s15, 1
    %p96 = scmp.ne.s32.totalorder %s91, %s93
    %p97 = scmp.eq.s32.totalorder %s15, 0
    %p98 = por %p96, %p97
    %p99 = scmp.ne.s32.totalorder %s91, %s93
    %p100 = scmp.eq.s32.totalorder %s20, 1
    %p101 = por %p99, %p100
    %p102 = scmp.ne.s32.totalorder %s93, %s94
    %p103 = scmp.eq.s32.totalorder %s20, 0
    %p104 = por %p102, %p103
    %p105 = scmp.ne.s32.totalorder %s93, %s94
    %p106 = scmp.eq.s32.totalorder %s21, 1
    %p107 = por %p105, %p106
    %p109 = scmp.ne.s32.totalorder %s94, %s108
    %p110 = scmp.eq.s32.totalorder %s21, 0
    %p111 = por %p109, %p110
    %s113 = sadd.s32 %s112, 1
    %p116 = scmp.eq.s32.totalorder %s15, 1
    %p117 = scmp.ne.s32.totalorder %s112, %s114
    %p118 = scmp.eq.s32.totalorder %s15, 0
    %p119 = por %p117, %p118
    %p120 = scmp.ne.s32.totalorder %s112, %s114
    %p121 = scmp.eq.s32.totalorder %s20, 1
    %p122 = por %p120, %p121
    %p123 = scmp.ne.s32.totalorder %s114, %s115
    %p124 = scmp.eq.s32.totalorder %s20, 0
    %p125 = por %p123, %p124
    %p126 = scmp.ne.s32.totalorder %s114, %s115
    %p127 = scmp.eq.s32.totalorder %s21, 1
    %p128 = por %p126, %p127
    %p130 = scmp.ne.s32.totalorder %s115, %s129
    %p131 = scmp.eq.s32.totalorder %s21, 0
    %p132 = por %p130, %p131
    %s134 = sadd.s32 %s133, 1
    %p137 = scmp.eq.s32.totalorder %s15, 1
    %p138 = scmp.ne.s32.totalorder %s133, %s135
    %p139 = scmp.eq.s32.totalorder %s15, 0
    %p140 = por %p138, %p139
    %p141 = scmp.ne.s32.totalorder %s133, %s135
    %p142 = scmp.eq.s32.totalorder %s20, 1
    %p143 = por %p141, %p142
    %p144 = scmp.ne.s32.totalorder %s135, %s136
    %p145 = scmp.eq.s32.totalorder %s20, 0
    %p146 = por %p144, %p145
    %p147 = scmp.ne.s32.totalorder %s135, %s136
    %p148 = scmp.eq.s32.totalorder %s21, 1
    %p149 = por %p147, %p148
    %p151 = scmp.ne.s32.totalorder %s136, %s150
    %p152 = scmp.eq.s32.totalorder %s21, 0
    %p153 = por %p151, %p152
    %s155 = sadd.s32 %s154, 1
    %p158 = scmp.eq.s32.totalorder %s15, 1
    %p159 = scmp.ne.s32.totalorder %s154, %s156
    %p160 = scmp.eq.s32.totalorder %s15, 0
    %p161 = por %p159, %p160
    %p162 = scmp.ne.s32.totalorder %s154, %s156
    %p163 = scmp.eq.s32.totalorder %s20, 1
    %p164 = por %p162, %p163
    %p165 = scmp.ne.s32.totalorder %s156, %s157
    %p166 = scmp.eq.s32.totalorder %s20, 0
    %p167 = por %p165, %p166
    %p168 = scmp.ne.s32.totalorder %s156, %s157
    %p169 = scmp.eq.s32.totalorder %s21, 1
    %p170 = por %p168, %p169
    %p172 = scmp.ne.s32.totalorder %s157, %s171
    %p173 = scmp.eq.s32.totalorder %s21, 0
    %p174 = por %p172, %p173
    %s175 = ssub.s32 %s15, %s22
    %p176 = scmp.eq.s32.totalorder %s175, 0
    %s178 = sadd.s32 %s177, 1
    %s179 = scalar_select %p176, %s177, %s178
    %p182 = pneg %p176
    %p183 = scmp.eq.s32.totalorder %s15, 1
    %p184 = por %p182, %p183
    %p185 = scmp.ne.s32.totalorder %s177, %s180
    %p186 = scmp.eq.s32.totalorder %s15, 0
    %p187 = por %p185, %p186
    %p188 = scmp.ne.s32.totalorder %s177, %s180
    %p189 = scmp.eq.s32.totalorder %s20, 1
    %p190 = por %p188, %p189
    %p191 = scmp.ne.s32.totalorder %s180, %s181
    %p192 = scmp.eq.s32.totalorder %s20, 0
    %p193 = por %p191, %p192
    %p194 = scmp.ne.s32.totalorder %s180, %s181
    %p195 = scmp.eq.s32.totalorder %s21, 1
    %p196 = por %p194, %p195
    %p198 = scmp.ne.s32.totalorder %s181, %s197
    %p199 = scmp.eq.s32.totalorder %s21, 0
    %p200 = por %p198, %p199
    %p201 = scmp.le.s32.totalorder 1, %s15
    %p202 = scmp.lt.s32.totalorder %s15, 3
    %p203 = pnand %p201, %p202
    %p204 = pneg %p203
    // Predicated region
    $region9: #{alpha_fno2d_forward.9} parent=5 // pred_check
      _
    $region10: #{alpha_fno2d_forward.9} parent=5 // pred_check_branch
      %206 = sbr.rel (%p203) target = $region12
    $region11: #{alpha_fno2d_forward.9} parent=5 // pred_region
      %s207 = ssub.s32 %s15, 1
      // Predicated region
      $region13: #{alpha_fno2d_forward.9} parent=11 // pred_check
        %p208 = pneg %p62
      $region14: #{alpha_fno2d_forward.9} parent=11 // pred_check_branch
        %210 = sbr.rel (%p208) target = $region16
      $region15: #{alpha_fno2d_forward.9} parent=11 // pred_region
        _
      $region16: #{alpha_fno2d_forward.9} parent=11 // pred_fallthru
        _
      // Predicated region
      $region17: #{alpha_fno2d_forward.9} parent=11 // pred_check
        %p211 = pneg %p83
      $region18: #{alpha_fno2d_forward.9} parent=11 // pred_check_branch
        %213 = sbr.rel (%p211) target = $region20
      $region19: #{alpha_fno2d_forward.9} parent=11 // pred_region
        _
      $region20: #{alpha_fno2d_forward.9} parent=11 // pred_fallthru
        _
      // Predicated region
      $region21: #{alpha_fno2d_forward.9} parent=11 // pred_check
        %p214 = pneg %p104
      $region22: #{alpha_fno2d_forward.9} parent=11 // pred_check_branch
        %216 = sbr.rel (%p214) target = $region24
      $region23: #{alpha_fno2d_forward.9} parent=11 // pred_region
        _
      $region24: #{alpha_fno2d_forward.9} parent=11 // pred_fallthru
        _
      // Predicated region
      $region25: #{alpha_fno2d_forward.9} parent=11 // pred_check
        %p217 = pneg %p125
      $region26: #{alpha_fno2d_forward.9} parent=11 // pred_check_branch
        %219 = sbr.rel (%p217) target = $region28
      $region27: #{alpha_fno2d_forward.9} parent=11 // pred_region
        _
      $region28: #{alpha_fno2d_forward.9} parent=11 // pred_fallthru
        _
      // Predicated region
      $region29: #{alpha_fno2d_forward.9} parent=11 // pred_check
        %p220 = pneg %p146
      $region30: #{alpha_fno2d_forward.9} parent=11 // pred_check_branch
        %222 = sbr.rel (%p220) target = $region32
      $region31: #{alpha_fno2d_forward.9} parent=11 // pred_region
        _
      $region32: #{alpha_fno2d_forward.9} parent=11 // pred_fallthru
        _
      // Predicated region
      $region33: #{alpha_fno2d_forward.9} parent=11 // pred_check
        %p223 = pneg %p167
      $region34: #{alpha_fno2d_forward.9} parent=11 // pred_check_branch
        %225 = sbr.rel (%p223) target = $region36
      $region35: #{alpha_fno2d_forward.9} parent=11 // pred_region
        _
      $region36: #{alpha_fno2d_forward.9} parent=11 // pred_fallthru
        _
    $region12: #{alpha_fno2d_forward.9} parent=5 // pred_fallthru
      _
    %p226 = scmp.lt.s32.totalorder %s15, 2
    // Predicated region
    $region37: #{alpha_fno2d_forward.9} parent=5 // pred_check
      %p227 = pneg %p226
    $region38: #{alpha_fno2d_forward.9} parent=5 // pred_check_branch
      %229 = sbr.rel (%p227) target = $region40
    $region39: #{alpha_fno2d_forward.9} parent=5 // pred_region
      // Predicated region
      $region41: #{alpha_fno2d_forward.9} parent=39 // pred_check
        %p230 = pneg %p35
      $region42: #{alpha_fno2d_forward.9} parent=39 // pred_check_branch
        %232 = sbr.rel (%p230) target = $region44
      $region43: #{alpha_fno2d_forward.9} parent=39 // pred_region
        %p233 = scmp.lt.s32.totalorder %s15, 1
        %s234 = scalar_select %p233, %s15, 1
        %s235 = smul.addr %s234, 2
        %s236 = smul.addr %s235, 8
        %s237 = scalar_lea.vmem %s0, %s236
      $region44: #{alpha_fno2d_forward.9} parent=39 // pred_fallthru
        _
    $region40: #{alpha_fno2d_forward.9} parent=5 // pred_fallthru
      _
    %p238 = scmp.le.s32.totalorder 1, %s15
    %p239 = scmp.lt.s32.totalorder %s15, 3
    %p240 = pnand %p238, %p239
    %p241 = pneg %p240
    // Predicated region
    $region45: #{alpha_fno2d_forward.9} parent=5 // pred_check
      _
    $region46: #{alpha_fno2d_forward.9} parent=5 // pred_check_branch
      %243 = sbr.rel (%p240) target = $region48
    $region47: #{alpha_fno2d_forward.9} parent=5 // pred_region
      %s244 = ssub.s32 %s15, 1
      %p245 = scmp.lt.s32.totalorder %s20, 1
      %s246 = scalar_select %p245, %s20, 1
      %s247 = smul.addr %s246, 2
      %s248 = smul.addr %s247, 8
      %s249 = scalar_lea.vmem %s0, %s248
      %p250 = pneg %p41
      %p251 = pneg %p38
      %p252 = pneg %p62
      %p253 = pneg %p59
      %p254 = pneg %p83
      %p255 = pneg %p80
      %p256 = pneg %p104
      %p257 = pneg %p101
      %p258 = pneg %p125
      %p259 = pneg %p122
      %p260 = pneg %p146
      %p261 = pneg %p143
      %p262 = pneg %p167
      %p263 = pneg %p164
      %p264 = pneg %p193
      %p265 = pneg %p190
      %p266 = scmp.lt.s32.totalorder %s20, 1
      %s267 = scalar_select %p266, %s20, 1
      %s268 = smul.addr %s267, 2
      %s269 = scalar_lea.vmem %s7, %s268
      %p270 = scmp.lt.s32.totalorder %s20, 1
      %s271 = scalar_select %p270, %s20, 1
      %s272 = smul.addr %s271, 2
      %s273 = smul.addr %s272, 8
      %s274 = scalar_lea.vmem %s0, %s273
      %p275 = scmp.lt.s32.totalorder %s20, 1
      %s276 = scalar_select %p275, %s20, 1
      %s277 = smul.addr %s276, 2
      %s278 = scalar_lea.vmem %s7, %s277
      %v279 = vld [vmem:[%s274] sm:$0xff]
      %v280 = vld [vmem:[%s274 + $0x8] sm:$0xff]
      %v281 = vld [vmem:[%s1] sm:$0xff]
      %283 = vset.pattern.permute.xlu0 0
      %284 = vperm.xlu0 %283, %v281
      %v285 = vpop.permute.xlu0 %284
      %v287 = vmul.f32 %v279, %v285
      %v288 = vmul.f32 %v280, %v285
      %v289 = vld [vmem:[%s2] sm:$0xff]
      %291 = vset.pattern.permute.xlu0 0
      %292 = vperm.xlu0 %291, %v289
      %v293 = vpop.permute.xlu0 %292
      %v295 = vadd.f32 %v287, %v293
      %v296 = vadd.f32 %v288, %v293
      %v297 = vtanh.pop %v295
      %v298 = vtanh.pop %v296
      %v299 = vld [vmem:[%s3] sm:$0xff]
      %v300 = vld [vmem:[%s3 + $0x8] sm:$0xff]
      %v301 = vld [vmem:[%s3 + $0x10] sm:$0xff]
      %v302 = vld [vmem:[%s3 + $0x18] sm:$0xff]
      %v303 = vld [vmem:[%s3 + $0x20] sm:$0xff]
      %v304 = vld [vmem:[%s3 + $0x28] sm:$0xff]
      %v305 = vld [vmem:[%s3 + $0x30] sm:$0xff]
      %v306 = vld [vmem:[%s3 + $0x38] sm:$0xff]
      %v307 = vld [vmem:[%s3 + $0x40] sm:$0xff]
      %v308 = vld [vmem:[%s3 + $0x48] sm:$0xff]
      %v309 = vld [vmem:[%s3 + $0x50] sm:$0xff]
      %v310 = vld [vmem:[%s3 + $0x58] sm:$0xff]
      %v311 = vld [vmem:[%s3 + $0x60] sm:$0xff]
      %v312 = vld [vmem:[%s3 + $0x68] sm:$0xff]
      %v313 = vld [vmem:[%s3 + $0x70] sm:$0xff]
      %v314 = vld [vmem:[%s3 + $0x78] sm:$0xff]
      %v315 = vld [vmem:[%s4] sm:$0xff]
      %v316 = vld [vmem:[%s4 + $0x8] sm:$0xff]
      %v317 = vld [vmem:[%s4 + $0x10] sm:$0xff]
      %v318 = vld [vmem:[%s4 + $0x18] sm:$0xff]
      %v319 = vld [vmem:[%s4 + $0x20] sm:$0xff]
      %v320 = vld [vmem:[%s4 + $0x28] sm:$0xff]
      %v321 = vld [vmem:[%s4 + $0x30] sm:$0xff]
      %v322 = vld [vmem:[%s4 + $0x38] sm:$0xff]
      %v323 = vld [vmem:[%s4 + $0x40] sm:$0xff]
      %v324 = vld [vmem:[%s4 + $0x48] sm:$0xff]
      %v325 = vld [vmem:[%s4 + $0x50] sm:$0xff]
      %v326 = vld [vmem:[%s4 + $0x58] sm:$0xff]
      %v327 = vld [vmem:[%s4 + $0x60] sm:$0xff]
      %v328 = vld [vmem:[%s4 + $0x68] sm:$0xff]
      %v329 = vld [vmem:[%s4 + $0x70] sm:$0xff]
      %v330 = vld [vmem:[%s4 + $0x78] sm:$0xff]
      %332 = vset.pattern.permute.xlu0 0
      %333 = vperm.xlu0 %332, %v315
      %v334 = vpop.permute.xlu0 %333
      %337 = vset.pattern.permute.xlu0 0
      %338 = vperm.xlu0 %337, %v316
      %v339 = vpop.permute.xlu0 %338
      %342 = vset.pattern.permute.xlu0 0
      %343 = vperm.xlu0 %342, %v317
      %v344 = vpop.permute.xlu0 %343
      %347 = vset.pattern.permute.xlu0 0
      %348 = vperm.xlu0 %347, %v318
      %v349 = vpop.permute.xlu0 %348
      %352 = vset.pattern.permute.xlu0 0
      %353 = vperm.xlu0 %352, %v319
      %v354 = vpop.permute.xlu0 %353
      %357 = vset.pattern.permute.xlu0 0
      %358 = vperm.xlu0 %357, %v320
      %v359 = vpop.permute.xlu0 %358
      %362 = vset.pattern.permute.xlu0 0
      %363 = vperm.xlu0 %362, %v321
      %v364 = vpop.permute.xlu0 %363
      %367 = vset.pattern.permute.xlu0 0
      %368 = vperm.xlu0 %367, %v322
      %v369 = vpop.permute.xlu0 %368
      %372 = vset.pattern.permute.xlu0 0
      %373 = vperm.xlu0 %372, %v323
      %v374 = vpop.permute.xlu0 %373
      %377 = vset.pattern.permute.xlu0 0
      %378 = vperm.xlu0 %377, %v324
      %v379 = vpop.permute.xlu0 %378
      %382 = vset.pattern.permute.xlu0 0
      %383 = vperm.xlu0 %382, %v325
      %v384 = vpop.permute.xlu0 %383
      %387 = vset.pattern.permute.xlu0 0
      %388 = vperm.xlu0 %387, %v326
      %v389 = vpop.permute.xlu0 %388
      %392 = vset.pattern.permute.xlu0 0
      %393 = vperm.xlu0 %392, %v327
      %v394 = vpop.permute.xlu0 %393
      %397 = vset.pattern.permute.xlu0 0
      %398 = vperm.xlu0 %397, %v328
      %v399 = vpop.permute.xlu0 %398
      %402 = vset.pattern.permute.xlu0 0
      %403 = vperm.xlu0 %402, %v329
      %v404 = vpop.permute.xlu0 %403
      %407 = vset.pattern.permute.xlu0 0
      %408 = vperm.xlu0 %407, %v330
      %v409 = vpop.permute.xlu0 %408
      %vm411 = vcmask 64512
      %v413 = vsel %vm411, %v299, 0
      %v416 = vsel %vm411, %v300, 0
      %v419 = vsel %vm411, %v301, 0
      %v422 = vsel %vm411, %v302, 0
      %v425 = vsel %vm411, %v303, 0
      %v428 = vsel %vm411, %v304, 0
      %v431 = vsel %vm411, %v305, 0
      %v434 = vsel %vm411, %v306, 0
      %v437 = vsel %vm411, %v307, 0
      %v440 = vsel %vm411, %v308, 0
      %v443 = vsel %vm411, %v309, 0
      %v446 = vsel %vm411, %v310, 0
      %v449 = vsel %vm411, %v311, 0
      %v452 = vsel %vm411, %v312, 0
      %v455 = vsel %vm411, %v313, 0
      %v458 = vsel %vm411, %v314, 0
      %460 = vmatprep.subr.mxu0 0.0
      %461 = vmatpush1.msra.mxu0 0.0
      %462 = vmatprep.subr.mxu0 0.0
      %463 = vmatpush1.msra.mxu0 0.0
      %464 = vmatprep.subr.mxu0 0.0
      %465 = vmatpush1.msra.mxu0 0.0
      %466 = vmatprep.subr.mxu0 0.0
      %467 = vmatpush1.msra.mxu0 0.0
      %468 = vmatprep.subr.mxu0 0.0
      %469 = vmatpush1.msra.mxu0 0.0
      %470 = vmatprep.subr.mxu0 0.0
      %471 = vmatpush1.msra.mxu0 0.0
      %472 = vmatprep.subr.mxu0 0.0
      %473 = vmatpush1.msra.mxu0 0.0
      %474 = vmatprep.subr.mxu0 0.0
      %475 = vmatpush1.msra.mxu0 0.0
      %476 = vmatprep.subr.mxu0 0.0
      %477 = vmatpush1.msra.mxu0 0.0
      %478 = vmatprep.subr.mxu0 0.0
      %479 = vmatpush1.msra.mxu0 0.0
      %480 = vmatprep.subr.mxu0 0.0
      %481 = vmatpush1.msra.mxu0 0.0
      %482 = vmatprep.subr.mxu0 0.0
      %483 = vmatpush1.msra.mxu0 0.0
      %484 = vmatprep.subr.mxu0 0.0
      %485 = vmatpush1.msra.mxu0 0.0
      %486 = vmatprep.subr.mxu0 0.0
      %487 = vmatpush1.msra.mxu0 0.0
      %488 = vmatprep.subr.mxu0 0.0
      %489 = vmatpush1.msra.mxu0 0.0
      %490 = vmatprep.subr.mxu0 %v298
      %491 = vmatpush1.msra.mxu0 %v297
      %492 = vmatprep.subr.mxu0 0.0
      %493 = vmatpush2.msra.mxu0 0.0
      %494 = vmatprep.subr.mxu0 0.0
      %495 = vmatpush2.msra.mxu0 0.0
      %496 = vmatprep.subr.mxu0 0.0
      %497 = vmatpush2.msra.mxu0 0.0
      %498 = vmatprep.subr.mxu0 0.0
      %499 = vmatpush2.msra.mxu0 0.0
      %500 = vmatprep.subr.mxu0 0.0
      %501 = vmatpush2.msra.mxu0 0.0
      %502 = vmatprep.subr.mxu0 0.0
      %503 = vmatpush2.msra.mxu0 0.0
      %504 = vmatprep.subr.mxu0 0.0
      %505 = vmatpush2.msra.mxu0 0.0
      %506 = vmatprep.subr.mxu0 0.0
      %507 = vmatpush2.msra.mxu0 0.0
      %508 = vmatprep.subr.mxu0 0.0
      %509 = vmatpush2.msra.mxu0 0.0
      %510 = vmatprep.subr.mxu0 0.0
      %511 = vmatpush2.msra.mxu0 0.0
      %512 = vmatprep.subr.mxu0 0.0
      %513 = vmatpush2.msra.mxu0 0.0
      %514 = vmatprep.subr.mxu0 0.0
      %515 = vmatpush2.msra.mxu0 0.0
      %516 = vmatprep.subr.mxu0 0.0
      %517 = vmatpush2.msra.mxu0 0.0
      %518 = vmatprep.subr.mxu0 0.0
      %519 = vmatpush2.msra.mxu0 0.0
      %520 = vmatprep.subr.mxu0 0.0
      %521 = vmatpush2.msra.mxu0 0.0
      %522 = vmatprep.subr.mxu0 0.0
      %523 = vmatpush2.msra.mxu0 0.0
      %524 = vmatprep.mubr.f32.mxu0 0.0
      %525 = vmatmul.mubr.f32.gmra.mxu0 %v413
      %v526 = vpop.f32.mrf.mxu0
      %v527 = vadd.f32 %v334, %v526
      %v528 = vpop.f32.mrf.mxu0
      %v529 = vadd.f32 %v334, %v528
      %530 = vmatprep.mubr.f32.mxu0 0.0
      %531 = vmatmul.mubr.f32.gmra.mxu0 %v416
      %v532 = vpop.f32.mrf.mxu0
      %v533 = vadd.f32 %v339, %v532
      %v534 = vpop.f32.mrf.mxu0
      %v535 = vadd.f32 %v339, %v534
      %536 = vmatprep.mubr.f32.mxu0 0.0
      %537 = vmatmul.mubr.f32.gmra.mxu0 %v419
      %v538 = vpop.f32.mrf.mxu0
      %v539 = vadd.f32 %v344, %v538
      %v540 = vpop.f32.mrf.mxu0
      %v541 = vadd.f32 %v344, %v540
      %542 = vmatprep.mubr.f32.mxu0 0.0
      %543 = vmatmul.mubr.f32.gmra.mxu0 %v422
      %v544 = vpop.f32.mrf.mxu0
      %v545 = vadd.f32 %v349, %v544
      %v546 = vpop.f32.mrf.mxu0
      %v547 = vadd.f32 %v349, %v546
      %548 = vmatprep.mubr.f32.mxu0 0.0
      %549 = vmatmul.mubr.f32.gmra.mxu0 %v425
      %v550 = vpop.f32.mrf.mxu0
      %v551 = vadd.f32 %v354, %v550
      %v552 = vpop.f32.mrf.mxu0
      %v553 = vadd.f32 %v354, %v552
      %554 = vmatprep.mubr.f32.mxu0 0.0
      %555 = vmatmul.mubr.f32.gmra.mxu0 %v428
      %v556 = vpop.f32.mrf.mxu0
      %v557 = vadd.f32 %v359, %v556
      %v558 = vpop.f32.mrf.mxu0
      %v559 = vadd.f32 %v359, %v558
      %560 = vmatprep.mubr.f32.mxu0 0.0
      %561 = vmatmul.mubr.f32.gmra.mxu0 %v431
      %v562 = vpop.f32.mrf.mxu0
      %v563 = vadd.f32 %v364, %v562
      %v564 = vpop.f32.mrf.mxu0
      %v565 = vadd.f32 %v364, %v564
      %566 = vmatprep.mubr.f32.mxu0 0.0
      %567 = vmatmul.mubr.f32.gmra.mxu0 %v434
      %v568 = vpop.f32.mrf.mxu0
      %v569 = vadd.f32 %v369, %v568
      %v570 = vpop.f32.mrf.mxu0
      %v571 = vadd.f32 %v369, %v570
      %572 = vmatprep.mubr.f32.mxu0 0.0
      %573 = vmatmul.mubr.f32.gmra.mxu0 %v437
      %v574 = vpop.f32.mrf.mxu0
      %v575 = vadd.f32 %v374, %v574
      %v576 = vpop.f32.mrf.mxu0
      %v577 = vadd.f32 %v374, %v576
      %578 = vmatprep.mubr.f32.mxu0 0.0
      %579 = vmatmul.mubr.f32.gmra.mxu0 %v440
      %v580 = vpop.f32.mrf.mxu0
      %v581 = vadd.f32 %v379, %v580
      %v582 = vpop.f32.mrf.mxu0
      %v583 = vadd.f32 %v379, %v582
      %584 = vmatprep.mubr.f32.mxu0 0.0
      %585 = vmatmul.mubr.f32.gmra.mxu0 %v443
      %v586 = vpop.f32.mrf.mxu0
      %v587 = vadd.f32 %v384, %v586
      %v588 = vpop.f32.mrf.mxu0
      %v589 = vadd.f32 %v384, %v588
      %590 = vmatprep.mubr.f32.mxu0 0.0
      %591 = vmatmul.mubr.f32.gmra.mxu0 %v446
      %v592 = vpop.f32.mrf.mxu0
      %v593 = vadd.f32 %v389, %v592
      %v594 = vpop.f32.mrf.mxu0
      %v595 = vadd.f32 %v389, %v594
      %596 = vmatprep.mubr.f32.mxu0 0.0
      %597 = vmatmul.mubr.f32.gmra.mxu0 %v449
      %v598 = vpop.f32.mrf.mxu0
      %v599 = vadd.f32 %v394, %v598
      %v600 = vpop.f32.mrf.mxu0
      %v601 = vadd.f32 %v394, %v600
      %602 = vmatprep.mubr.f32.mxu0 0.0
      %603 = vmatmul.mubr.f32.gmra.mxu0 %v452
      %v604 = vpop.f32.mrf.mxu0
      %v605 = vadd.f32 %v399, %v604
      %v606 = vpop.f32.mrf.mxu0
      %v607 = vadd.f32 %v399, %v606
      %608 = vmatprep.mubr.f32.mxu0 0.0
      %609 = vmatmul.mubr.f32.gmra.mxu0 %v455
      %v610 = vpop.f32.mrf.mxu0
      %v611 = vadd.f32 %v404, %v610
      %v612 = vpop.f32.mrf.mxu0
      %v613 = vadd.f32 %v404, %v612
      %614 = vmatprep.mubr.f32.mxu0 0.0
      %615 = vmatmul.mubr.f32.gmra.mxu0 %v458
      %v616 = vpop.f32.mrf.mxu0
      %v617 = vadd.f32 %v409, %v616
      %v618 = vpop.f32.mrf.mxu0
      %v619 = vadd.f32 %v409, %v618
      %620 = vdwg.mxu0
      %v621 = vtanh.pop %v527
      %v622 = vtanh.pop %v529
      %v623 = vtanh.pop %v533
      %v624 = vtanh.pop %v535
      %v625 = vtanh.pop %v539
      %v626 = vtanh.pop %v541
      %v627 = vtanh.pop %v545
      %v628 = vtanh.pop %v547
      %v629 = vtanh.pop %v551
      %v630 = vtanh.pop %v553
      %v631 = vtanh.pop %v557
      %v632 = vtanh.pop %v559
      %v633 = vtanh.pop %v563
      %v634 = vtanh.pop %v565
      %v635 = vtanh.pop %v569
      %v636 = vtanh.pop %v571
      %v637 = vtanh.pop %v575
      %v638 = vtanh.pop %v577
      %v639 = vtanh.pop %v581
      %v640 = vtanh.pop %v583
      %v641 = vtanh.pop %v587
      %v642 = vtanh.pop %v589
      %v643 = vtanh.pop %v593
      %v644 = vtanh.pop %v595
      %v645 = vtanh.pop %v599
      %v646 = vtanh.pop %v601
      %v647 = vtanh.pop %v605
      %v648 = vtanh.pop %v607
      %v649 = vtanh.pop %v611
      %v650 = vtanh.pop %v613
      %v651 = vtanh.pop %v617
      %v652 = vtanh.pop %v619
      %v653 = vld [vmem:[%s5] sm:$0x1]
      %v654 = vld [vmem:[#allocation2] sm:$0x1]
      %656 = vset.pattern.permute.xlu0 0
      %657 = vperm.xlu0 %656, %v654
      %v658 = vpop.permute.xlu0 %657
      %v660 = vlaneseq
      %v661 = vshrl.u32 %v660, 7
      %v662 = vsub.s32 0, %v661
      %v663 = vrot.slane %v658, %v662
      %664 = vmatprep.subr.mxu0 %v652
      %665 = vmatpush1.msra.mxu0 %v651
      %666 = vmatprep.subr.mxu0 %v650
      %667 = vmatpush1.msra.mxu0 %v649
      %668 = vmatprep.subr.mxu0 %v648
      %669 = vmatpush1.msra.mxu0 %v647
      %670 = vmatprep.subr.mxu0 %v646
      %671 = vmatpush1.msra.mxu0 %v645
      %672 = vmatprep.subr.mxu0 %v644
      %673 = vmatpush1.msra.mxu0 %v643
      %674 = vmatprep.subr.mxu0 %v642
      %675 = vmatpush1.msra.mxu0 %v641
      %676 = vmatprep.subr.mxu0 %v640
      %677 = vmatpush1.msra.mxu0 %v639
      %678 = vmatprep.subr.mxu0 %v638
      %679 = vmatpush1.msra.mxu0 %v637
      %680 = vmatprep.subr.mxu0 %v636
      %681 = vmatpush1.msra.mxu0 %v635
      %682 = vmatprep.subr.mxu0 %v634
      %683 = vmatpush1.msra.mxu0 %v633
      %684 = vmatprep.subr.mxu0 %v632
      %685 = vmatpush1.msra.mxu0 %v631
      %686 = vmatprep.subr.mxu0 %v630
      %687 = vmatpush1.msra.mxu0 %v629
      %688 = vmatprep.subr.mxu0 %v628
      %689 = vmatpush1.msra.mxu0 %v627
      %690 = vmatprep.subr.mxu0 %v626
      %691 = vmatpush1.msra.mxu0 %v625
      %692 = vmatprep.subr.mxu0 %v624
      %693 = vmatpush1.msra.mxu0 %v623
      %694 = vmatprep.subr.mxu0 %v622
      %695 = vmatpush1.msra.mxu0 %v621
      %696 = vmatprep.subr.mxu0 0.0
      %697 = vmatpush2.msra.mxu0 0.0
      %698 = vmatprep.subr.mxu0 0.0
      %699 = vmatpush2.msra.mxu0 0.0
      %700 = vmatprep.subr.mxu0 0.0
      %701 = vmatpush2.msra.mxu0 0.0
      %702 = vmatprep.subr.mxu0 0.0
      %703 = vmatpush2.msra.mxu0 0.0
      %704 = vmatprep.subr.mxu0 0.0
      %705 = vmatpush2.msra.mxu0 0.0
      %706 = vmatprep.subr.mxu0 0.0
      %707 = vmatpush2.msra.mxu0 0.0
      %708 = vmatprep.subr.mxu0 0.0
      %709 = vmatpush2.msra.mxu0 0.0
      %710 = vmatprep.subr.mxu0 0.0
      %711 = vmatpush2.msra.mxu0 0.0
      %712 = vmatprep.subr.mxu0 0.0
      %713 = vmatpush2.msra.mxu0 0.0
      %714 = vmatprep.subr.mxu0 0.0
      %715 = vmatpush2.msra.mxu0 0.0
      %716 = vmatprep.subr.mxu0 0.0
      %717 = vmatpush2.msra.mxu0 0.0
      %718 = vmatprep.subr.mxu0 0.0
      %719 = vmatpush2.msra.mxu0 0.0
      %720 = vmatprep.subr.mxu0 0.0
      %721 = vmatpush2.msra.mxu0 0.0
      %722 = vmatprep.subr.mxu0 0.0
      %723 = vmatpush2.msra.mxu0 0.0
      %724 = vmatprep.subr.mxu0 0.0
      %725 = vmatpush2.msra.mxu0 0.0
      %726 = vmatprep.subr.mxu0 0.0
      %727 = vmatpush2.msra.mxu0 0.0
      %728 = vmatprep.mubr.f32.mxu0 0.0
      %729 = vmatmul.mubr.f32.gmra.mxu0 %v653
      %v730 = vpop.f32.mrf.mxu0
      %v731 = vadd.f32 %v663, %v730
      %v732 = vpop.f32.mrf.mxu0
      %v733 = vadd.f32 %v663, %v732
      %734 = vdwg.mxu0
      %v735 = vxor.u32 %v731, 2147483648
      %v736 = vxor.u32 %v733, 2147483648
      %v737 = vmul.f32 %v735, 1.442695
      %v738 = vpow.pop %v737
      %v739 = vmul.f32 %v736, 1.442695
      %v740 = vpow.pop %v739
      %v741 = vadd.f32 %v738, 1.0
      %v742 = vadd.f32 %v740, 1.0
      %v743 = vrcp.pop %v741
      %v744 = vmul.f32 1.0, %v743
      %v745 = vrcp.pop %v742
      %v746 = vmul.f32 1.0, %v745
      %v747 = vmul.f32 %v744, 0.95
      %v748 = vmul.f32 %v746, 0.95
      %v749 = vadd.f32 %v747, 0.05
      %v750 = vadd.f32 %v748, 0.05
      %v753 = vcombine.low %v749, %v750
      %v755 = vunpack.c.l.s4 1966171168
      %v756 = vunpack.c.0.s8 %v755
      %v757 = vlaneseq
      %v758 = vshrl.u32 %v757, 7
      %v759 = vsub.s32 %v756, %v758
      %v760 = vrot.slane %v753, %v759
      %v762 = vunpack.c.l.s4 1966171168
      %v763 = vunpack.c.0.s8 %v762
      %v764 = vlaneseq
      %v765 = vshrl.u32 %v764, 7
      %v766 = vsub.s32 %v763, %v765
      %v767 = vrot.slane %v760, %v766
      %v769 = vlaneseq
      %vm770 = vcmp.ge.s32.totalorder %v769, 0
      %vm771 = vcmp.lt.s32.totalorder %v769, 256
      %vm772 = vmand %vm770, %vm771
      %773 = vst.msk [vmem:[%s278] sm:$0x3] %vm772, %v767
      %p774 = scmp.lt.s32.totalorder %s20, 1
      %s775 = scalar_select %p774, %s20, 1
      %s776 = smul.addr %s775, 2
      %s777 = scalar_lea.vmem %s7, %s776
      // Predicated region
      $region49: #{alpha_fno2d_forward.9} parent=47 // pred_check
        %p778 = pneg %p190
      $region50: #{alpha_fno2d_forward.9} parent=47 // pred_check_branch
        %780 = sbr.rel (%p778) target = $region52
      $region51: #{alpha_fno2d_forward.9} parent=47 // pred_region
        _
      $region52: #{alpha_fno2d_forward.9} parent=47 // pred_fallthru
        _
    $region48: #{alpha_fno2d_forward.9} parent=5 // pred_fallthru
      _
    %p781 = scmp.le.s32.totalorder 2, %s15
    // Predicated region
    $region53: #{alpha_fno2d_forward.9} parent=5 // pred_check
      %p782 = pneg %p781
    $region54: #{alpha_fno2d_forward.9} parent=5 // pred_check_branch
      %784 = sbr.rel (%p782) target = $region56
    $region55: #{alpha_fno2d_forward.9} parent=5 // pred_region
      %s785 = ssub.s32 %s15, 2
      // Predicated region
      $region57: #{alpha_fno2d_forward.9} parent=55 // pred_check
        %p786 = pneg %p196
      $region58: #{alpha_fno2d_forward.9} parent=55 // pred_check_branch
        %788 = sbr.rel (%p786) target = $region60
      $region59: #{alpha_fno2d_forward.9} parent=55 // pred_region
        %p789 = scmp.lt.s32.totalorder %s21, 1
        %s790 = scalar_select %p789, %s21, 1
        %s791 = smul.addr %s790, 2
        %s792 = scalar_lea.vmem %s7, %s791
      $region60: #{alpha_fno2d_forward.9} parent=55 // pred_fallthru
        _
    $region56: #{alpha_fno2d_forward.9} parent=5 // pred_fallthru
      _
  $region6: #{alpha_fno2d_forward.9} parent=0 // loop_footer
    %s19 = sadd.s32 1, %s15
  $region7: #{alpha_fno2d_forward.9} parent=0 // loop_footer_branch
    %14 = sbr.rel target = $region3
  $region8: #{alpha_fno2d_forward.9} parent=0 // loop_exit
    _

</llo_original>
